<compile_context>
chip_gen: v7x
topology: tpu7x:2x2x1
jax: 0.10.0
libtpu: 0.0.40
codegen_flags: <defaults>
</compile_context>

<pallas_src>
import jax
import jax.numpy as jnp
from jax import lax
from jax.experimental import pallas as pl
from jax.experimental.pallas import tpu as pltpu


# ----------------------------------------------------------------------------
# helpers used inside kernels
# ----------------------------------------------------------------------------
def _pool2x2(y, h, w, c):
    """2x2 max pool of a (h, w, c) value via reshape + pairwise max."""
    r = y.reshape(h // 2, 2, w, c)
    v = jnp.maximum(r[:, 0], r[:, 1])            # (h/2, w, c)
    r = v.reshape(h // 2, w // 2, 2, c)
    return jnp.maximum(r[:, :, 0], r[:, :, 1])   # (h/2, w/2, c)


# ----------------------------------------------------------------------------
# Kernel 1: fused CNN feature extractor (per batch element)
# ----------------------------------------------------------------------------
def _cnn_kernel(x_ref, w1_ref, b1_ref, s1_ref, t1_ref,
                w2_ref, b2_ref, s2_ref, t2_ref,
                seq_ref, xpad1_ref, xpad2_ref):
    H, W = x_ref.shape[1], x_ref.shape[2]
    C1 = w1_ref.shape[1]          # 16
    C2 = w2_ref.shape[3]          # 32
    H2, W2 = H // 2, W // 2
    H4, W4 = H2 // 2, W2 // 2

    # ---- conv1 (cin = 1) + bias + ReLU + folded BN, padding via VMEM scratch
    xpad1_ref[...] = jnp.zeros((H + 2, W + 2), jnp.float32)
    xpad1_ref[1:H + 1, 1:W + 1] = x_ref[0]
    w1 = w1_ref[...]                                  # (9, C1)
    acc1 = jnp.zeros((H, W, C1), jnp.float32)
    for ky in range(3):
        for kx in range(3):
            win = xpad1_ref[ky:ky + H, kx:kx + W]     # (H, W)
            acc1 = acc1 + win[:, :, None] * w1[ky * 3 + kx]
    y1 = jnp.maximum(acc1 + b1_ref[0], 0.0) * s1_ref[0] + t1_ref[0]

    # ---- maxpool 2x2
    p1 = _pool2x2(y1, H, W, C1)                       # (H2, W2, C1)

    # ---- conv2 + bias + ReLU + folded BN
    xpad2_ref[...] = jnp.zeros((H2 + 2, W2 + 2, C1), jnp.float32)
    xpad2_ref[1:H2 + 1, 1:W2 + 1, :] = p1
    acc2 = jnp.zeros((H2 * W2, C2), jnp.float32)
    for ky in range(3):
        for kx in range(3):
            win = xpad2_ref[ky:ky + H2, kx:kx + W2, :].reshape(H2 * W2, C1)
            acc2 = acc2 + jnp.dot(win, w2_ref[ky, kx],
                                  preferred_element_type=jnp.float32)
    y2 = jnp.maximum(acc2 + b2_ref[0], 0.0) * s2_ref[0] + t2_ref[0]

    # ---- maxpool 2x2
    p2 = _pool2x2(y2.reshape(H2, W2, C2), H2, W2, C2)  # (H4, W4, C2)

    # ---- sequence layout: seq[w, c*H4 + h] = p2[h, w, c]
    # (matches PyTorch: (B, C, H4, W4).permute(0, 3, 1, 2).reshape(B, W4, -1))
    q = jnp.transpose(p2, (1, 0, 2))                   # (W4, H4, C2)
    q = jnp.transpose(q, (0, 2, 1))                    # (W4, C2, H4)
    seq_ref[0] = q.reshape(W4, C2 * H4)


def cnn_features(x_bhw, p):
    B, H, W = x_bhw.shape
    C1 = p['w1'].shape[1]
    C2 = p['w2'].shape[3]
    H2, W2 = H // 2, W // 2
    H4, W4 = H2 // 2, W2 // 2
    T, F = W4, C2 * H4
    return pl.pallas_call(
        _cnn_kernel,
        out_shape=jax.ShapeDtypeStruct((B, T, F), jnp.float32),
        grid=(B,),
        in_specs=[
            pl.BlockSpec((1, H, W), lambda n: (n, 0, 0)),
            pl.BlockSpec((9, C1), lambda n: (0, 0)),
            pl.BlockSpec((1, C1), lambda n: (0, 0)),
            pl.BlockSpec((1, C1), lambda n: (0, 0)),
            pl.BlockSpec((1, C1), lambda n: (0, 0)),
            pl.BlockSpec((3, 3, C1, C2), lambda n: (0, 0, 0, 0)),
            pl.BlockSpec((1, C2), lambda n: (0, 0)),
            pl.BlockSpec((1, C2), lambda n: (0, 0)),
            pl.BlockSpec((1, C2), lambda n: (0, 0)),
        ],
        out_specs=pl.BlockSpec((1, T, F), lambda n: (n, 0, 0)),
        scratch_shapes=[
            pltpu.VMEM((H + 2, W + 2), jnp.float32),
            pltpu.VMEM((H2 + 2, W2 + 2, C1), jnp.float32),
        ],
        compiler_params=pltpu.CompilerParams(dimension_semantics=("parallel",)),
    )(x_bhw, p['w1'], p['b1'], p['scale1'], p['shift1'],
      p['w2'], p['b2'], p['scale2'], p['shift2'])


# ----------------------------------------------------------------------------
# Kernel 2: fused bidirectional LSTM (PyTorch gate order i, f, g, o) + FC
# ----------------------------------------------------------------------------
def _bilstm_fc_kernel(seq_ref, wihf_ref, whhf_ref, bf_ref,
                      wihb_ref, whhb_ref, bb_ref,
                      wfc_ref, bfc_ref, o_ref, gxf_ref):
    B, T, F = seq_ref.shape
    H = whhf_ref.shape[0]

    s = seq_ref[...]                                   # (B, T, F)
    s_tm = jnp.transpose(s, (1, 0, 2))                 # (T, B, F) time-major

    # Hoisted input projection for the forward direction: one MXU matmul
    # instead of T tiny matmuls inside the serial recurrence.
    gx = (jnp.dot(s_tm.reshape(T * B, F), wihf_ref[...],
                  preferred_element_type=jnp.float32) + bf_ref[0])
    gxf_ref[...] = gx.reshape(T, B, 4 * H)

    whh_f = whhf_ref[...]

    def gates(g, c):
        i_g = jax.nn.sigmoid(g[:, 0 * H:1 * H])
        f_g = jax.nn.sigmoid(g[:, 1 * H:2 * H])
        g_g = jnp.tanh(g[:, 2 * H:3 * H])
        o_g = jax.nn.sigmoid(g[:, 3 * H:4 * H])
        c_n = f_g * c + i_g * g_g
        return o_g * jnp.tanh(c_n), c_n

    h0 = jnp.zeros((B, H), jnp.float32)
    c0 = jnp.zeros((B, H), jnp.float32)

    def fwd_body(t, carry):
        h, c = carry
        g = gxf_ref[t] + jnp.dot(h, whh_f, preferred_element_type=jnp.float32)
        return gates(g, c)

    h_f, _ = lax.fori_loop(0, T, fwd_body, (h0, c0), unroll=True)

    # Backward direction: fc(output[:, -1]) only needs its output at t = T-1,
    # which is a single cell step starting from zero state (h0 = c0 = 0).
    gb = (jnp.dot(s_tm[T - 1], wihb_ref[...],
                  preferred_element_type=jnp.float32) + bb_ref[0])
    h_b, _ = gates(gb, c0)

    # Fused FC: [h_f | h_b] @ Wfc + b, without materialising the concat.
    wfc = wfc_ref[...]
    out = (jnp.dot(h_f, wfc[:H], preferred_element_type=jnp.float32)
           + jnp.dot(h_b, wfc[H:], preferred_element_type=jnp.float32)
           + bfc_ref[0])
    o_ref[...] = out


def bilstm_fc(seq, p):
    B, T, F = seq.shape
    H = p['whh_f'].shape[0]
    C = p['wfc'].shape[1]

    def full(shape):
        return pl.BlockSpec(shape, lambda i, s=shape: (0,) * len(s))

    return pl.pallas_call(
        _bilstm_fc_kernel,
        out_shape=jax.ShapeDtypeStruct((B, C), jnp.float32),
        grid=(1,),
        in_specs=[full((B, T, F)),
                  full((F, 4 * H)), full((H, 4 * H)), full((1, 4 * H)),
                  full((F, 4 * H)), full((H, 4 * H)), full((1, 4 * H)),
                  full((2 * H, C)), full((1, C))],
        out_specs=full((B, C)),
        scratch_shapes=[pltpu.VMEM((T, B, 4 * H), jnp.float32)],
        compiler_params=pltpu.CompilerParams(dimension_semantics=("arbitrary",)),
    )(seq, p['wih_f'], p['whh_f'], p['b_f'],
      p['wih_b'], p['whh_b'], p['b_b'], p['wfc'], p['bfc'])


# ----------------------------------------------------------------------------
# Full forward: exactly two pallas_calls; only wrapper glue is the channel squeeze
# ----------------------------------------------------------------------------
def cnn_bilstm_forward(x_nchw, p):
    x = jnp.squeeze(x_nchw, axis=1)        # (B, H, W); in_channels == 1
    seq = cnn_features(x, p)               # (B, T, F) lane-dense LSTM input
    return bilstm_fc(seq, p)               # (B, num_classes)


# ----------------------------------------------------------------------------
# Deterministic parameter init (PyTorch-convention shapes, pre-transposed)
# ----------------------------------------------------------------------------
def init_params(key, input_size=16, hidden_dim=32, num_classes=8):
    feat = input_size // 4 * 32
    keys = iter(jax.random.split(key, 32))

    def rnd(shape, scale=0.1):
        return jax.random.normal(next(keys), shape, dtype=jnp.float32) * scale

    p = {}

    def conv_bn(cin, cout):
        w = rnd((cout, cin, 3, 3))                     # PyTorch OIHW
        w = jnp.transpose(w, (2, 3, 1, 0))             # -> (3, 3, cin, cout)
        b = rnd((1, cout))
        gamma = 1.0 + rnd((cout,))
        beta = rnd((cout,))
        mean = rnd((cout,))
        var = 1.0 + jnp.abs(rnd((cout,)))
        scale = gamma / jnp.sqrt(var + 1e-5)
        shift = beta - mean * scale
        return w, b, scale.reshape(1, cout), shift.reshape(1, cout)

    w1, p['b1'], p['scale1'], p['shift1'] = conv_bn(1, 16)
    p['w1'] = w1.reshape(9, 16)                        # (3,3,1,16) -> (9,16)
    p['w2'], p['b2'], p['scale2'], p['shift2'] = conv_bn(16, 32)

    def lstm_dir():
        wih = rnd((4 * hidden_dim, feat))              # PyTorch (4H, F)
        whh = rnd((4 * hidden_dim, hidden_dim))        # (4H, H)
        bih = rnd((4 * hidden_dim,))
        bhh = rnd((4 * hidden_dim,))
        return (jnp.transpose(wih), jnp.transpose(whh),
                (bih + bhh).reshape(1, 4 * hidden_dim))

    p['wih_f'], p['whh_f'], p['b_f'] = lstm_dir()
    p['wih_b'], p['whh_b'], p['b_b'] = lstm_dir()

    wfc = rnd((num_classes, 2 * hidden_dim))           # PyTorch (out, in)
    p['wfc'] = jnp.transpose(wfc)
    p['bfc'] = rnd((1, num_classes))
    return p


if __name__ == "__main__":
    key = jax.random.PRNGKey(0)
    k_x, k_p = jax.random.split(key)

    input_size = 16        # "frequency" (height) dim; module default 64, kept small
    hidden_dim = 32
    num_classes = 8
    B, W = 2, 16           # batch, time (width) -> LSTM seq len = W // 4 = 4

    x = jax.random.normal(k_x, (B, 1, input_size, W), dtype=jnp.float32)  # NCHW
    params = init_params(k_p, input_size=input_size,
                         hidden_dim=hidden_dim, num_classes=num_classes)

    out = cnn_bilstm_forward(x, params)
    out = jax.block_until_ready(out)
    assert out.shape == (B, num_classes)
    assert bool(jnp.all(jnp.isfinite(out)))
    print("KERNEL_OK")
</pallas_src>

<mosaic_0001>
module attributes {stable_mosaic.version = 11 : i64} {
  func.func @_cnn_kernel(%arg0: i32, %arg1: memref<1x16x16xf32, #tpu.memory_space<vmem>>, %arg2: memref<9x16xf32, #tpu.memory_space<vmem>>, %arg3: memref<1x16xf32, #tpu.memory_space<vmem>>, %arg4: memref<1x16xf32, #tpu.memory_space<vmem>>, %arg5: memref<1x16xf32, #tpu.memory_space<vmem>>, %arg6: memref<3x3x16x32xf32, #tpu.memory_space<vmem>>, %arg7: memref<1x32xf32, #tpu.memory_space<vmem>>, %arg8: memref<1x32xf32, #tpu.memory_space<vmem>>, %arg9: memref<1x32xf32, #tpu.memory_space<vmem>>, %arg10: memref<1x4x128xf32, #tpu.memory_space<vmem>>, %arg11: memref<18x18xf32, #tpu.memory_space<vmem>>, %arg12: memref<10x10x16xf32, #tpu.memory_space<vmem>>) attributes {dimension_semantics = [#tpu.dimension_semantics<parallel>], iteration_bounds = array<i64: 2>, scalar_prefetch = 0 : i64, scratch_operands = 2 : i64, tpu.core_type = #tpu.core_type<tc>, window_params = [{transform_indices = @transform_0, window_bounds = array<i64: 1, 16, 16>}, {pipeline_mode = #tpu.pipeline_mode<synchronous>, transform_indices = @transform_1, window_bounds = array<i64: 9, 16>}, {pipeline_mode = #tpu.pipeline_mode<synchronous>, transform_indices = @transform_2, window_bounds = array<i64: 1, 16>}, {pipeline_mode = #tpu.pipeline_mode<synchronous>, transform_indices = @transform_3, window_bounds = array<i64: 1, 16>}, {pipeline_mode = #tpu.pipeline_mode<synchronous>, transform_indices = @transform_4, window_bounds = array<i64: 1, 16>}, {pipeline_mode = #tpu.pipeline_mode<synchronous>, transform_indices = @transform_5, window_bounds = array<i64: 3, 3, 16, 32>}, {pipeline_mode = #tpu.pipeline_mode<synchronous>, transform_indices = @transform_6, window_bounds = array<i64: 1, 32>}, {pipeline_mode = #tpu.pipeline_mode<synchronous>, transform_indices = @transform_7, window_bounds = array<i64: 1, 32>}, {pipeline_mode = #tpu.pipeline_mode<synchronous>, transform_indices = @transform_8, window_bounds = array<i64: 1, 32>}, {transform_indices = @transform_9, window_bounds = array<i64: 1, 4, 128>}]} {
    %cst = arith.constant 0.000000e+00 : f32
    %0 = vector.broadcast %cst : f32 to vector<18x18xf32>
    %c0 = arith.constant 0 : index
    %c0_0 = arith.constant 0 : index
    %1 = vector.load %arg11[%c0, %c0_0] : memref<18x18xf32, #tpu.memory_space<vmem>>, vector<18x18xf32>
    tpu.vector_store %arg11[%c0, %c0_0], %0 {strides = array<i32>} : memref<18x18xf32, #tpu.memory_space<vmem>>, vector<18x18xf32>,
    %c0_1 = arith.constant 0 : index
    %c0_2 = arith.constant 0 : index
    %c0_3 = arith.constant 0 : index
    %2 = vector.load %arg1[%c0_1, %c0_2, %c0_3] : memref<1x16x16xf32, #tpu.memory_space<vmem>>, vector<1x16x16xf32>
    %3 = vector.shape_cast %2 : vector<1x16x16xf32> to vector<16x16xf32>
    %c1 = arith.constant 1 : index
    %c1_4 = arith.constant 1 : index
    %4 = vector.load %arg11[%c1, %c1_4] : memref<18x18xf32, #tpu.memory_space<vmem>>, vector<16x16xf32>
    tpu.vector_store %arg11[%c1, %c1_4], %3 {strides = array<i32>} : memref<18x18xf32, #tpu.memory_space<vmem>>, vector<16x16xf32>,
    %c0_5 = arith.constant 0 : index
    %c0_6 = arith.constant 0 : index
    %5 = vector.load %arg2[%c0_5, %c0_6] : memref<9x16xf32, #tpu.memory_space<vmem>>, vector<9x16xf32>
    %cst_7 = arith.constant 0.000000e+00 : f32
    %6 = vector.broadcast %cst_7 : f32 to vector<16x16x16xf32>
    %c0_8 = arith.constant 0 : index
    %c0_9 = arith.constant 0 : index
    %7 = vector.load %arg11[%c0_8, %c0_9] : memref<18x18xf32, #tpu.memory_space<vmem>>, vector<16x16xf32>
    %8 = vector.shape_cast %7 : vector<16x16xf32> to vector<16x16x1xf32>
    %9 = vector.extract_strided_slice %5 {offsets = [0, 0], sizes = [1, 16], strides = [1, 1]} : vector<9x16xf32> to vector<1x16xf32>
    %10 = vector.shape_cast %9 : vector<1x16xf32> to vector<16xf32>
    %11 = vector.shape_cast %10 : vector<16xf32> to vector<1x1x16xf32>
    %12 = vector.broadcast %8 : vector<16x16x1xf32> to vector<16x16x16xf32>
    %13 = vector.broadcast %11 : vector<1x1x16xf32> to vector<16x16x16xf32>
    %14 = arith.mulf %12, %13 : vector<16x16x16xf32>
    %15 = arith.addf %6, %14 : vector<16x16x16xf32>
    %c0_10 = arith.constant 0 : index
    %c1_11 = arith.constant 1 : index
    %16 = vector.load %arg11[%c0_10, %c1_11] : memref<18x18xf32, #tpu.memory_space<vmem>>, vector<16x16xf32>
    %17 = vector.shape_cast %16 : vector<16x16xf32> to vector<16x16x1xf32>
    %18 = vector.extract_strided_slice %5 {offsets = [1, 0], sizes = [1, 16], strides = [1, 1]} : vector<9x16xf32> to vector<1x16xf32>
    %19 = vector.shape_cast %18 : vector<1x16xf32> to vector<16xf32>
    %20 = vector.shape_cast %19 : vector<16xf32> to vector<1x1x16xf32>
    %21 = vector.broadcast %17 : vector<16x16x1xf32> to vector<16x16x16xf32>
    %22 = vector.broadcast %20 : vector<1x1x16xf32> to vector<16x16x16xf32>
    %23 = arith.mulf %21, %22 : vector<16x16x16xf32>
    %24 = arith.addf %15, %23 : vector<16x16x16xf32>
    %c0_12 = arith.constant 0 : index
    %c2 = arith.constant 2 : index
    %25 = vector.load %arg11[%c0_12, %c2] : memref<18x18xf32, #tpu.memory_space<vmem>>, vector<16x16xf32>
    %26 = vector.shape_cast %25 : vector<16x16xf32> to vector<16x16x1xf32>
    %27 = vector.extract_strided_slice %5 {offsets = [2, 0], sizes = [1, 16], strides = [1, 1]} : vector<9x16xf32> to vector<1x16xf32>
    %28 = vector.shape_cast %27 : vector<1x16xf32> to vector<16xf32>
    %29 = vector.shape_cast %28 : vector<16xf32> to vector<1x1x16xf32>
    %30 = vector.broadcast %26 : vector<16x16x1xf32> to vector<16x16x16xf32>
    %31 = vector.broadcast %29 : vector<1x1x16xf32> to vector<16x16x16xf32>
    %32 = arith.mulf %30, %31 : vector<16x16x16xf32>
    %33 = arith.addf %24, %32 : vector<16x16x16xf32>
    %c1_13 = arith.constant 1 : index
    %c0_14 = arith.constant 0 : index
    %34 = vector.load %arg11[%c1_13, %c0_14] : memref<18x18xf32, #tpu.memory_space<vmem>>, vector<16x16xf32>
    %35 = vector.shape_cast %34 : vector<16x16xf32> to vector<16x16x1xf32>
    %36 = vector.extract_strided_slice %5 {offsets = [3, 0], sizes = [1, 16], strides = [1, 1]} : vector<9x16xf32> to vector<1x16xf32>
    %37 = vector.shape_cast %36 : vector<1x16xf32> to vector<16xf32>
    %38 = vector.shape_cast %37 : vector<16xf32> to vector<1x1x16xf32>
    %39 = vector.broadcast %35 : vector<16x16x1xf32> to vector<16x16x16xf32>
    %40 = vector.broadcast %38 : vector<1x1x16xf32> to vector<16x16x16xf32>
    %41 = arith.mulf %39, %40 : vector<16x16x16xf32>
    %42 = arith.addf %33, %41 : vector<16x16x16xf32>
    %c1_15 = arith.constant 1 : index
    %c1_16 = arith.constant 1 : index
    %43 = vector.load %arg11[%c1_15, %c1_16] : memref<18x18xf32, #tpu.memory_space<vmem>>, vector<16x16xf32>
    %44 = vector.shape_cast %43 : vector<16x16xf32> to vector<16x16x1xf32>
    %45 = vector.extract_strided_slice %5 {offsets = [4, 0], sizes = [1, 16], strides = [1, 1]} : vector<9x16xf32> to vector<1x16xf32>
    %46 = vector.shape_cast %45 : vector<1x16xf32> to vector<16xf32>
    %47 = vector.shape_cast %46 : vector<16xf32> to vector<1x1x16xf32>
    %48 = vector.broadcast %44 : vector<16x16x1xf32> to vector<16x16x16xf32>
    %49 = vector.broadcast %47 : vector<1x1x16xf32> to vector<16x16x16xf32>
    %50 = arith.mulf %48, %49 : vector<16x16x16xf32>
    %51 = arith.addf %42, %50 : vector<16x16x16xf32>
    %c1_17 = arith.constant 1 : index
    %c2_18 = arith.constant 2 : index
    %52 = vector.load %arg11[%c1_17, %c2_18] : memref<18x18xf32, #tpu.memory_space<vmem>>, vector<16x16xf32>
    %53 = vector.shape_cast %52 : vector<16x16xf32> to vector<16x16x1xf32>
    %54 = vector.extract_strided_slice %5 {offsets = [5, 0], sizes = [1, 16], strides = [1, 1]} : vector<9x16xf32> to vector<1x16xf32>
    %55 = vector.shape_cast %54 : vector<1x16xf32> to vector<16xf32>
    %56 = vector.shape_cast %55 : vector<16xf32> to vector<1x1x16xf32>
    %57 = vector.broadcast %53 : vector<16x16x1xf32> to vector<16x16x16xf32>
    %58 = vector.broadcast %56 : vector<1x1x16xf32> to vector<16x16x16xf32>
    %59 = arith.mulf %57, %58 : vector<16x16x16xf32>
    %60 = arith.addf %51, %59 : vector<16x16x16xf32>
    %c2_19 = arith.constant 2 : index
    %c0_20 = arith.constant 0 : index
    %61 = vector.load %arg11[%c2_19, %c0_20] : memref<18x18xf32, #tpu.memory_space<vmem>>, vector<16x16xf32>
    %62 = vector.shape_cast %61 : vector<16x16xf32> to vector<16x16x1xf32>
    %63 = vector.extract_strided_slice %5 {offsets = [6, 0], sizes = [1, 16], strides = [1, 1]} : vector<9x16xf32> to vector<1x16xf32>
    %64 = vector.shape_cast %63 : vector<1x16xf32> to vector<16xf32>
    %65 = vector.shape_cast %64 : vector<16xf32> to vector<1x1x16xf32>
    %66 = vector.broadcast %62 : vector<16x16x1xf32> to vector<16x16x16xf32>
    %67 = vector.broadcast %65 : vector<1x1x16xf32> to vector<16x16x16xf32>
    %68 = arith.mulf %66, %67 : vector<16x16x16xf32>
    %69 = arith.addf %60, %68 : vector<16x16x16xf32>
    %c2_21 = arith.constant 2 : index
    %c1_22 = arith.constant 1 : index
    %70 = vector.load %arg11[%c2_21, %c1_22] : memref<18x18xf32, #tpu.memory_space<vmem>>, vector<16x16xf32>
    %71 = vector.shape_cast %70 : vector<16x16xf32> to vector<16x16x1xf32>
    %72 = vector.extract_strided_slice %5 {offsets = [7, 0], sizes = [1, 16], strides = [1, 1]} : vector<9x16xf32> to vector<1x16xf32>
    %73 = vector.shape_cast %72 : vector<1x16xf32> to vector<16xf32>
    %74 = vector.shape_cast %73 : vector<16xf32> to vector<1x1x16xf32>
    %75 = vector.broadcast %71 : vector<16x16x1xf32> to vector<16x16x16xf32>
    %76 = vector.broadcast %74 : vector<1x1x16xf32> to vector<16x16x16xf32>
    %77 = arith.mulf %75, %76 : vector<16x16x16xf32>
    %78 = arith.addf %69, %77 : vector<16x16x16xf32>
    %c2_23 = arith.constant 2 : index
    %c2_24 = arith.constant 2 : index
    %79 = vector.load %arg11[%c2_23, %c2_24] : memref<18x18xf32, #tpu.memory_space<vmem>>, vector<16x16xf32>
    %80 = vector.shape_cast %79 : vector<16x16xf32> to vector<16x16x1xf32>
    %81 = vector.extract_strided_slice %5 {offsets = [8, 0], sizes = [1, 16], strides = [1, 1]} : vector<9x16xf32> to vector<1x16xf32>
    %82 = vector.shape_cast %81 : vector<1x16xf32> to vector<16xf32>
    %83 = vector.shape_cast %82 : vector<16xf32> to vector<1x1x16xf32>
    %84 = vector.broadcast %80 : vector<16x16x1xf32> to vector<16x16x16xf32>
    %85 = vector.broadcast %83 : vector<1x1x16xf32> to vector<16x16x16xf32>
    %86 = arith.mulf %84, %85 : vector<16x16x16xf32>
    %87 = arith.addf %78, %86 : vector<16x16x16xf32>
    %c0_25 = arith.constant 0 : index
    %c0_26 = arith.constant 0 : index
    %88 = vector.load %arg3[%c0_25, %c0_26] : memref<1x16xf32, #tpu.memory_space<vmem>>, vector<1x16xf32>
    %89 = vector.shape_cast %88 : vector<1x16xf32> to vector<16xf32>
    %90 = vector.shape_cast %89 : vector<16xf32> to vector<1x1x16xf32>
    %91 = vector.broadcast %90 : vector<1x1x16xf32> to vector<16x16x16xf32>
    %92 = arith.addf %87, %91 : vector<16x16x16xf32>
    %cst_27 = arith.constant 0.000000e+00 : f32
    %93 = vector.broadcast %cst_27 : f32 to vector<16x16x16xf32>
    %94 = arith.maximumf %92, %93 : vector<16x16x16xf32>
    %c0_28 = arith.constant 0 : index
    %c0_29 = arith.constant 0 : index
    %95 = vector.load %arg4[%c0_28, %c0_29] : memref<1x16xf32, #tpu.memory_space<vmem>>, vector<1x16xf32>
    %96 = vector.shape_cast %95 : vector<1x16xf32> to vector<16xf32>
    %97 = vector.shape_cast %96 : vector<16xf32> to vector<1x1x16xf32>
    %98 = vector.broadcast %97 : vector<1x1x16xf32> to vector<16x16x16xf32>
    %99 = arith.mulf %94, %98 : vector<16x16x16xf32>
    %c0_30 = arith.constant 0 : index
    %c0_31 = arith.constant 0 : index
    %100 = vector.load %arg5[%c0_30, %c0_31] : memref<1x16xf32, #tpu.memory_space<vmem>>, vector<1x16xf32>
    %101 = vector.shape_cast %100 : vector<1x16xf32> to vector<16xf32>
    %102 = vector.shape_cast %101 : vector<16xf32> to vector<1x1x16xf32>
    %103 = vector.broadcast %102 : vector<1x1x16xf32> to vector<16x16x16xf32>
    %104 = arith.addf %99, %103 : vector<16x16x16xf32>
    %105 = vector.shape_cast %104 : vector<16x16x16xf32> to vector<8x2x16x16xf32>
    %106 = vector.extract_strided_slice %105 {offsets = [0, 0, 0, 0], sizes = [8, 1, 16, 16], strides = [1, 1, 1, 1]} : vector<8x2x16x16xf32> to vector<8x1x16x16xf32>
    %107 = vector.shape_cast %106 : vector<8x1x16x16xf32> to vector<8x16x16xf32>
    %108 = vector.extract_strided_slice %105 {offsets = [0, 1, 0, 0], sizes = [8, 1, 16, 16], strides = [1, 1, 1, 1]} : vector<8x2x16x16xf32> to vector<8x1x16x16xf32>
    %109 = vector.shape_cast %108 : vector<8x1x16x16xf32> to vector<8x16x16xf32>
    %110 = arith.maximumf %107, %109 : vector<8x16x16xf32>
    %111 = vector.shape_cast %110 : vector<8x16x16xf32> to vector<8x8x2x16xf32>
    %112 = vector.extract_strided_slice %111 {offsets = [0, 0, 0, 0], sizes = [8, 8, 1, 16], strides = [1, 1, 1, 1]} : vector<8x8x2x16xf32> to vector<8x8x1x16xf32>
    %113 = vector.shape_cast %112 : vector<8x8x1x16xf32> to vector<8x8x16xf32>
    %114 = vector.extract_strided_slice %111 {offsets = [0, 0, 1, 0], sizes = [8, 8, 1, 16], strides = [1, 1, 1, 1]} : vector<8x8x2x16xf32> to vector<8x8x1x16xf32>
    %115 = vector.shape_cast %114 : vector<8x8x1x16xf32> to vector<8x8x16xf32>
    %116 = arith.maximumf %113, %115 : vector<8x8x16xf32>
    %cst_32 = arith.constant 0.000000e+00 : f32
    %117 = vector.broadcast %cst_32 : f32 to vector<10x10x16xf32>
    %c0_33 = arith.constant 0 : index
    %c0_34 = arith.constant 0 : index
    %c0_35 = arith.constant 0 : index
    %118 = vector.load %arg12[%c0_33, %c0_34, %c0_35] : memref<10x10x16xf32, #tpu.memory_space<vmem>>, vector<10x10x16xf32>
    tpu.vector_store %arg12[%c0_33, %c0_34, %c0_35], %117 {strides = array<i32>} : memref<10x10x16xf32, #tpu.memory_space<vmem>>, vector<10x10x16xf32>,
    %c1_36 = arith.constant 1 : index
    %c1_37 = arith.constant 1 : index
    %c0_38 = arith.constant 0 : index
    %119 = vector.load %arg12[%c1_36, %c1_37, %c0_38] : memref<10x10x16xf32, #tpu.memory_space<vmem>>, vector<8x8x16xf32>
    tpu.vector_store %arg12[%c1_36, %c1_37, %c0_38], %116 {strides = array<i32>} : memref<10x10x16xf32, #tpu.memory_space<vmem>>, vector<8x8x16xf32>,
    %cst_39 = arith.constant 0.000000e+00 : f32
    %120 = vector.broadcast %cst_39 : f32 to vector<64x32xf32>
    %c0_40 = arith.constant 0 : index
    %c0_41 = arith.constant 0 : index
    %c0_42 = arith.constant 0 : index
    %121 = vector.load %arg12[%c0_40, %c0_41, %c0_42] : memref<10x10x16xf32, #tpu.memory_space<vmem>>, vector<8x8x16xf32>
    %122 = vector.shape_cast %121 : vector<8x8x16xf32> to vector<64x16xf32>
    %c0_43 = arith.constant 0 : index
    %c0_44 = arith.constant 0 : index
    %c0_45 = arith.constant 0 : index
    %c0_46 = arith.constant 0 : index
    %123 = vector.load %arg6[%c0_43, %c0_44, %c0_45, %c0_46] : memref<3x3x16x32xf32, #tpu.memory_space<vmem>>, vector<1x1x16x32xf32>
    %124 = vector.shape_cast %123 : vector<1x1x16x32xf32> to vector<16x32xf32>
    %cst_47 = arith.constant dense<0.000000e+00> : vector<64x32xf32>
    %125 = tpu.matmul %122, %124, %cst_47 {dimension_numbers = #tpu.dot_dimension_numbers<[1], [0], [0], [1], [0, 0, 1, 1], [], []>} : vector<64x16xf32>, vector<16x32xf32>, vector<64x32xf32> -> vector<64x32xf32>
    %126 = arith.addf %120, %125 : vector<64x32xf32>
    %c0_48 = arith.constant 0 : index
    %c1_49 = arith.constant 1 : index
    %c0_50 = arith.constant 0 : index
    %127 = vector.load %arg12[%c0_48, %c1_49, %c0_50] : memref<10x10x16xf32, #tpu.memory_space<vmem>>, vector<8x8x16xf32>
    %128 = vector.shape_cast %127 : vector<8x8x16xf32> to vector<64x16xf32>
    %c0_51 = arith.constant 0 : index
    %c1_52 = arith.constant 1 : index
    %c0_53 = arith.constant 0 : index
    %c0_54 = arith.constant 0 : index
    %129 = vector.load %arg6[%c0_51, %c1_52, %c0_53, %c0_54] : memref<3x3x16x32xf32, #tpu.memory_space<vmem>>, vector<1x1x16x32xf32>
    %130 = vector.shape_cast %129 : vector<1x1x16x32xf32> to vector<16x32xf32>
    %cst_55 = arith.constant dense<0.000000e+00> : vector<64x32xf32>
    %131 = tpu.matmul %128, %130, %cst_55 {dimension_numbers = #tpu.dot_dimension_numbers<[1], [0], [0], [1], [0, 0, 1, 1], [], []>} : vector<64x16xf32>, vector<16x32xf32>, vector<64x32xf32> -> vector<64x32xf32>
    %132 = arith.addf %126, %131 : vector<64x32xf32>
    %c0_56 = arith.constant 0 : index
    %c2_57 = arith.constant 2 : index
    %c0_58 = arith.constant 0 : index
    %133 = vector.load %arg12[%c0_56, %c2_57, %c0_58] : memref<10x10x16xf32, #tpu.memory_space<vmem>>, vector<8x8x16xf32>
    %134 = vector.shape_cast %133 : vector<8x8x16xf32> to vector<64x16xf32>
    %c0_59 = arith.constant 0 : index
    %c2_60 = arith.constant 2 : index
    %c0_61 = arith.constant 0 : index
    %c0_62 = arith.constant 0 : index
    %135 = vector.load %arg6[%c0_59, %c2_60, %c0_61, %c0_62] : memref<3x3x16x32xf32, #tpu.memory_space<vmem>>, vector<1x1x16x32xf32>
    %136 = vector.shape_cast %135 : vector<1x1x16x32xf32> to vector<16x32xf32>
    %cst_63 = arith.constant dense<0.000000e+00> : vector<64x32xf32>
    %137 = tpu.matmul %134, %136, %cst_63 {dimension_numbers = #tpu.dot_dimension_numbers<[1], [0], [0], [1], [0, 0, 1, 1], [], []>} : vector<64x16xf32>, vector<16x32xf32>, vector<64x32xf32> -> vector<64x32xf32>
    %138 = arith.addf %132, %137 : vector<64x32xf32>
    %c1_64 = arith.constant 1 : index
    %c0_65 = arith.constant 0 : index
    %c0_66 = arith.constant 0 : index
    %139 = vector.load %arg12[%c1_64, %c0_65, %c0_66] : memref<10x10x16xf32, #tpu.memory_space<vmem>>, vector<8x8x16xf32>
    %140 = vector.shape_cast %139 : vector<8x8x16xf32> to vector<64x16xf32>
    %c1_67 = arith.constant 1 : index
    %c0_68 = arith.constant 0 : index
    %c0_69 = arith.constant 0 : index
    %c0_70 = arith.constant 0 : index
    %141 = vector.load %arg6[%c1_67, %c0_68, %c0_69, %c0_70] : memref<3x3x16x32xf32, #tpu.memory_space<vmem>>, vector<1x1x16x32xf32>
    %142 = vector.shape_cast %141 : vector<1x1x16x32xf32> to vector<16x32xf32>
    %cst_71 = arith.constant dense<0.000000e+00> : vector<64x32xf32>
    %143 = tpu.matmul %140, %142, %cst_71 {dimension_numbers = #tpu.dot_dimension_numbers<[1], [0], [0], [1], [0, 0, 1, 1], [], []>} : vector<64x16xf32>, vector<16x32xf32>, vector<64x32xf32> -> vector<64x32xf32>
    %144 = arith.addf %138, %143 : vector<64x32xf32>
    %c1_72 = arith.constant 1 : index
    %c1_73 = arith.constant 1 : index
    %c0_74 = arith.constant 0 : index
    %145 = vector.load %arg12[%c1_72, %c1_73, %c0_74] : memref<10x10x16xf32, #tpu.memory_space<vmem>>, vector<8x8x16xf32>
    %146 = vector.shape_cast %145 : vector<8x8x16xf32> to vector<64x16xf32>
    %c1_75 = arith.constant 1 : index
    %c1_76 = arith.constant 1 : index
    %c0_77 = arith.constant 0 : index
    %c0_78 = arith.constant 0 : index
    %147 = vector.load %arg6[%c1_75, %c1_76, %c0_77, %c0_78] : memref<3x3x16x32xf32, #tpu.memory_space<vmem>>, vector<1x1x16x32xf32>
    %148 = vector.shape_cast %147 : vector<1x1x16x32xf32> to vector<16x32xf32>
    %cst_79 = arith.constant dense<0.000000e+00> : vector<64x32xf32>
    %149 = tpu.matmul %146, %148, %cst_79 {dimension_numbers = #tpu.dot_dimension_numbers<[1], [0], [0], [1], [0, 0, 1, 1], [], []>} : vector<64x16xf32>, vector<16x32xf32>, vector<64x32xf32> -> vector<64x32xf32>
    %150 = arith.addf %144, %149 : vector<64x32xf32>
    %c1_80 = arith.constant 1 : index
    %c2_81 = arith.constant 2 : index
    %c0_82 = arith.constant 0 : index
    %151 = vector.load %arg12[%c1_80, %c2_81, %c0_82] : memref<10x10x16xf32, #tpu.memory_space<vmem>>, vector<8x8x16xf32>
    %152 = vector.shape_cast %151 : vector<8x8x16xf32> to vector<64x16xf32>
    %c1_83 = arith.constant 1 : index
    %c2_84 = arith.constant 2 : index
    %c0_85 = arith.constant 0 : index
    %c0_86 = arith.constant 0 : index
    %153 = vector.load %arg6[%c1_83, %c2_84, %c0_85, %c0_86] : memref<3x3x16x32xf32, #tpu.memory_space<vmem>>, vector<1x1x16x32xf32>
    %154 = vector.shape_cast %153 : vector<1x1x16x32xf32> to vector<16x32xf32>
    %cst_87 = arith.constant dense<0.000000e+00> : vector<64x32xf32>
    %155 = tpu.matmul %152, %154, %cst_87 {dimension_numbers = #tpu.dot_dimension_numbers<[1], [0], [0], [1], [0, 0, 1, 1], [], []>} : vector<64x16xf32>, vector<16x32xf32>, vector<64x32xf32> -> vector<64x32xf32>
    %156 = arith.addf %150, %155 : vector<64x32xf32>
    %c2_88 = arith.constant 2 : index
    %c0_89 = arith.constant 0 : index
    %c0_90 = arith.constant 0 : index
    %157 = vector.load %arg12[%c2_88, %c0_89, %c0_90] : memref<10x10x16xf32, #tpu.memory_space<vmem>>, vector<8x8x16xf32>
    %158 = vector.shape_cast %157 : vector<8x8x16xf32> to vector<64x16xf32>
    %c2_91 = arith.constant 2 : index
    %c0_92 = arith.constant 0 : index
    %c0_93 = arith.constant 0 : index
    %c0_94 = arith.constant 0 : index
    %159 = vector.load %arg6[%c2_91, %c0_92, %c0_93, %c0_94] : memref<3x3x16x32xf32, #tpu.memory_space<vmem>>, vector<1x1x16x32xf32>
    %160 = vector.shape_cast %159 : vector<1x1x16x32xf32> to vector<16x32xf32>
    %cst_95 = arith.constant dense<0.000000e+00> : vector<64x32xf32>
    %161 = tpu.matmul %158, %160, %cst_95 {dimension_numbers = #tpu.dot_dimension_numbers<[1], [0], [0], [1], [0, 0, 1, 1], [], []>} : vector<64x16xf32>, vector<16x32xf32>, vector<64x32xf32> -> vector<64x32xf32>
    %162 = arith.addf %156, %161 : vector<64x32xf32>
    %c2_96 = arith.constant 2 : index
    %c1_97 = arith.constant 1 : index
    %c0_98 = arith.constant 0 : index
    %163 = vector.load %arg12[%c2_96, %c1_97, %c0_98] : memref<10x10x16xf32, #tpu.memory_space<vmem>>, vector<8x8x16xf32>
    %164 = vector.shape_cast %163 : vector<8x8x16xf32> to vector<64x16xf32>
    %c2_99 = arith.constant 2 : index
    %c1_100 = arith.constant 1 : index
    %c0_101 = arith.constant 0 : index
    %c0_102 = arith.constant 0 : index
    %165 = vector.load %arg6[%c2_99, %c1_100, %c0_101, %c0_102] : memref<3x3x16x32xf32, #tpu.memory_space<vmem>>, vector<1x1x16x32xf32>
    %166 = vector.shape_cast %165 : vector<1x1x16x32xf32> to vector<16x32xf32>
    %cst_103 = arith.constant dense<0.000000e+00> : vector<64x32xf32>
    %167 = tpu.matmul %164, %166, %cst_103 {dimension_numbers = #tpu.dot_dimension_numbers<[1], [0], [0], [1], [0, 0, 1, 1], [], []>} : vector<64x16xf32>, vector<16x32xf32>, vector<64x32xf32> -> vector<64x32xf32>
    %168 = arith.addf %162, %167 : vector<64x32xf32>
    %c2_104 = arith.constant 2 : index
    %c2_105 = arith.constant 2 : index
    %c0_106 = arith.constant 0 : index
    %169 = vector.load %arg12[%c2_104, %c2_105, %c0_106] : memref<10x10x16xf32, #tpu.memory_space<vmem>>, vector<8x8x16xf32>
    %170 = vector.shape_cast %169 : vector<8x8x16xf32> to vector<64x16xf32>
    %c2_107 = arith.constant 2 : index
    %c2_108 = arith.constant 2 : index
    %c0_109 = arith.constant 0 : index
    %c0_110 = arith.constant 0 : index
    %171 = vector.load %arg6[%c2_107, %c2_108, %c0_109, %c0_110] : memref<3x3x16x32xf32, #tpu.memory_space<vmem>>, vector<1x1x16x32xf32>
    %172 = vector.shape_cast %171 : vector<1x1x16x32xf32> to vector<16x32xf32>
    %cst_111 = arith.constant dense<0.000000e+00> : vector<64x32xf32>
    %173 = tpu.matmul %170, %172, %cst_111 {dimension_numbers = #tpu.dot_dimension_numbers<[1], [0], [0], [1], [0, 0, 1, 1], [], []>} : vector<64x16xf32>, vector<16x32xf32>, vector<64x32xf32> -> vector<64x32xf32>
    %174 = arith.addf %168, %173 : vector<64x32xf32>
    %c0_112 = arith.constant 0 : index
    %c0_113 = arith.constant 0 : index
    %175 = vector.load %arg7[%c0_112, %c0_113] : memref<1x32xf32, #tpu.memory_space<vmem>>, vector<1x32xf32>
    %176 = vector.shape_cast %175 : vector<1x32xf32> to vector<32xf32>
    %177 = vector.shape_cast %176 : vector<32xf32> to vector<1x32xf32>
    %178 = vector.broadcast %177 : vector<1x32xf32> to vector<64x32xf32>
    %179 = arith.addf %174, %178 : vector<64x32xf32>
    %cst_114 = arith.constant 0.000000e+00 : f32
    %180 = vector.broadcast %cst_114 : f32 to vector<64x32xf32>
    %181 = arith.maximumf %179, %180 : vector<64x32xf32>
    %c0_115 = arith.constant 0 : index
    %c0_116 = arith.constant 0 : index
    %182 = vector.load %arg8[%c0_115, %c0_116] : memref<1x32xf32, #tpu.memory_space<vmem>>, vector<1x32xf32>
    %183 = vector.shape_cast %182 : vector<1x32xf32> to vector<32xf32>
    %184 = vector.shape_cast %183 : vector<32xf32> to vector<1x32xf32>
    %185 = vector.broadcast %184 : vector<1x32xf32> to vector<64x32xf32>
    %186 = arith.mulf %181, %185 : vector<64x32xf32>
    %c0_117 = arith.constant 0 : index
    %c0_118 = arith.constant 0 : index
    %187 = vector.load %arg9[%c0_117, %c0_118] : memref<1x32xf32, #tpu.memory_space<vmem>>, vector<1x32xf32>
    %188 = vector.shape_cast %187 : vector<1x32xf32> to vector<32xf32>
    %189 = vector.shape_cast %188 : vector<32xf32> to vector<1x32xf32>
    %190 = vector.broadcast %189 : vector<1x32xf32> to vector<64x32xf32>
    %191 = arith.addf %186, %190 : vector<64x32xf32>
    %192 = vector.shape_cast %191 : vector<64x32xf32> to vector<8x8x32xf32>
    %193 = vector.shape_cast %192 : vector<8x8x32xf32> to vector<4x2x8x32xf32>
    %194 = vector.extract_strided_slice %193 {offsets = [0, 0, 0, 0], sizes = [4, 1, 8, 32], strides = [1, 1, 1, 1]} : vector<4x2x8x32xf32> to vector<4x1x8x32xf32>
    %195 = vector.shape_cast %194 : vector<4x1x8x32xf32> to vector<4x8x32xf32>
    %196 = vector.extract_strided_slice %193 {offsets = [0, 1, 0, 0], sizes = [4, 1, 8, 32], strides = [1, 1, 1, 1]} : vector<4x2x8x32xf32> to vector<4x1x8x32xf32>
    %197 = vector.shape_cast %196 : vector<4x1x8x32xf32> to vector<4x8x32xf32>
    %198 = arith.maximumf %195, %197 : vector<4x8x32xf32>
    %199 = vector.shape_cast %198 : vector<4x8x32xf32> to vector<4x4x2x32xf32>
    %200 = vector.extract_strided_slice %199 {offsets = [0, 0, 0, 0], sizes = [4, 4, 1, 32], strides = [1, 1, 1, 1]} : vector<4x4x2x32xf32> to vector<4x4x1x32xf32>
    %201 = vector.shape_cast %200 : vector<4x4x1x32xf32> to vector<4x4x32xf32>
    %202 = vector.extract_strided_slice %199 {offsets = [0, 0, 1, 0], sizes = [4, 4, 1, 32], strides = [1, 1, 1, 1]} : vector<4x4x2x32xf32> to vector<4x4x1x32xf32>
    %203 = vector.shape_cast %202 : vector<4x4x1x32xf32> to vector<4x4x32xf32>
    %204 = arith.maximumf %201, %203 : vector<4x4x32xf32>
    %205 = tpu.transpose %204, [1, 0, 2] : vector<4x4x32xf32> -> vector<4x4x32xf32>
    %206 = tpu.transpose %205, [0, 2, 1] : vector<4x4x32xf32> -> vector<4x32x4xf32>
    %207 = vector.shape_cast %206 : vector<4x32x4xf32> to vector<4x128xf32>
    %c0_119 = arith.constant 0 : index
    %c0_120 = arith.constant 0 : index
    %c0_121 = arith.constant 0 : index
    %208 = vector.load %arg10[%c0_119, %c0_120, %c0_121] : memref<1x4x128xf32, #tpu.memory_space<vmem>>, vector<1x4x128xf32>
    %209 = vector.shape_cast %208 : vector<1x4x128xf32> to vector<4x128xf32>
    %210 = vector.shape_cast %207 : vector<4x128xf32> to vector<1x4x128xf32>
    tpu.vector_store %arg10[%c0_119, %c0_120, %c0_121], %210 {strides = array<i32>} : memref<1x4x128xf32, #tpu.memory_space<vmem>>, vector<1x4x128xf32>,
    return
  }
  func.func @transform_0(%arg0: i32) -> (i32, i32, i32) {
    %c0_i32 = arith.constant 0 : i32
    %c0_i32_0 = arith.constant 0 : i32
    %c0_i32_1 = arith.constant 0 : i32
    return %arg0, %c0_i32, %c0_i32_0 : i32, i32, i32
  }
  func.func @transform_1(%arg0: i32) -> (i32, i32) {
    %c0_i32 = arith.constant 0 : i32
    %c0_i32_0 = arith.constant 0 : i32
    %c0_i32_1 = arith.constant 0 : i32
    return %c0_i32, %c0_i32_0 : i32, i32
  }
  func.func @transform_2(%arg0: i32) -> (i32, i32) {
    %c0_i32 = arith.constant 0 : i32
    %c0_i32_0 = arith.constant 0 : i32
    %c0_i32_1 = arith.constant 0 : i32
    return %c0_i32, %c0_i32_0 : i32, i32
  }
  func.func @transform_3(%arg0: i32) -> (i32, i32) {
    %c0_i32 = arith.constant 0 : i32
    %c0_i32_0 = arith.constant 0 : i32
    %c0_i32_1 = arith.constant 0 : i32
    return %c0_i32, %c0_i32_0 : i32, i32
  }
  func.func @transform_4(%arg0: i32) -> (i32, i32) {
    %c0_i32 = arith.constant 0 : i32
    %c0_i32_0 = arith.constant 0 : i32
    %c0_i32_1 = arith.constant 0 : i32
    return %c0_i32, %c0_i32_0 : i32, i32
  }
  func.func @transform_5(%arg0: i32) -> (i32, i32, i32, i32) {
    %c0_i32 = arith.constant 0 : i32
    %c0_i32_0 = arith.constant 0 : i32
    %c0_i32_1 = arith.constant 0 : i32
    %c0_i32_2 = arith.constant 0 : i32
    %c0_i32_3 = arith.constant 0 : i32
    return %c0_i32, %c0_i32_0, %c0_i32_1, %c0_i32_2 : i32, i32, i32, i32
  }
  func.func @transform_6(%arg0: i32) -> (i32, i32) {
    %c0_i32 = arith.constant 0 : i32
    %c0_i32_0 = arith.constant 0 : i32
    %c0_i32_1 = arith.constant 0 : i32
    return %c0_i32, %c0_i32_0 : i32, i32
  }
  func.func @transform_7(%arg0: i32) -> (i32, i32) {
    %c0_i32 = arith.constant 0 : i32
    %c0_i32_0 = arith.constant 0 : i32
    %c0_i32_1 = arith.constant 0 : i32
    return %c0_i32, %c0_i32_0 : i32, i32
  }
  func.func @transform_8(%arg0: i32) -> (i32, i32) {
    %c0_i32 = arith.constant 0 : i32
    %c0_i32_0 = arith.constant 0 : i32
    %c0_i32_1 = arith.constant 0 : i32
    return %c0_i32, %c0_i32_0 : i32, i32
  }
  func.func @transform_9(%arg0: i32) -> (i32, i32, i32) {
    %c0_i32 = arith.constant 0 : i32
    %c0_i32_0 = arith.constant 0 : i32
    %c0_i32_1 = arith.constant 0 : i32
    return %arg0, %c0_i32, %c0_i32_0 : i32, i32, i32
  }
}

</mosaic_0001>

<llo_original>
// kernel: tpu_custom_call.1
$region0: #{tpu_custom_call.1}
  #allocation0 [shape = 'u32[]', space=smem, size = 0x4, offset = 0x4, fixed_abs, tag = 'smem constant byte address 0x4 - core index']
  #allocation1 [shape = 'u32[144,128]{1,0:T(1,128)}', space=vmem, size = 0x12000, scoped, tag = 'internal scratch']
  #allocation2 [shape = 'f32[18,18]{1,0:T(8,128)}', space=vmem, size = 0x3000, scoped, tag = 'scratch operand']
  #allocation3 [shape = 'f32[10,10,16]{2,1,0:T(8,128)}', space=vmem, size = 0x14000, scoped, tag = 'scratch operand']
  %s0 = inlined_call_operand.hbm [shape: f32[2,16,16], index: 0, kind: input, shape index: {}]
  %s1 = inlined_call_operand.hbm [shape: f32[9,16], index: 1, kind: input, shape index: {}]
  %s2 = inlined_call_operand.vmem [shape: f32[1,16], index: 2, kind: input, shape index: {}]
  %s3 = inlined_call_operand.vmem [shape: f32[1,16], index: 3, kind: input, shape index: {}]
  %s4 = inlined_call_operand.vmem [shape: f32[1,16], index: 4, kind: input, shape index: {}]
  %s5 = inlined_call_operand.hbm [shape: f32[3,3,16,32], index: 5, kind: input, shape index: {}]
  %s6 = inlined_call_operand.vmem [shape: f32[1,32], index: 6, kind: input, shape index: {}]
  %s7 = inlined_call_operand.vmem [shape: f32[1,32], index: 7, kind: input, shape index: {}]
  %s8 = inlined_call_operand.vmem [shape: f32[1,32], index: 8, kind: input, shape index: {}]
  %s9 = inlined_call_operand.hbm [shape: f32[2,4,128], index: 9, kind: output, shape index: {}]
  %s10 = sld [smem:[#allocation0]]
  $region81: #{tpu_custom_call.1} parent=0
    _
  %s12 = ssub.s32 1, %s10
  %s13 = scalar_select 0, %s12, %s10
  $region1: #{tpu_custom_call.1} parent=0
    #allocation4 [shape = 'u8[16384]{0}', space=vmem, size = 0x4000, scoped, tag = 'input window, operand 0']
    #allocation5 [shape = 's32[2]{0}', space=sflag, size = 0x8, scoped, tag = 'scoped memory for tpu_custom_call.1']
    #allocation6 [shape = 's32[2]{0}', space=sflag, size = 0x8, scoped, tag = 'scoped memory for tpu_custom_call.1']
    #allocation7 [shape = 'u8[8192]{0}', space=vmem, size = 0x2000, scoped, tag = 'input window, operand 1, single buffered']
    #allocation8 [shape = 's32[1]{0}', space=sflag, size = 0x4, scoped, tag = 'scoped memory for tpu_custom_call.1']
    #allocation9 [shape = 'u8[73728]{0}', space=vmem, size = 0x12000, scoped, tag = 'input window, operand 5, single buffered']
    #allocation10 [shape = 'u8[4096]{0}', space=vmem, size = 0x1000, scoped, tag = 'output window, operand 0']
    %14 = vsyncpa [#allocation5], 0
    %s15 = scalar_lea.sflag [#allocation5], 1
    %16 = vsyncpa %s15, 0
    %17 = vsyncpa [#allocation8], 0
    %18 = vsyncpa [#allocation6], 0
    %s19 = scalar_lea.sflag [#allocation6], 1
    %20 = vsyncpa %s19, 0
    loop: start=0, step=1, limit=4
    $region2: #{tpu_custom_call.1} parent=1 // loop_pre_header
      _
    $region3: #{tpu_custom_call.1} parent=1 // loop_header
      %s22 = sphi 0, %s26
      %p23 = scmp.ge.s32.totalorder %s22, 4
      %s32 = sphi 0, %s34
      %s35 = sphi 0, %s32
      %s36 = sphi 0, %s35
      %s52 = sphi 0, %s36
      %s56 = sphi 0, %s56
      %s58 = sphi 0, %s56
      %s59 = sphi 0, %s58
      %s73 = sphi 0, %s59
      %s77 = sphi 0, %s77
      %s79 = sphi 0, %s77
      %s80 = sphi 0, %s79
      %s94 = sphi 0, %s80
      %s98 = sphi 0, %s98
      %s100 = sphi 0, %s98
      %s101 = sphi 0, %s100
      %s115 = sphi 0, %s101
      %s119 = sphi 0, %s119
      %s121 = sphi 0, %s119
      %s122 = sphi 0, %s121
      %s136 = sphi 0, %s122
      %s140 = sphi 0, %s140
      %s142 = sphi 0, %s140
      %s143 = sphi 0, %s142
      %s157 = sphi 0, %s143
      %s161 = sphi 0, %s161
      %s163 = sphi 0, %s161
      %s164 = sphi 0, %s163
      %s178 = sphi 0, %s164
      %s182 = sphi 0, %s182
      %s184 = sphi 0, %s182
      %s185 = sphi 0, %s184
      %s199 = sphi 0, %s185
      %s203 = sphi 0, %s203
      %s205 = sphi 0, %s203
      %s206 = sphi 0, %s205
      %s220 = sphi 0, %s206
      %s226 = sphi 0, %s228
      %s229 = sphi 0, %s226
      %s230 = sphi 0, %s229
      %s246 = sphi 0, %s230
    $region4: #{tpu_custom_call.1} parent=1 // loop_header_branch
      %25 = sbr.rel (%p23) target = $region8
    $region5: #{tpu_custom_call.1} parent=1 // loop_body
      %s27 = ssub.s32 %s22, 1
      %s28 = ssub.s32 %s22, 2
      %s29 = sadd.s32 %s22, 1
      %s30 = ssub.s32 %s22, %s29
      %p31 = scmp.eq.s32.totalorder %s30, 0
      %s33 = sadd.s32 %s32, 1
      %s34 = scalar_select %p31, %s32, %s33
      %p37 = pneg %p31
      %p38 = scmp.eq.s32.totalorder %s22, 1
      %p39 = por %p37, %p38
      %p40 = scmp.ne.s32.totalorder %s32, %s35
      %p41 = scmp.eq.s32.totalorder %s22, 0
      %p42 = por %p40, %p41
      %p43 = scmp.ne.s32.totalorder %s32, %s35
      %p44 = scmp.eq.s32.totalorder %s27, 1
      %p45 = por %p43, %p44
      %p46 = scmp.ne.s32.totalorder %s35, %s36
      %p47 = scmp.eq.s32.totalorder %s27, 0
      %p48 = por %p46, %p47
      %p49 = scmp.ne.s32.totalorder %s35, %s36
      %p50 = scmp.eq.s32.totalorder %s28, 1
      %p51 = por %p49, %p50
      %p53 = scmp.ne.s32.totalorder %s36, %s52
      %p54 = scmp.eq.s32.totalorder %s28, 0
      %p55 = por %p53, %p54
      %s57 = sadd.s32 %s56, 1
      %p60 = scmp.eq.s32.totalorder %s22, 1
      %p61 = scmp.ne.s32.totalorder %s56, %s58
      %p62 = scmp.eq.s32.totalorder %s22, 0
      %p63 = por %p61, %p62
      %p64 = scmp.ne.s32.totalorder %s56, %s58
      %p65 = scmp.eq.s32.totalorder %s27, 1
      %p66 = por %p64, %p65
      %p67 = scmp.ne.s32.totalorder %s58, %s59
      %p68 = scmp.eq.s32.totalorder %s27, 0
      %p69 = por %p67, %p68
      %p70 = scmp.ne.s32.totalorder %s58, %s59
      %p71 = scmp.eq.s32.totalorder %s28, 1
      %p72 = por %p70, %p71
      %p74 = scmp.ne.s32.totalorder %s59, %s73
      %p75 = scmp.eq.s32.totalorder %s28, 0
      %p76 = por %p74, %p75
      %s78 = sadd.s32 %s77, 1
      %p81 = scmp.eq.s32.totalorder %s22, 1
      %p82 = scmp.ne.s32.totalorder %s77, %s79
      %p83 = scmp.eq.s32.totalorder %s22, 0
      %p84 = por %p82, %p83
      %p85 = scmp.ne.s32.totalorder %s77, %s79
      %p86 = scmp.eq.s32.totalorder %s27, 1
      %p87 = por %p85, %p86
      %p88 = scmp.ne.s32.totalorder %s79, %s80
      %p89 = scmp.eq.s32.totalorder %s27, 0
      %p90 = por %p88, %p89
      %p91 = scmp.ne.s32.totalorder %s79, %s80
      %p92 = scmp.eq.s32.totalorder %s28, 1
      %p93 = por %p91, %p92
      %p95 = scmp.ne.s32.totalorder %s80, %s94
      %p96 = scmp.eq.s32.totalorder %s28, 0
      %p97 = por %p95, %p96
      %s99 = sadd.s32 %s98, 1
      %p102 = scmp.eq.s32.totalorder %s22, 1
      %p103 = scmp.ne.s32.totalorder %s98, %s100
      %p104 = scmp.eq.s32.totalorder %s22, 0
      %p105 = por %p103, %p104
      %p106 = scmp.ne.s32.totalorder %s98, %s100
      %p107 = scmp.eq.s32.totalorder %s27, 1
      %p108 = por %p106, %p107
      %p109 = scmp.ne.s32.totalorder %s100, %s101
      %p110 = scmp.eq.s32.totalorder %s27, 0
      %p111 = por %p109, %p110
      %p112 = scmp.ne.s32.totalorder %s100, %s101
      %p113 = scmp.eq.s32.totalorder %s28, 1
      %p114 = por %p112, %p113
      %p116 = scmp.ne.s32.totalorder %s101, %s115
      %p117 = scmp.eq.s32.totalorder %s28, 0
      %p118 = por %p116, %p117
      %s120 = sadd.s32 %s119, 1
      %p123 = scmp.eq.s32.totalorder %s22, 1
      %p124 = scmp.ne.s32.totalorder %s119, %s121
      %p125 = scmp.eq.s32.totalorder %s22, 0
      %p126 = por %p124, %p125
      %p127 = scmp.ne.s32.totalorder %s119, %s121
      %p128 = scmp.eq.s32.totalorder %s27, 1
      %p129 = por %p127, %p128
      %p130 = scmp.ne.s32.totalorder %s121, %s122
      %p131 = scmp.eq.s32.totalorder %s27, 0
      %p132 = por %p130, %p131
      %p133 = scmp.ne.s32.totalorder %s121, %s122
      %p134 = scmp.eq.s32.totalorder %s28, 1
      %p135 = por %p133, %p134
      %p137 = scmp.ne.s32.totalorder %s122, %s136
      %p138 = scmp.eq.s32.totalorder %s28, 0
      %p139 = por %p137, %p138
      %s141 = sadd.s32 %s140, 1
      %p144 = scmp.eq.s32.totalorder %s22, 1
      %p145 = scmp.ne.s32.totalorder %s140, %s142
      %p146 = scmp.eq.s32.totalorder %s22, 0
      %p147 = por %p145, %p146
      %p148 = scmp.ne.s32.totalorder %s140, %s142
      %p149 = scmp.eq.s32.totalorder %s27, 1
      %p150 = por %p148, %p149
      %p151 = scmp.ne.s32.totalorder %s142, %s143
      %p152 = scmp.eq.s32.totalorder %s27, 0
      %p153 = por %p151, %p152
      %p154 = scmp.ne.s32.totalorder %s142, %s143
      %p155 = scmp.eq.s32.totalorder %s28, 1
      %p156 = por %p154, %p155
      %p158 = scmp.ne.s32.totalorder %s143, %s157
      %p159 = scmp.eq.s32.totalorder %s28, 0
      %p160 = por %p158, %p159
      %s162 = sadd.s32 %s161, 1
      %p165 = scmp.eq.s32.totalorder %s22, 1
      %p166 = scmp.ne.s32.totalorder %s161, %s163
      %p167 = scmp.eq.s32.totalorder %s22, 0
      %p168 = por %p166, %p167
      %p169 = scmp.ne.s32.totalorder %s161, %s163
      %p170 = scmp.eq.s32.totalorder %s27, 1
      %p171 = por %p169, %p170
      %p172 = scmp.ne.s32.totalorder %s163, %s164
      %p173 = scmp.eq.s32.totalorder %s27, 0
      %p174 = por %p172, %p173
      %p175 = scmp.ne.s32.totalorder %s163, %s164
      %p176 = scmp.eq.s32.totalorder %s28, 1
      %p177 = por %p175, %p176
      %p179 = scmp.ne.s32.totalorder %s164, %s178
      %p180 = scmp.eq.s32.totalorder %s28, 0
      %p181 = por %p179, %p180
      %s183 = sadd.s32 %s182, 1
      %p186 = scmp.eq.s32.totalorder %s22, 1
      %p187 = scmp.ne.s32.totalorder %s182, %s184
      %p188 = scmp.eq.s32.totalorder %s22, 0
      %p189 = por %p187, %p188
      %p190 = scmp.ne.s32.totalorder %s182, %s184
      %p191 = scmp.eq.s32.totalorder %s27, 1
      %p192 = por %p190, %p191
      %p193 = scmp.ne.s32.totalorder %s184, %s185
      %p194 = scmp.eq.s32.totalorder %s27, 0
      %p195 = por %p193, %p194
      %p196 = scmp.ne.s32.totalorder %s184, %s185
      %p197 = scmp.eq.s32.totalorder %s28, 1
      %p198 = por %p196, %p197
      %p200 = scmp.ne.s32.totalorder %s185, %s199
      %p201 = scmp.eq.s32.totalorder %s28, 0
      %p202 = por %p200, %p201
      %s204 = sadd.s32 %s203, 1
      %p207 = scmp.eq.s32.totalorder %s22, 1
      %p208 = scmp.ne.s32.totalorder %s203, %s205
      %p209 = scmp.eq.s32.totalorder %s22, 0
      %p210 = por %p208, %p209
      %p211 = scmp.ne.s32.totalorder %s203, %s205
      %p212 = scmp.eq.s32.totalorder %s27, 1
      %p213 = por %p211, %p212
      %p214 = scmp.ne.s32.totalorder %s205, %s206
      %p215 = scmp.eq.s32.totalorder %s27, 0
      %p216 = por %p214, %p215
      %p217 = scmp.ne.s32.totalorder %s205, %s206
      %p218 = scmp.eq.s32.totalorder %s28, 1
      %p219 = por %p217, %p218
      %p221 = scmp.ne.s32.totalorder %s206, %s220
      %p222 = scmp.eq.s32.totalorder %s28, 0
      %p223 = por %p221, %p222
      %s224 = ssub.s32 %s22, %s29
      %p225 = scmp.eq.s32.totalorder %s224, 0
      %s227 = sadd.s32 %s226, 1
      %s228 = scalar_select %p225, %s226, %s227
      %p231 = pneg %p225
      %p232 = scmp.eq.s32.totalorder %s22, 1
      %p233 = por %p231, %p232
      %p234 = scmp.ne.s32.totalorder %s226, %s229
      %p235 = scmp.eq.s32.totalorder %s22, 0
      %p236 = por %p234, %p235
      %p237 = scmp.ne.s32.totalorder %s226, %s229
      %p238 = scmp.eq.s32.totalorder %s27, 1
      %p239 = por %p237, %p238
      %p240 = scmp.ne.s32.totalorder %s229, %s230
      %p241 = scmp.eq.s32.totalorder %s27, 0
      %p242 = por %p240, %p241
      %p243 = scmp.ne.s32.totalorder %s229, %s230
      %p244 = scmp.eq.s32.totalorder %s28, 1
      %p245 = por %p243, %p244
      %p247 = scmp.ne.s32.totalorder %s230, %s246
      %p248 = scmp.eq.s32.totalorder %s28, 0
      %p249 = por %p247, %p248
      %p250 = scmp.le.s32.totalorder 1, %s22
      %p251 = scmp.lt.s32.totalorder %s22, 3
      %p252 = pnand %p250, %p251
      %p253 = pneg %p252
      // Predicated region
      $region9: #{tpu_custom_call.1} parent=5 // pred_check
        _
      $region10: #{tpu_custom_call.1} parent=5 // pred_check_branch
        %255 = sbr.rel (%p252) target = $region12
      $region11: #{tpu_custom_call.1} parent=5 // pred_region
        %s256 = ssub.s32 %s22, 1
        // Predicated region
        $region13: #{tpu_custom_call.1} parent=11 // pred_check
          %p257 = pneg %p69
        $region14: #{tpu_custom_call.1} parent=11 // pred_check_branch
          %259 = sbr.rel (%p257) target = $region16
        $region15: #{tpu_custom_call.1} parent=11 // pred_region
          %s261 = ssub.s32 256, 256
          %262 = vsyncadd [#allocation8], %s261
          %s263 = sshll.u32 [#allocation7], 4
          %s264 = int_to_ptr.vmem [resolvable:$true] %s263
          %269 = dma.hbm_to_vmem [thread:$0]  %s1, 256, %s264, [#allocation8], 128, 128, 8
        $region16: #{tpu_custom_call.1} parent=11 // pred_fallthru
          _
        // Predicated region
        $region17: #{tpu_custom_call.1} parent=11 // pred_check
          %p270 = pneg %p90
        $region18: #{tpu_custom_call.1} parent=11 // pred_check_branch
          %272 = sbr.rel (%p270) target = $region20
        $region19: #{tpu_custom_call.1} parent=11 // pred_region
          _
        $region20: #{tpu_custom_call.1} parent=11 // pred_fallthru
          _
        // Predicated region
        $region21: #{tpu_custom_call.1} parent=11 // pred_check
          %p273 = pneg %p111
        $region22: #{tpu_custom_call.1} parent=11 // pred_check_branch
          %275 = sbr.rel (%p273) target = $region24
        $region23: #{tpu_custom_call.1} parent=11 // pred_region
          _
        $region24: #{tpu_custom_call.1} parent=11 // pred_fallthru
          _
        // Predicated region
        $region25: #{tpu_custom_call.1} parent=11 // pred_check
          %p276 = pneg %p132
        $region26: #{tpu_custom_call.1} parent=11 // pred_check_branch
          %278 = sbr.rel (%p276) target = $region28
        $region27: #{tpu_custom_call.1} parent=11 // pred_region
          _
        $region28: #{tpu_custom_call.1} parent=11 // pred_fallthru
          _
        // Predicated region
        $region29: #{tpu_custom_call.1} parent=11 // pred_check
          %p279 = pneg %p153
        $region30: #{tpu_custom_call.1} parent=11 // pred_check_branch
          %281 = sbr.rel (%p279) target = $region32
        $region31: #{tpu_custom_call.1} parent=11 // pred_region
          %s283 = ssub.s32 2304, 2304
          %284 = vsyncadd [#allocation8], %s283
          %s285 = sshll.u32 [#allocation9], 4
          %s286 = int_to_ptr.vmem [resolvable:$true] %s285
          %291 = dma.hbm_to_vmem [thread:$0]  %s5, 2304, %s286, [#allocation8], 128, 128, 8
        $region32: #{tpu_custom_call.1} parent=11 // pred_fallthru
          _
        // Predicated region
        $region33: #{tpu_custom_call.1} parent=11 // pred_check
          %p292 = pneg %p174
        $region34: #{tpu_custom_call.1} parent=11 // pred_check_branch
          %294 = sbr.rel (%p292) target = $region36
        $region35: #{tpu_custom_call.1} parent=11 // pred_region
          _
        $region36: #{tpu_custom_call.1} parent=11 // pred_fallthru
          _
        // Predicated region
        $region37: #{tpu_custom_call.1} parent=11 // pred_check
          %p295 = pneg %p195
        $region38: #{tpu_custom_call.1} parent=11 // pred_check_branch
          %297 = sbr.rel (%p295) target = $region40
        $region39: #{tpu_custom_call.1} parent=11 // pred_region
          _
        $region40: #{tpu_custom_call.1} parent=11 // pred_fallthru
          _
        // Predicated region
        $region41: #{tpu_custom_call.1} parent=11 // pred_check
          %p298 = pneg %p216
        $region42: #{tpu_custom_call.1} parent=11 // pred_check_branch
          %300 = sbr.rel (%p298) target = $region44
        $region43: #{tpu_custom_call.1} parent=11 // pred_region
          _
        $region44: #{tpu_custom_call.1} parent=11 // pred_fallthru
          _
      $region12: #{tpu_custom_call.1} parent=5 // pred_fallthru
        _
      %p301 = scmp.lt.s32.totalorder %s22, 2
      // Predicated region
      $region45: #{tpu_custom_call.1} parent=5 // pred_check
        %p302 = pneg %p301
      $region46: #{tpu_custom_call.1} parent=5 // pred_check_branch
        %304 = sbr.rel (%p302) target = $region48
      $region47: #{tpu_custom_call.1} parent=5 // pred_region
        // Predicated region
        $region49: #{tpu_custom_call.1} parent=47 // pred_check
          %p305 = pneg %p42
        $region50: #{tpu_custom_call.1} parent=47 // pred_check_branch
          %307 = sbr.rel (%p305) target = $region52
        $region51: #{tpu_custom_call.1} parent=47 // pred_region
          %s308 = sand.u32 %s32, 1
          %s309 = scalar_lea.sflag [#allocation5], %s308
          %s310 = sand.u32 %s32, 1
          %s311 = smul.addr %s310, 16
          %s312 = scalar_lea.vmem [#allocation4], %s311
          %s314 = ssub.s32 256, 256
          %315 = vsyncadd %s309, %s314
          %s316 = smul.addr %s22, 2
          %s317 = smul.addr %s316, 128
          %s318 = scalar_lea.hbm %s0, %s317
          %s319 = sshll.u32 %s312, 4
          %s320 = int_to_ptr.vmem [resolvable:$true] %s319
          %325 = dma.hbm_to_vmem [thread:$0]  %s318, 256, %s320, %s309, 128, 128, 8
        $region52: #{tpu_custom_call.1} parent=47 // pred_fallthru
          _
      $region48: #{tpu_custom_call.1} parent=5 // pred_fallthru
        _
      %p326 = scmp.le.s32.totalorder 1, %s22
      %p327 = scmp.lt.s32.totalorder %s22, 3
      %p328 = pnand %p326, %p327
      %p329 = pneg %p328
      // Predicated region
      $region53: #{tpu_custom_call.1} parent=5 // pred_check
        _
      $region54: #{tpu_custom_call.1} parent=5 // pred_check_branch
        %331 = sbr.rel (%p328) target = $region56
      $region55: #{tpu_custom_call.1} parent=5 // pred_region
        %s332 = ssub.s32 %s22, 1
        %s333 = sand.u32 %s35, 1
        %s334 = scalar_lea.sflag [#allocation5], %s333
        %s335 = sand.u32 %s35, 1
        %s336 = smul.addr %s335, 16
        %s337 = scalar_lea.vmem [#allocation4], %s336
        // Predicated region
        $region57: #{tpu_custom_call.1} parent=55 // pred_check
          %p338 = pneg %p48
        $region58: #{tpu_custom_call.1} parent=55 // pred_check_branch
          %340 = sbr.rel (%p338) target = $region60
        $region59: #{tpu_custom_call.1} parent=55 // pred_region
          %341 = dma.done %s334, 256
        $region60: #{tpu_custom_call.1} parent=55 // pred_fallthru
          _
        // Predicated region
        $region61: #{tpu_custom_call.1} parent=55 // pred_check
          %p342 = pneg %p69
        $region62: #{tpu_custom_call.1} parent=55 // pred_check_branch
          %344 = sbr.rel (%p342) target = $region64
        $region63: #{tpu_custom_call.1} parent=55 // pred_region
          %345 = dma.done [#allocation8], 256
        $region64: #{tpu_custom_call.1} parent=55 // pred_fallthru
          _
        // Predicated region
        $region65: #{tpu_custom_call.1} parent=55 // pred_check
          %p346 = pneg %p153
        $region66: #{tpu_custom_call.1} parent=55 // pred_check_branch
          %348 = sbr.rel (%p346) target = $region68
        $region67: #{tpu_custom_call.1} parent=55 // pred_region
          %349 = dma.done [#allocation8], 2304
        $region68: #{tpu_custom_call.1} parent=55 // pred_fallthru
          _
        %s350 = sand.u32 %s35, 1
        %s351 = scalar_lea.sflag [#allocation5], %s350
        %s352 = sand.u32 %s35, 1
        %s353 = smul.addr %s352, 16
        %s354 = scalar_lea.vmem [#allocation4], %s353
        %p355 = pneg %p48
        %p356 = pneg %p45
        %p357 = pneg %p69
        %p358 = pneg %p66
        %p359 = pneg %p90
        %p360 = pneg %p87
        %p361 = pneg %p111
        %p362 = pneg %p108
        %p363 = pneg %p132
        %p364 = pneg %p129
        %p365 = pneg %p153
        %p366 = pneg %p150
        %p367 = pneg %p174
        %p368 = pneg %p171
        %p369 = pneg %p195
        %p370 = pneg %p192
        %p371 = pneg %p216
        %p372 = pneg %p213
        %p373 = pneg %p242
        %p374 = pneg %p239
        %s375 = sand.u32 %s229, 1
        %s376 = scalar_lea.sflag [#allocation6], %s375
        %s377 = sand.u32 %s229, 1
        %s378 = smul.addr %s377, 4
        %s379 = scalar_lea.vmem [#allocation10], %s378
        %vm380 = vcmask 146432
        %381 = vst.msk [vmem:[#allocation2] sm:$0xff] %vm380, 0.0
        %382 = vst.msk [vmem:[#allocation2 + $0x8] sm:$0xff] %vm380, 0.0
        %vm383 = vcmask 140288
        %384 = vst.msk [vmem:[#allocation2 + $0x10] sm:$0x3] %vm383, 0.0
        %v385 = vld [vmem:[%s337] sm:$0xff]
        %v386 = vld [vmem:[%s337 + $0x8] sm:$0xff]
        %389 = vrot.lane.b32.xlu0 %v385, 1
        %v390 = vpop.permute.xlu0 %389
        %391 = vrot.lane.b32.xlu0 %v386, 1
        %v392 = vpop.permute.xlu0 %391
        %vm395 = vcmask 138248
        %396 = vst.msk [vmem:[#allocation2 + $0x1] sm:$0xff] %vm395, %v390
        %397 = vst.msk [vmem:[#allocation2 + $0x9] sm:$0xff] %vm395, %v392
        %v398 = vld [vmem:[#allocation7] sm:$0xff]
        %v399 = vld [vmem:[#allocation7 + $0x8] sm:$0x1]
        %v400 = vld [vmem:[#allocation2] sm:$0xff]
        %v401 = vld [vmem:[#allocation2 + $0x8] sm:$0xff]
        %v402 = vlaneseq
        %v403 = vshrl.u32 %v402, 7
        %v404 = vsub.s32 0, %v403
        %v405 = vrot.slane %v400, %v404
        %407 = vbcast.lane.b32.xlu0 %v405, 256
        %v408 = vpop.permute.xlu0 %407
        %s410 = sor.u32 256, 8
        %411 = vbcast.lane.b32.xlu0 %v405, %s410
        %v412 = vpop.permute.xlu0 %411
        %v413 = vlaneseq
        %v414 = vshrl.u32 %v413, 7
        %v415 = vsub.s32 1, %v414
        %v416 = vrot.slane %v400, %v415
        %418 = vbcast.lane.b32.xlu0 %v416, 256
        %v419 = vpop.permute.xlu0 %418
        %s421 = sor.u32 256, 8
        %422 = vbcast.lane.b32.xlu0 %v416, %s421
        %v423 = vpop.permute.xlu0 %422
        %v424 = vlaneseq
        %v425 = vshrl.u32 %v424, 7
        %v426 = vsub.s32 2, %v425
        %v427 = vrot.slane %v400, %v426
        %429 = vbcast.lane.b32.xlu0 %v427, 256
        %v430 = vpop.permute.xlu0 %429
        %s432 = sor.u32 256, 8
        %433 = vbcast.lane.b32.xlu0 %v427, %s432
        %v434 = vpop.permute.xlu0 %433
        %v435 = vlaneseq
        %v436 = vshrl.u32 %v435, 7
        %v437 = vsub.s32 3, %v436
        %v438 = vrot.slane %v400, %v437
        %440 = vbcast.lane.b32.xlu0 %v438, 256
        %v441 = vpop.permute.xlu0 %440
        %s443 = sor.u32 256, 8
        %444 = vbcast.lane.b32.xlu0 %v438, %s443
        %v445 = vpop.permute.xlu0 %444
        %v446 = vlaneseq
        %v447 = vshrl.u32 %v446, 7
        %v448 = vsub.s32 4, %v447
        %v449 = vrot.slane %v400, %v448
        %451 = vbcast.lane.b32.xlu0 %v449, 256
        %v452 = vpop.permute.xlu0 %451
        %s454 = sor.u32 256, 8
        %455 = vbcast.lane.b32.xlu0 %v449, %s454
        %v456 = vpop.permute.xlu0 %455
        %v457 = vlaneseq
        %v458 = vshrl.u32 %v457, 7
        %v459 = vsub.s32 5, %v458
        %v460 = vrot.slane %v400, %v459
        %462 = vbcast.lane.b32.xlu0 %v460, 256
        %v463 = vpop.permute.xlu0 %462
        %s465 = sor.u32 256, 8
        %466 = vbcast.lane.b32.xlu0 %v460, %s465
        %v467 = vpop.permute.xlu0 %466
        %v468 = vlaneseq
        %v469 = vshrl.u32 %v468, 7
        %v470 = vsub.s32 6, %v469
        %v471 = vrot.slane %v400, %v470
        %473 = vbcast.lane.b32.xlu0 %v471, 256
        %v474 = vpop.permute.xlu0 %473
        %s476 = sor.u32 256, 8
        %477 = vbcast.lane.b32.xlu0 %v471, %s476
        %v478 = vpop.permute.xlu0 %477
        %v479 = vlaneseq
        %v480 = vshrl.u32 %v479, 7
        %v481 = vsub.s32 7, %v480
        %v482 = vrot.slane %v400, %v481
        %484 = vbcast.lane.b32.xlu0 %v482, 256
        %v485 = vpop.permute.xlu0 %484
        %s487 = sor.u32 256, 8
        %488 = vbcast.lane.b32.xlu0 %v482, %s487
        %v489 = vpop.permute.xlu0 %488
        %v490 = vlaneseq
        %v491 = vshrl.u32 %v490, 7
        %v492 = vsub.s32 0, %v491
        %v493 = vrot.slane %v401, %v492
        %495 = vbcast.lane.b32.xlu0 %v493, 256
        %v496 = vpop.permute.xlu0 %495
        %s498 = sor.u32 256, 8
        %499 = vbcast.lane.b32.xlu0 %v493, %s498
        %v500 = vpop.permute.xlu0 %499
        %v501 = vlaneseq
        %v502 = vshrl.u32 %v501, 7
        %v503 = vsub.s32 1, %v502
        %v504 = vrot.slane %v401, %v503
        %506 = vbcast.lane.b32.xlu0 %v504, 256
        %v507 = vpop.permute.xlu0 %506
        %s509 = sor.u32 256, 8
        %510 = vbcast.lane.b32.xlu0 %v504, %s509
        %v511 = vpop.permute.xlu0 %510
        %v512 = vlaneseq
        %v513 = vshrl.u32 %v512, 7
        %v514 = vsub.s32 2, %v513
        %v515 = vrot.slane %v401, %v514
        %517 = vbcast.lane.b32.xlu0 %v515, 256
        %v518 = vpop.permute.xlu0 %517
        %s520 = sor.u32 256, 8
        %521 = vbcast.lane.b32.xlu0 %v515, %s520
        %v522 = vpop.permute.xlu0 %521
        %v523 = vlaneseq
        %v524 = vshrl.u32 %v523, 7
        %v525 = vsub.s32 3, %v524
        %v526 = vrot.slane %v401, %v525
        %528 = vbcast.lane.b32.xlu0 %v526, 256
        %v529 = vpop.permute.xlu0 %528
        %s531 = sor.u32 256, 8
        %532 = vbcast.lane.b32.xlu0 %v526, %s531
        %v533 = vpop.permute.xlu0 %532
        %v534 = vlaneseq
        %v535 = vshrl.u32 %v534, 7
        %v536 = vsub.s32 4, %v535
        %v537 = vrot.slane %v401, %v536
        %539 = vbcast.lane.b32.xlu0 %v537, 256
        %v540 = vpop.permute.xlu0 %539
        %s542 = sor.u32 256, 8
        %543 = vbcast.lane.b32.xlu0 %v537, %s542
        %v544 = vpop.permute.xlu0 %543
        %v545 = vlaneseq
        %v546 = vshrl.u32 %v545, 7
        %v547 = vsub.s32 5, %v546
        %v548 = vrot.slane %v401, %v547
        %550 = vbcast.lane.b32.xlu0 %v548, 256
        %v551 = vpop.permute.xlu0 %550
        %s553 = sor.u32 256, 8
        %554 = vbcast.lane.b32.xlu0 %v548, %s553
        %v555 = vpop.permute.xlu0 %554
        %v556 = vlaneseq
        %v557 = vshrl.u32 %v556, 7
        %v558 = vsub.s32 6, %v557
        %v559 = vrot.slane %v401, %v558
        %561 = vbcast.lane.b32.xlu0 %v559, 256
        %v562 = vpop.permute.xlu0 %561
        %s564 = sor.u32 256, 8
        %565 = vbcast.lane.b32.xlu0 %v559, %s564
        %v566 = vpop.permute.xlu0 %565
        %v567 = vlaneseq
        %v568 = vshrl.u32 %v567, 7
        %v569 = vsub.s32 7, %v568
        %v570 = vrot.slane %v401, %v569
        %572 = vbcast.lane.b32.xlu0 %v570, 256
        %v573 = vpop.permute.xlu0 %572
        %s575 = sor.u32 256, 8
        %576 = vbcast.lane.b32.xlu0 %v570, %s575
        %v577 = vpop.permute.xlu0 %576
        %v578 = vlaneseq
        %v579 = vshrl.u32 %v578, 7
        %v580 = vsub.s32 0, %v579
        %v581 = vrot.slane %v398, %v580
        %v582 = vmul.f32 %v408, %v581
        %v583 = vmul.f32 %v412, %v581
        %v584 = vmul.f32 %v419, %v581
        %v585 = vmul.f32 %v423, %v581
        %v586 = vmul.f32 %v430, %v581
        %v587 = vmul.f32 %v434, %v581
        %v588 = vmul.f32 %v441, %v581
        %v589 = vmul.f32 %v445, %v581
        %v590 = vmul.f32 %v452, %v581
        %v591 = vmul.f32 %v456, %v581
        %v592 = vmul.f32 %v463, %v581
        %v593 = vmul.f32 %v467, %v581
        %v594 = vmul.f32 %v474, %v581
        %v595 = vmul.f32 %v478, %v581
        %v596 = vmul.f32 %v485, %v581
        %v597 = vmul.f32 %v489, %v581
        %v598 = vmul.f32 %v496, %v581
        %v599 = vmul.f32 %v500, %v581
        %v600 = vmul.f32 %v507, %v581
        %v601 = vmul.f32 %v511, %v581
        %v602 = vmul.f32 %v518, %v581
        %v603 = vmul.f32 %v522, %v581
        %v604 = vmul.f32 %v529, %v581
        %v605 = vmul.f32 %v533, %v581
        %v606 = vmul.f32 %v540, %v581
        %v607 = vmul.f32 %v544, %v581
        %v608 = vmul.f32 %v551, %v581
        %v609 = vmul.f32 %v555, %v581
        %v610 = vmul.f32 %v562, %v581
        %v611 = vmul.f32 %v566, %v581
        %v612 = vmul.f32 %v573, %v581
        %v613 = vmul.f32 %v577, %v581
        %v614 = vadd.f32 %v582, 0.0
        %v615 = vadd.f32 %v583, 0.0
        %v616 = vadd.f32 %v584, 0.0
        %v617 = vadd.f32 %v585, 0.0
        %v618 = vadd.f32 %v586, 0.0
        %v619 = vadd.f32 %v587, 0.0
        %v620 = vadd.f32 %v588, 0.0
        %v621 = vadd.f32 %v589, 0.0
        %v622 = vadd.f32 %v590, 0.0
        %v623 = vadd.f32 %v591, 0.0
        %v624 = vadd.f32 %v592, 0.0
        %v625 = vadd.f32 %v593, 0.0
        %v626 = vadd.f32 %v594, 0.0
        %v627 = vadd.f32 %v595, 0.0
        %v628 = vadd.f32 %v596, 0.0
        %v629 = vadd.f32 %v597, 0.0
        %v630 = vadd.f32 %v598, 0.0
        %v631 = vadd.f32 %v599, 0.0
        %v632 = vadd.f32 %v600, 0.0
        %v633 = vadd.f32 %v601, 0.0
        %v634 = vadd.f32 %v602, 0.0
        %v635 = vadd.f32 %v603, 0.0
        %v636 = vadd.f32 %v604, 0.0
        %v637 = vadd.f32 %v605, 0.0
        %v638 = vadd.f32 %v606, 0.0
        %v639 = vadd.f32 %v607, 0.0
        %v640 = vadd.f32 %v608, 0.0
        %v641 = vadd.f32 %v609, 0.0
        %v642 = vadd.f32 %v610, 0.0
        %v643 = vadd.f32 %v611, 0.0
        %v644 = vadd.f32 %v612, 0.0
        %v645 = vadd.f32 %v613, 0.0
        %s647 = sor.u32 256, 1
        %648 = vbcast.lane.b32.xlu0 %v405, %s647
        %v649 = vpop.permute.xlu0 %648
        %s651 = sor.u32 256, 9
        %652 = vbcast.lane.b32.xlu0 %v405, %s651
        %v653 = vpop.permute.xlu0 %652
        %s655 = sor.u32 256, 1
        %656 = vbcast.lane.b32.xlu0 %v416, %s655
        %v657 = vpop.permute.xlu0 %656
        %s659 = sor.u32 256, 9
        %660 = vbcast.lane.b32.xlu0 %v416, %s659
        %v661 = vpop.permute.xlu0 %660
        %s663 = sor.u32 256, 1
        %664 = vbcast.lane.b32.xlu0 %v427, %s663
        %v665 = vpop.permute.xlu0 %664
        %s667 = sor.u32 256, 9
        %668 = vbcast.lane.b32.xlu0 %v427, %s667
        %v669 = vpop.permute.xlu0 %668
        %s671 = sor.u32 256, 1
        %672 = vbcast.lane.b32.xlu0 %v438, %s671
        %v673 = vpop.permute.xlu0 %672
        %s675 = sor.u32 256, 9
        %676 = vbcast.lane.b32.xlu0 %v438, %s675
        %v677 = vpop.permute.xlu0 %676
        %s679 = sor.u32 256, 1
        %680 = vbcast.lane.b32.xlu0 %v449, %s679
        %v681 = vpop.permute.xlu0 %680
        %s683 = sor.u32 256, 9
        %684 = vbcast.lane.b32.xlu0 %v449, %s683
        %v685 = vpop.permute.xlu0 %684
        %s687 = sor.u32 256, 1
        %688 = vbcast.lane.b32.xlu0 %v460, %s687
        %v689 = vpop.permute.xlu0 %688
        %s691 = sor.u32 256, 9
        %692 = vbcast.lane.b32.xlu0 %v460, %s691
        %v693 = vpop.permute.xlu0 %692
        %s695 = sor.u32 256, 1
        %696 = vbcast.lane.b32.xlu0 %v471, %s695
        %v697 = vpop.permute.xlu0 %696
        %s699 = sor.u32 256, 9
        %700 = vbcast.lane.b32.xlu0 %v471, %s699
        %v701 = vpop.permute.xlu0 %700
        %s703 = sor.u32 256, 1
        %704 = vbcast.lane.b32.xlu0 %v482, %s703
        %v705 = vpop.permute.xlu0 %704
        %s707 = sor.u32 256, 9
        %708 = vbcast.lane.b32.xlu0 %v482, %s707
        %v709 = vpop.permute.xlu0 %708
        %s711 = sor.u32 256, 1
        %712 = vbcast.lane.b32.xlu0 %v493, %s711
        %v713 = vpop.permute.xlu0 %712
        %s715 = sor.u32 256, 9
        %716 = vbcast.lane.b32.xlu0 %v493, %s715
        %v717 = vpop.permute.xlu0 %716
        %s719 = sor.u32 256, 1
        %720 = vbcast.lane.b32.xlu0 %v504, %s719
        %v721 = vpop.permute.xlu0 %720
        %s723 = sor.u32 256, 9
        %724 = vbcast.lane.b32.xlu0 %v504, %s723
        %v725 = vpop.permute.xlu0 %724
        %s727 = sor.u32 256, 1
        %728 = vbcast.lane.b32.xlu0 %v515, %s727
        %v729 = vpop.permute.xlu0 %728
        %s731 = sor.u32 256, 9
        %732 = vbcast.lane.b32.xlu0 %v515, %s731
        %v733 = vpop.permute.xlu0 %732
        %s735 = sor.u32 256, 1
        %736 = vbcast.lane.b32.xlu0 %v526, %s735
        %v737 = vpop.permute.xlu0 %736
        %s739 = sor.u32 256, 9
        %740 = vbcast.lane.b32.xlu0 %v526, %s739
        %v741 = vpop.permute.xlu0 %740
        %s743 = sor.u32 256, 1
        %744 = vbcast.lane.b32.xlu0 %v537, %s743
        %v745 = vpop.permute.xlu0 %744
        %s747 = sor.u32 256, 9
        %748 = vbcast.lane.b32.xlu0 %v537, %s747
        %v749 = vpop.permute.xlu0 %748
        %s751 = sor.u32 256, 1
        %752 = vbcast.lane.b32.xlu0 %v548, %s751
        %v753 = vpop.permute.xlu0 %752
        %s755 = sor.u32 256, 9
        %756 = vbcast.lane.b32.xlu0 %v548, %s755
        %v757 = vpop.permute.xlu0 %756
        %s759 = sor.u32 256, 1
        %760 = vbcast.lane.b32.xlu0 %v559, %s759
        %v761 = vpop.permute.xlu0 %760
        %s763 = sor.u32 256, 9
        %764 = vbcast.lane.b32.xlu0 %v559, %s763
        %v765 = vpop.permute.xlu0 %764
        %s767 = sor.u32 256, 1
        %768 = vbcast.lane.b32.xlu0 %v570, %s767
        %v769 = vpop.permute.xlu0 %768
        %s771 = sor.u32 256, 9
        %772 = vbcast.lane.b32.xlu0 %v570, %s771
        %v773 = vpop.permute.xlu0 %772
        %v774 = vlaneseq
        %v775 = vshrl.u32 %v774, 7
        %v776 = vsub.s32 1, %v775
        %v777 = vrot.slane %v398, %v776
        %v778 = vmul.f32 %v649, %v777
        %v779 = vmul.f32 %v653, %v777
        %v780 = vmul.f32 %v657, %v777
        %v781 = vmul.f32 %v661, %v777
        %v782 = vmul.f32 %v665, %v777
        %v783 = vmul.f32 %v669, %v777
        %v784 = vmul.f32 %v673, %v777
        %v785 = vmul.f32 %v677, %v777
        %v786 = vmul.f32 %v681, %v777
        %v787 = vmul.f32 %v685, %v777
        %v788 = vmul.f32 %v689, %v777
        %v789 = vmul.f32 %v693, %v777
        %v790 = vmul.f32 %v697, %v777
        %v791 = vmul.f32 %v701, %v777
        %v792 = vmul.f32 %v705, %v777
        %v793 = vmul.f32 %v709, %v777
        %v794 = vmul.f32 %v713, %v777
        %v795 = vmul.f32 %v717, %v777
        %v796 = vmul.f32 %v721, %v777
        %v797 = vmul.f32 %v725, %v777
        %v798 = vmul.f32 %v729, %v777
        %v799 = vmul.f32 %v733, %v777
        %v800 = vmul.f32 %v737, %v777
        %v801 = vmul.f32 %v741, %v777
        %v802 = vmul.f32 %v745, %v777
        %v803 = vmul.f32 %v749, %v777
        %v804 = vmul.f32 %v753, %v777
        %v805 = vmul.f32 %v757, %v777
        %v806 = vmul.f32 %v761, %v777
        %v807 = vmul.f32 %v765, %v777
        %v808 = vmul.f32 %v769, %v777
        %v809 = vmul.f32 %v773, %v777
        %v810 = vadd.f32 %v614, %v778
        %v811 = vadd.f32 %v615, %v779
        %v812 = vadd.f32 %v616, %v780
        %v813 = vadd.f32 %v617, %v781
        %v814 = vadd.f32 %v618, %v782
        %v815 = vadd.f32 %v619, %v783
        %v816 = vadd.f32 %v620, %v784
        %v817 = vadd.f32 %v621, %v785
        %v818 = vadd.f32 %v622, %v786
        %v819 = vadd.f32 %v623, %v787
        %v820 = vadd.f32 %v624, %v788
        %v821 = vadd.f32 %v625, %v789
        %v822 = vadd.f32 %v626, %v790
        %v823 = vadd.f32 %v627, %v791
        %v824 = vadd.f32 %v628, %v792
        %v825 = vadd.f32 %v629, %v793
        %v826 = vadd.f32 %v630, %v794
        %v827 = vadd.f32 %v631, %v795
        %v828 = vadd.f32 %v632, %v796
        %v829 = vadd.f32 %v633, %v797
        %v830 = vadd.f32 %v634, %v798
        %v831 = vadd.f32 %v635, %v799
        %v832 = vadd.f32 %v636, %v800
        %v833 = vadd.f32 %v637, %v801
        %v834 = vadd.f32 %v638, %v802
        %v835 = vadd.f32 %v639, %v803
        %v836 = vadd.f32 %v640, %v804
        %v837 = vadd.f32 %v641, %v805
        %v838 = vadd.f32 %v642, %v806
        %v839 = vadd.f32 %v643, %v807
        %v840 = vadd.f32 %v644, %v808
        %v841 = vadd.f32 %v645, %v809
        %s843 = sor.u32 256, 2
        %844 = vbcast.lane.b32.xlu0 %v405, %s843
        %v845 = vpop.permute.xlu0 %844
        %s847 = sor.u32 256, 10
        %848 = vbcast.lane.b32.xlu0 %v405, %s847
        %v849 = vpop.permute.xlu0 %848
        %s851 = sor.u32 256, 2
        %852 = vbcast.lane.b32.xlu0 %v416, %s851
        %v853 = vpop.permute.xlu0 %852
        %s855 = sor.u32 256, 10
        %856 = vbcast.lane.b32.xlu0 %v416, %s855
        %v857 = vpop.permute.xlu0 %856
        %s859 = sor.u32 256, 2
        %860 = vbcast.lane.b32.xlu0 %v427, %s859
        %v861 = vpop.permute.xlu0 %860
        %s863 = sor.u32 256, 10
        %864 = vbcast.lane.b32.xlu0 %v427, %s863
        %v865 = vpop.permute.xlu0 %864
        %s867 = sor.u32 256, 2
        %868 = vbcast.lane.b32.xlu0 %v438, %s867
        %v869 = vpop.permute.xlu0 %868
        %s871 = sor.u32 256, 10
        %872 = vbcast.lane.b32.xlu0 %v438, %s871
        %v873 = vpop.permute.xlu0 %872
        %s875 = sor.u32 256, 2
        %876 = vbcast.lane.b32.xlu0 %v449, %s875
        %v877 = vpop.permute.xlu0 %876
        %s879 = sor.u32 256, 10
        %880 = vbcast.lane.b32.xlu0 %v449, %s879
        %v881 = vpop.permute.xlu0 %880
        %s883 = sor.u32 256, 2
        %884 = vbcast.lane.b32.xlu0 %v460, %s883
        %v885 = vpop.permute.xlu0 %884
        %s887 = sor.u32 256, 10
        %888 = vbcast.lane.b32.xlu0 %v460, %s887
        %v889 = vpop.permute.xlu0 %888
        %s891 = sor.u32 256, 2
        %892 = vbcast.lane.b32.xlu0 %v471, %s891
        %v893 = vpop.permute.xlu0 %892
        %s895 = sor.u32 256, 10
        %896 = vbcast.lane.b32.xlu0 %v471, %s895
        %v897 = vpop.permute.xlu0 %896
        %s899 = sor.u32 256, 2
        %900 = vbcast.lane.b32.xlu0 %v482, %s899
        %v901 = vpop.permute.xlu0 %900
        %s903 = sor.u32 256, 10
        %904 = vbcast.lane.b32.xlu0 %v482, %s903
        %v905 = vpop.permute.xlu0 %904
        %s907 = sor.u32 256, 2
        %908 = vbcast.lane.b32.xlu0 %v493, %s907
        %v909 = vpop.permute.xlu0 %908
        %s911 = sor.u32 256, 10
        %912 = vbcast.lane.b32.xlu0 %v493, %s911
        %v913 = vpop.permute.xlu0 %912
        %s915 = sor.u32 256, 2
        %916 = vbcast.lane.b32.xlu0 %v504, %s915
        %v917 = vpop.permute.xlu0 %916
        %s919 = sor.u32 256, 10
        %920 = vbcast.lane.b32.xlu0 %v504, %s919
        %v921 = vpop.permute.xlu0 %920
        %s923 = sor.u32 256, 2
        %924 = vbcast.lane.b32.xlu0 %v515, %s923
        %v925 = vpop.permute.xlu0 %924
        %s927 = sor.u32 256, 10
        %928 = vbcast.lane.b32.xlu0 %v515, %s927
        %v929 = vpop.permute.xlu0 %928
        %s931 = sor.u32 256, 2
        %932 = vbcast.lane.b32.xlu0 %v526, %s931
        %v933 = vpop.permute.xlu0 %932
        %s935 = sor.u32 256, 10
        %936 = vbcast.lane.b32.xlu0 %v526, %s935
        %v937 = vpop.permute.xlu0 %936
        %s939 = sor.u32 256, 2
        %940 = vbcast.lane.b32.xlu0 %v537, %s939
        %v941 = vpop.permute.xlu0 %940
        %s943 = sor.u32 256, 10
        %944 = vbcast.lane.b32.xlu0 %v537, %s943
        %v945 = vpop.permute.xlu0 %944
        %s947 = sor.u32 256, 2
        %948 = vbcast.lane.b32.xlu0 %v548, %s947
        %v949 = vpop.permute.xlu0 %948
        %s951 = sor.u32 256, 10
        %952 = vbcast.lane.b32.xlu0 %v548, %s951
        %v953 = vpop.permute.xlu0 %952
        %s955 = sor.u32 256, 2
        %956 = vbcast.lane.b32.xlu0 %v559, %s955
        %v957 = vpop.permute.xlu0 %956
        %s959 = sor.u32 256, 10
        %960 = vbcast.lane.b32.xlu0 %v559, %s959
        %v961 = vpop.permute.xlu0 %960
        %s963 = sor.u32 256, 2
        %964 = vbcast.lane.b32.xlu0 %v570, %s963
        %v965 = vpop.permute.xlu0 %964
        %s967 = sor.u32 256, 10
        %968 = vbcast.lane.b32.xlu0 %v570, %s967
        %v969 = vpop.permute.xlu0 %968
        %v970 = vlaneseq
        %v971 = vshrl.u32 %v970, 7
        %v972 = vsub.s32 2, %v971
        %v973 = vrot.slane %v398, %v972
        %v974 = vmul.f32 %v845, %v973
        %v975 = vmul.f32 %v849, %v973
        %v976 = vmul.f32 %v853, %v973
        %v977 = vmul.f32 %v857, %v973
        %v978 = vmul.f32 %v861, %v973
        %v979 = vmul.f32 %v865, %v973
        %v980 = vmul.f32 %v869, %v973
        %v981 = vmul.f32 %v873, %v973
        %v982 = vmul.f32 %v877, %v973
        %v983 = vmul.f32 %v881, %v973
        %v984 = vmul.f32 %v885, %v973
        %v985 = vmul.f32 %v889, %v973
        %v986 = vmul.f32 %v893, %v973
        %v987 = vmul.f32 %v897, %v973
        %v988 = vmul.f32 %v901, %v973
        %v989 = vmul.f32 %v905, %v973
        %v990 = vmul.f32 %v909, %v973
        %v991 = vmul.f32 %v913, %v973
        %v992 = vmul.f32 %v917, %v973
        %v993 = vmul.f32 %v921, %v973
        %v994 = vmul.f32 %v925, %v973
        %v995 = vmul.f32 %v929, %v973
        %v996 = vmul.f32 %v933, %v973
        %v997 = vmul.f32 %v937, %v973
        %v998 = vmul.f32 %v941, %v973
        %v999 = vmul.f32 %v945, %v973
        %v1000 = vmul.f32 %v949, %v973
        %v1001 = vmul.f32 %v953, %v973
        %v1002 = vmul.f32 %v957, %v973
        %v1003 = vmul.f32 %v961, %v973
        %v1004 = vmul.f32 %v965, %v973
        %v1005 = vmul.f32 %v969, %v973
        %v1006 = vadd.f32 %v810, %v974
        %v1007 = vadd.f32 %v811, %v975
        %v1008 = vadd.f32 %v812, %v976
        %v1009 = vadd.f32 %v813, %v977
        %v1010 = vadd.f32 %v814, %v978
        %v1011 = vadd.f32 %v815, %v979
        %v1012 = vadd.f32 %v816, %v980
        %v1013 = vadd.f32 %v817, %v981
        %v1014 = vadd.f32 %v818, %v982
        %v1015 = vadd.f32 %v819, %v983
        %v1016 = vadd.f32 %v820, %v984
        %v1017 = vadd.f32 %v821, %v985
        %v1018 = vadd.f32 %v822, %v986
        %v1019 = vadd.f32 %v823, %v987
        %v1020 = vadd.f32 %v824, %v988
        %v1021 = vadd.f32 %v825, %v989
        %v1022 = vadd.f32 %v826, %v990
        %v1023 = vadd.f32 %v827, %v991
        %v1024 = vadd.f32 %v828, %v992
        %v1025 = vadd.f32 %v829, %v993
        %v1026 = vadd.f32 %v830, %v994
        %v1027 = vadd.f32 %v831, %v995
        %v1028 = vadd.f32 %v832, %v996
        %v1029 = vadd.f32 %v833, %v997
        %v1030 = vadd.f32 %v834, %v998
        %v1031 = vadd.f32 %v835, %v999
        %v1032 = vadd.f32 %v836, %v1000
        %v1033 = vadd.f32 %v837, %v1001
        %v1034 = vadd.f32 %v838, %v1002
        %v1035 = vadd.f32 %v839, %v1003
        %v1036 = vadd.f32 %v840, %v1004
        %v1037 = vadd.f32 %v841, %v1005
        %v1038 = vld [vmem:[#allocation2 + $0x1] sm:$0xff]
        %v1039 = vld [vmem:[#allocation2 + $0x9] sm:$0xff]
        %v1040 = vlaneseq
        %v1041 = vshrl.u32 %v1040, 7
        %v1042 = vsub.s32 0, %v1041
        %v1043 = vrot.slane %v1038, %v1042
        %1045 = vbcast.lane.b32.xlu0 %v1043, 256
        %v1046 = vpop.permute.xlu0 %1045
        %s1048 = sor.u32 256, 8
        %1049 = vbcast.lane.b32.xlu0 %v1043, %s1048
        %v1050 = vpop.permute.xlu0 %1049
        %v1051 = vlaneseq
        %v1052 = vshrl.u32 %v1051, 7
        %v1053 = vsub.s32 1, %v1052
        %v1054 = vrot.slane %v1038, %v1053
        %1056 = vbcast.lane.b32.xlu0 %v1054, 256
        %v1057 = vpop.permute.xlu0 %1056
        %s1059 = sor.u32 256, 8
        %1060 = vbcast.lane.b32.xlu0 %v1054, %s1059
        %v1061 = vpop.permute.xlu0 %1060
        %v1062 = vlaneseq
        %v1063 = vshrl.u32 %v1062, 7
        %v1064 = vsub.s32 2, %v1063
        %v1065 = vrot.slane %v1038, %v1064
        %1067 = vbcast.lane.b32.xlu0 %v1065, 256
        %v1068 = vpop.permute.xlu0 %1067
        %s1070 = sor.u32 256, 8
        %1071 = vbcast.lane.b32.xlu0 %v1065, %s1070
        %v1072 = vpop.permute.xlu0 %1071
        %v1073 = vlaneseq
        %v1074 = vshrl.u32 %v1073, 7
        %v1075 = vsub.s32 3, %v1074
        %v1076 = vrot.slane %v1038, %v1075
        %1078 = vbcast.lane.b32.xlu0 %v1076, 256
        %v1079 = vpop.permute.xlu0 %1078
        %s1081 = sor.u32 256, 8
        %1082 = vbcast.lane.b32.xlu0 %v1076, %s1081
        %v1083 = vpop.permute.xlu0 %1082
        %v1084 = vlaneseq
        %v1085 = vshrl.u32 %v1084, 7
        %v1086 = vsub.s32 4, %v1085
        %v1087 = vrot.slane %v1038, %v1086
        %1089 = vbcast.lane.b32.xlu0 %v1087, 256
        %v1090 = vpop.permute.xlu0 %1089
        %s1092 = sor.u32 256, 8
        %1093 = vbcast.lane.b32.xlu0 %v1087, %s1092
        %v1094 = vpop.permute.xlu0 %1093
        %v1095 = vlaneseq
        %v1096 = vshrl.u32 %v1095, 7
        %v1097 = vsub.s32 5, %v1096
        %v1098 = vrot.slane %v1038, %v1097
        %1100 = vbcast.lane.b32.xlu0 %v1098, 256
        %v1101 = vpop.permute.xlu0 %1100
        %s1103 = sor.u32 256, 8
        %1104 = vbcast.lane.b32.xlu0 %v1098, %s1103
        %v1105 = vpop.permute.xlu0 %1104
        %v1106 = vlaneseq
        %v1107 = vshrl.u32 %v1106, 7
        %v1108 = vsub.s32 6, %v1107
        %v1109 = vrot.slane %v1038, %v1108
        %1111 = vbcast.lane.b32.xlu0 %v1109, 256
        %v1112 = vpop.permute.xlu0 %1111
        %s1114 = sor.u32 256, 8
        %1115 = vbcast.lane.b32.xlu0 %v1109, %s1114
        %v1116 = vpop.permute.xlu0 %1115
        %v1117 = vlaneseq
        %v1118 = vshrl.u32 %v1117, 7
        %v1119 = vsub.s32 7, %v1118
        %v1120 = vrot.slane %v1038, %v1119
        %1122 = vbcast.lane.b32.xlu0 %v1120, 256
        %v1123 = vpop.permute.xlu0 %1122
        %s1125 = sor.u32 256, 8
        %1126 = vbcast.lane.b32.xlu0 %v1120, %s1125
        %v1127 = vpop.permute.xlu0 %1126
        %v1128 = vlaneseq
        %v1129 = vshrl.u32 %v1128, 7
        %v1130 = vsub.s32 0, %v1129
        %v1131 = vrot.slane %v1039, %v1130
        %1133 = vbcast.lane.b32.xlu0 %v1131, 256
        %v1134 = vpop.permute.xlu0 %1133
        %s1136 = sor.u32 256, 8
        %1137 = vbcast.lane.b32.xlu0 %v1131, %s1136
        %v1138 = vpop.permute.xlu0 %1137
        %v1139 = vlaneseq
        %v1140 = vshrl.u32 %v1139, 7
        %v1141 = vsub.s32 1, %v1140
        %v1142 = vrot.slane %v1039, %v1141
        %1144 = vbcast.lane.b32.xlu0 %v1142, 256
        %v1145 = vpop.permute.xlu0 %1144
        %s1147 = sor.u32 256, 8
        %1148 = vbcast.lane.b32.xlu0 %v1142, %s1147
        %v1149 = vpop.permute.xlu0 %1148
        %v1150 = vlaneseq
        %v1151 = vshrl.u32 %v1150, 7
        %v1152 = vsub.s32 2, %v1151
        %v1153 = vrot.slane %v1039, %v1152
        %1155 = vbcast.lane.b32.xlu0 %v1153, 256
        %v1156 = vpop.permute.xlu0 %1155
        %s1158 = sor.u32 256, 8
        %1159 = vbcast.lane.b32.xlu0 %v1153, %s1158
        %v1160 = vpop.permute.xlu0 %1159
        %v1161 = vlaneseq
        %v1162 = vshrl.u32 %v1161, 7
        %v1163 = vsub.s32 3, %v1162
        %v1164 = vrot.slane %v1039, %v1163
        %1166 = vbcast.lane.b32.xlu0 %v1164, 256
        %v1167 = vpop.permute.xlu0 %1166
        %s1169 = sor.u32 256, 8
        %1170 = vbcast.lane.b32.xlu0 %v1164, %s1169
        %v1171 = vpop.permute.xlu0 %1170
        %v1172 = vlaneseq
        %v1173 = vshrl.u32 %v1172, 7
        %v1174 = vsub.s32 4, %v1173
        %v1175 = vrot.slane %v1039, %v1174
        %1177 = vbcast.lane.b32.xlu0 %v1175, 256
        %v1178 = vpop.permute.xlu0 %1177
        %s1180 = sor.u32 256, 8
        %1181 = vbcast.lane.b32.xlu0 %v1175, %s1180
        %v1182 = vpop.permute.xlu0 %1181
        %v1183 = vlaneseq
        %v1184 = vshrl.u32 %v1183, 7
        %v1185 = vsub.s32 5, %v1184
        %v1186 = vrot.slane %v1039, %v1185
        %1188 = vbcast.lane.b32.xlu0 %v1186, 256
        %v1189 = vpop.permute.xlu0 %1188
        %s1191 = sor.u32 256, 8
        %1192 = vbcast.lane.b32.xlu0 %v1186, %s1191
        %v1193 = vpop.permute.xlu0 %1192
        %v1194 = vlaneseq
        %v1195 = vshrl.u32 %v1194, 7
        %v1196 = vsub.s32 6, %v1195
        %v1197 = vrot.slane %v1039, %v1196
        %1199 = vbcast.lane.b32.xlu0 %v1197, 256
        %v1200 = vpop.permute.xlu0 %1199
        %s1202 = sor.u32 256, 8
        %1203 = vbcast.lane.b32.xlu0 %v1197, %s1202
        %v1204 = vpop.permute.xlu0 %1203
        %v1205 = vlaneseq
        %v1206 = vshrl.u32 %v1205, 7
        %v1207 = vsub.s32 7, %v1206
        %v1208 = vrot.slane %v1039, %v1207
        %1210 = vbcast.lane.b32.xlu0 %v1208, 256
        %v1211 = vpop.permute.xlu0 %1210
        %s1213 = sor.u32 256, 8
        %1214 = vbcast.lane.b32.xlu0 %v1208, %s1213
        %v1215 = vpop.permute.xlu0 %1214
        %v1216 = vlaneseq
        %v1217 = vshrl.u32 %v1216, 7
        %v1218 = vsub.s32 3, %v1217
        %v1219 = vrot.slane %v398, %v1218
        %v1220 = vmul.f32 %v1046, %v1219
        %v1221 = vmul.f32 %v1050, %v1219
        %v1222 = vmul.f32 %v1057, %v1219
        %v1223 = vmul.f32 %v1061, %v1219
        %v1224 = vmul.f32 %v1068, %v1219
        %v1225 = vmul.f32 %v1072, %v1219
        %v1226 = vmul.f32 %v1079, %v1219
        %v1227 = vmul.f32 %v1083, %v1219
        %v1228 = vmul.f32 %v1090, %v1219
        %v1229 = vmul.f32 %v1094, %v1219
        %v1230 = vmul.f32 %v1101, %v1219
        %v1231 = vmul.f32 %v1105, %v1219
        %v1232 = vmul.f32 %v1112, %v1219
        %v1233 = vmul.f32 %v1116, %v1219
        %v1234 = vmul.f32 %v1123, %v1219
        %v1235 = vmul.f32 %v1127, %v1219
        %v1236 = vmul.f32 %v1134, %v1219
        %v1237 = vmul.f32 %v1138, %v1219
        %v1238 = vmul.f32 %v1145, %v1219
        %v1239 = vmul.f32 %v1149, %v1219
        %v1240 = vmul.f32 %v1156, %v1219
        %v1241 = vmul.f32 %v1160, %v1219
        %v1242 = vmul.f32 %v1167, %v1219
        %v1243 = vmul.f32 %v1171, %v1219
        %v1244 = vmul.f32 %v1178, %v1219
        %v1245 = vmul.f32 %v1182, %v1219
        %v1246 = vmul.f32 %v1189, %v1219
        %v1247 = vmul.f32 %v1193, %v1219
        %v1248 = vmul.f32 %v1200, %v1219
        %v1249 = vmul.f32 %v1204, %v1219
        %v1250 = vmul.f32 %v1211, %v1219
        %v1251 = vmul.f32 %v1215, %v1219
        %v1252 = vadd.f32 %v1006, %v1220
        %v1253 = vadd.f32 %v1007, %v1221
        %v1254 = vadd.f32 %v1008, %v1222
        %v1255 = vadd.f32 %v1009, %v1223
        %v1256 = vadd.f32 %v1010, %v1224
        %v1257 = vadd.f32 %v1011, %v1225
        %v1258 = vadd.f32 %v1012, %v1226
        %v1259 = vadd.f32 %v1013, %v1227
        %v1260 = vadd.f32 %v1014, %v1228
        %v1261 = vadd.f32 %v1015, %v1229
        %v1262 = vadd.f32 %v1016, %v1230
        %v1263 = vadd.f32 %v1017, %v1231
        %v1264 = vadd.f32 %v1018, %v1232
        %v1265 = vadd.f32 %v1019, %v1233
        %v1266 = vadd.f32 %v1020, %v1234
        %v1267 = vadd.f32 %v1021, %v1235
        %v1268 = vadd.f32 %v1022, %v1236
        %v1269 = vadd.f32 %v1023, %v1237
        %v1270 = vadd.f32 %v1024, %v1238
        %v1271 = vadd.f32 %v1025, %v1239
        %v1272 = vadd.f32 %v1026, %v1240
        %v1273 = vadd.f32 %v1027, %v1241
        %v1274 = vadd.f32 %v1028, %v1242
        %v1275 = vadd.f32 %v1029, %v1243
        %v1276 = vadd.f32 %v1030, %v1244
        %v1277 = vadd.f32 %v1031, %v1245
        %v1278 = vadd.f32 %v1032, %v1246
        %v1279 = vadd.f32 %v1033, %v1247
        %v1280 = vadd.f32 %v1034, %v1248
        %v1281 = vadd.f32 %v1035, %v1249
        %v1282 = vadd.f32 %v1036, %v1250
        %v1283 = vadd.f32 %v1037, %v1251
        %s1285 = sor.u32 256, 1
        %1286 = vbcast.lane.b32.xlu0 %v1043, %s1285
        %v1287 = vpop.permute.xlu0 %1286
        %s1289 = sor.u32 256, 9
        %1290 = vbcast.lane.b32.xlu0 %v1043, %s1289
        %v1291 = vpop.permute.xlu0 %1290
        %s1293 = sor.u32 256, 1
        %1294 = vbcast.lane.b32.xlu0 %v1054, %s1293
        %v1295 = vpop.permute.xlu0 %1294
        %s1297 = sor.u32 256, 9
        %1298 = vbcast.lane.b32.xlu0 %v1054, %s1297
        %v1299 = vpop.permute.xlu0 %1298
        %s1301 = sor.u32 256, 1
        %1302 = vbcast.lane.b32.xlu0 %v1065, %s1301
        %v1303 = vpop.permute.xlu0 %1302
        %s1305 = sor.u32 256, 9
        %1306 = vbcast.lane.b32.xlu0 %v1065, %s1305
        %v1307 = vpop.permute.xlu0 %1306
        %s1309 = sor.u32 256, 1
        %1310 = vbcast.lane.b32.xlu0 %v1076, %s1309
        %v1311 = vpop.permute.xlu0 %1310
        %s1313 = sor.u32 256, 9
        %1314 = vbcast.lane.b32.xlu0 %v1076, %s1313
        %v1315 = vpop.permute.xlu0 %1314
        %s1317 = sor.u32 256, 1
        %1318 = vbcast.lane.b32.xlu0 %v1087, %s1317
        %v1319 = vpop.permute.xlu0 %1318
        %s1321 = sor.u32 256, 9
        %1322 = vbcast.lane.b32.xlu0 %v1087, %s1321
        %v1323 = vpop.permute.xlu0 %1322
        %s1325 = sor.u32 256, 1
        %1326 = vbcast.lane.b32.xlu0 %v1098, %s1325
        %v1327 = vpop.permute.xlu0 %1326
        %s1329 = sor.u32 256, 9
        %1330 = vbcast.lane.b32.xlu0 %v1098, %s1329
        %v1331 = vpop.permute.xlu0 %1330
        %s1333 = sor.u32 256, 1
        %1334 = vbcast.lane.b32.xlu0 %v1109, %s1333
        %v1335 = vpop.permute.xlu0 %1334
        %s1337 = sor.u32 256, 9
        %1338 = vbcast.lane.b32.xlu0 %v1109, %s1337
        %v1339 = vpop.permute.xlu0 %1338
        %s1341 = sor.u32 256, 1
        %1342 = vbcast.lane.b32.xlu0 %v1120, %s1341
        %v1343 = vpop.permute.xlu0 %1342
        %s1345 = sor.u32 256, 9
        %1346 = vbcast.lane.b32.xlu0 %v1120, %s1345
        %v1347 = vpop.permute.xlu0 %1346
        %s1349 = sor.u32 256, 1
        %1350 = vbcast.lane.b32.xlu0 %v1131, %s1349
        %v1351 = vpop.permute.xlu0 %1350
        %s1353 = sor.u32 256, 9
        %1354 = vbcast.lane.b32.xlu0 %v1131, %s1353
        %v1355 = vpop.permute.xlu0 %1354
        %s1357 = sor.u32 256, 1
        %1358 = vbcast.lane.b32.xlu0 %v1142, %s1357
        %v1359 = vpop.permute.xlu0 %1358
        %s1361 = sor.u32 256, 9
        %1362 = vbcast.lane.b32.xlu0 %v1142, %s1361
        %v1363 = vpop.permute.xlu0 %1362
        %s1365 = sor.u32 256, 1
        %1366 = vbcast.lane.b32.xlu0 %v1153, %s1365
        %v1367 = vpop.permute.xlu0 %1366
        %s1369 = sor.u32 256, 9
        %1370 = vbcast.lane.b32.xlu0 %v1153, %s1369
        %v1371 = vpop.permute.xlu0 %1370
        %s1373 = sor.u32 256, 1
        %1374 = vbcast.lane.b32.xlu0 %v1164, %s1373
        %v1375 = vpop.permute.xlu0 %1374
        %s1377 = sor.u32 256, 9
        %1378 = vbcast.lane.b32.xlu0 %v1164, %s1377
        %v1379 = vpop.permute.xlu0 %1378
        %s1381 = sor.u32 256, 1
        %1382 = vbcast.lane.b32.xlu0 %v1175, %s1381
        %v1383 = vpop.permute.xlu0 %1382
        %s1385 = sor.u32 256, 9
        %1386 = vbcast.lane.b32.xlu0 %v1175, %s1385
        %v1387 = vpop.permute.xlu0 %1386
        %s1389 = sor.u32 256, 1
        %1390 = vbcast.lane.b32.xlu0 %v1186, %s1389
        %v1391 = vpop.permute.xlu0 %1390
        %s1393 = sor.u32 256, 9
        %1394 = vbcast.lane.b32.xlu0 %v1186, %s1393
        %v1395 = vpop.permute.xlu0 %1394
        %s1397 = sor.u32 256, 1
        %1398 = vbcast.lane.b32.xlu0 %v1197, %s1397
        %v1399 = vpop.permute.xlu0 %1398
        %s1401 = sor.u32 256, 9
        %1402 = vbcast.lane.b32.xlu0 %v1197, %s1401
        %v1403 = vpop.permute.xlu0 %1402
        %s1405 = sor.u32 256, 1
        %1406 = vbcast.lane.b32.xlu0 %v1208, %s1405
        %v1407 = vpop.permute.xlu0 %1406
        %s1409 = sor.u32 256, 9
        %1410 = vbcast.lane.b32.xlu0 %v1208, %s1409
        %v1411 = vpop.permute.xlu0 %1410
        %v1412 = vlaneseq
        %v1413 = vshrl.u32 %v1412, 7
        %v1414 = vsub.s32 4, %v1413
        %v1415 = vrot.slane %v398, %v1414
        %v1416 = vmul.f32 %v1287, %v1415
        %v1417 = vmul.f32 %v1291, %v1415
        %v1418 = vmul.f32 %v1295, %v1415
        %v1419 = vmul.f32 %v1299, %v1415
        %v1420 = vmul.f32 %v1303, %v1415
        %v1421 = vmul.f32 %v1307, %v1415
        %v1422 = vmul.f32 %v1311, %v1415
        %v1423 = vmul.f32 %v1315, %v1415
        %v1424 = vmul.f32 %v1319, %v1415
        %v1425 = vmul.f32 %v1323, %v1415
        %v1426 = vmul.f32 %v1327, %v1415
        %v1427 = vmul.f32 %v1331, %v1415
        %v1428 = vmul.f32 %v1335, %v1415
        %v1429 = vmul.f32 %v1339, %v1415
        %v1430 = vmul.f32 %v1343, %v1415
        %v1431 = vmul.f32 %v1347, %v1415
        %v1432 = vmul.f32 %v1351, %v1415
        %v1433 = vmul.f32 %v1355, %v1415
        %v1434 = vmul.f32 %v1359, %v1415
        %v1435 = vmul.f32 %v1363, %v1415
        %v1436 = vmul.f32 %v1367, %v1415
        %v1437 = vmul.f32 %v1371, %v1415
        %v1438 = vmul.f32 %v1375, %v1415
        %v1439 = vmul.f32 %v1379, %v1415
        %v1440 = vmul.f32 %v1383, %v1415
        %v1441 = vmul.f32 %v1387, %v1415
        %v1442 = vmul.f32 %v1391, %v1415
        %v1443 = vmul.f32 %v1395, %v1415
        %v1444 = vmul.f32 %v1399, %v1415
        %v1445 = vmul.f32 %v1403, %v1415
        %v1446 = vmul.f32 %v1407, %v1415
        %v1447 = vmul.f32 %v1411, %v1415
        %v1448 = vadd.f32 %v1252, %v1416
        %v1449 = vadd.f32 %v1253, %v1417
        %v1450 = vadd.f32 %v1254, %v1418
        %v1451 = vadd.f32 %v1255, %v1419
        %v1452 = vadd.f32 %v1256, %v1420
        %v1453 = vadd.f32 %v1257, %v1421
        %v1454 = vadd.f32 %v1258, %v1422
        %v1455 = vadd.f32 %v1259, %v1423
        %v1456 = vadd.f32 %v1260, %v1424
        %v1457 = vadd.f32 %v1261, %v1425
        %v1458 = vadd.f32 %v1262, %v1426
        %v1459 = vadd.f32 %v1263, %v1427
        %v1460 = vadd.f32 %v1264, %v1428
        %v1461 = vadd.f32 %v1265, %v1429
        %v1462 = vadd.f32 %v1266, %v1430
        %v1463 = vadd.f32 %v1267, %v1431
        %v1464 = vadd.f32 %v1268, %v1432
        %v1465 = vadd.f32 %v1269, %v1433
        %v1466 = vadd.f32 %v1270, %v1434
        %v1467 = vadd.f32 %v1271, %v1435
        %v1468 = vadd.f32 %v1272, %v1436
        %v1469 = vadd.f32 %v1273, %v1437
        %v1470 = vadd.f32 %v1274, %v1438
        %v1471 = vadd.f32 %v1275, %v1439
        %v1472 = vadd.f32 %v1276, %v1440
        %v1473 = vadd.f32 %v1277, %v1441
        %v1474 = vadd.f32 %v1278, %v1442
        %v1475 = vadd.f32 %v1279, %v1443
        %v1476 = vadd.f32 %v1280, %v1444
        %v1477 = vadd.f32 %v1281, %v1445
        %v1478 = vadd.f32 %v1282, %v1446
        %v1479 = vadd.f32 %v1283, %v1447
        %s1481 = sor.u32 256, 2
        %1482 = vbcast.lane.b32.xlu0 %v1043, %s1481
        %v1483 = vpop.permute.xlu0 %1482
        %s1485 = sor.u32 256, 10
        %1486 = vbcast.lane.b32.xlu0 %v1043, %s1485
        %v1487 = vpop.permute.xlu0 %1486
        %s1489 = sor.u32 256, 2
        %1490 = vbcast.lane.b32.xlu0 %v1054, %s1489
        %v1491 = vpop.permute.xlu0 %1490
        %s1493 = sor.u32 256, 10
        %1494 = vbcast.lane.b32.xlu0 %v1054, %s1493
        %v1495 = vpop.permute.xlu0 %1494
        %s1497 = sor.u32 256, 2
        %1498 = vbcast.lane.b32.xlu0 %v1065, %s1497
        %v1499 = vpop.permute.xlu0 %1498
        %s1501 = sor.u32 256, 10
        %1502 = vbcast.lane.b32.xlu0 %v1065, %s1501
        %v1503 = vpop.permute.xlu0 %1502
        %s1505 = sor.u32 256, 2
        %1506 = vbcast.lane.b32.xlu0 %v1076, %s1505
        %v1507 = vpop.permute.xlu0 %1506
        %s1509 = sor.u32 256, 10
        %1510 = vbcast.lane.b32.xlu0 %v1076, %s1509
        %v1511 = vpop.permute.xlu0 %1510
        %s1513 = sor.u32 256, 2
        %1514 = vbcast.lane.b32.xlu0 %v1087, %s1513
        %v1515 = vpop.permute.xlu0 %1514
        %s1517 = sor.u32 256, 10
        %1518 = vbcast.lane.b32.xlu0 %v1087, %s1517
        %v1519 = vpop.permute.xlu0 %1518
        %s1521 = sor.u32 256, 2
        %1522 = vbcast.lane.b32.xlu0 %v1098, %s1521
        %v1523 = vpop.permute.xlu0 %1522
        %s1525 = sor.u32 256, 10
        %1526 = vbcast.lane.b32.xlu0 %v1098, %s1525
        %v1527 = vpop.permute.xlu0 %1526
        %s1529 = sor.u32 256, 2
        %1530 = vbcast.lane.b32.xlu0 %v1109, %s1529
        %v1531 = vpop.permute.xlu0 %1530
        %s1533 = sor.u32 256, 10
        %1534 = vbcast.lane.b32.xlu0 %v1109, %s1533
        %v1535 = vpop.permute.xlu0 %1534
        %s1537 = sor.u32 256, 2
        %1538 = vbcast.lane.b32.xlu0 %v1120, %s1537
        %v1539 = vpop.permute.xlu0 %1538
        %s1541 = sor.u32 256, 10
        %1542 = vbcast.lane.b32.xlu0 %v1120, %s1541
        %v1543 = vpop.permute.xlu0 %1542
        %s1545 = sor.u32 256, 2
        %1546 = vbcast.lane.b32.xlu0 %v1131, %s1545
        %v1547 = vpop.permute.xlu0 %1546
        %s1549 = sor.u32 256, 10
        %1550 = vbcast.lane.b32.xlu0 %v1131, %s1549
        %v1551 = vpop.permute.xlu0 %1550
        %s1553 = sor.u32 256, 2
        %1554 = vbcast.lane.b32.xlu0 %v1142, %s1553
        %v1555 = vpop.permute.xlu0 %1554
        %s1557 = sor.u32 256, 10
        %1558 = vbcast.lane.b32.xlu0 %v1142, %s1557
        %v1559 = vpop.permute.xlu0 %1558
        %s1561 = sor.u32 256, 2
        %1562 = vbcast.lane.b32.xlu0 %v1153, %s1561
        %v1563 = vpop.permute.xlu0 %1562
        %s1565 = sor.u32 256, 10
        %1566 = vbcast.lane.b32.xlu0 %v1153, %s1565
        %v1567 = vpop.permute.xlu0 %1566
        %s1569 = sor.u32 256, 2
        %1570 = vbcast.lane.b32.xlu0 %v1164, %s1569
        %v1571 = vpop.permute.xlu0 %1570
        %s1573 = sor.u32 256, 10
        %1574 = vbcast.lane.b32.xlu0 %v1164, %s1573
        %v1575 = vpop.permute.xlu0 %1574
        %s1577 = sor.u32 256, 2
        %1578 = vbcast.lane.b32.xlu0 %v1175, %s1577
        %v1579 = vpop.permute.xlu0 %1578
        %s1581 = sor.u32 256, 10
        %1582 = vbcast.lane.b32.xlu0 %v1175, %s1581
        %v1583 = vpop.permute.xlu0 %1582
        %s1585 = sor.u32 256, 2
        %1586 = vbcast.lane.b32.xlu0 %v1186, %s1585
        %v1587 = vpop.permute.xlu0 %1586
        %s1589 = sor.u32 256, 10
        %1590 = vbcast.lane.b32.xlu0 %v1186, %s1589
        %v1591 = vpop.permute.xlu0 %1590
        %s1593 = sor.u32 256, 2
        %1594 = vbcast.lane.b32.xlu0 %v1197, %s1593
        %v1595 = vpop.permute.xlu0 %1594
        %s1597 = sor.u32 256, 10
        %1598 = vbcast.lane.b32.xlu0 %v1197, %s1597
        %v1599 = vpop.permute.xlu0 %1598
        %s1601 = sor.u32 256, 2
        %1602 = vbcast.lane.b32.xlu0 %v1208, %s1601
        %v1603 = vpop.permute.xlu0 %1602
        %s1605 = sor.u32 256, 10
        %1606 = vbcast.lane.b32.xlu0 %v1208, %s1605
        %v1607 = vpop.permute.xlu0 %1606
        %v1608 = vlaneseq
        %v1609 = vshrl.u32 %v1608, 7
        %v1610 = vsub.s32 5, %v1609
        %v1611 = vrot.slane %v398, %v1610
        %v1612 = vmul.f32 %v1483, %v1611
        %v1613 = vmul.f32 %v1487, %v1611
        %v1614 = vmul.f32 %v1491, %v1611
        %v1615 = vmul.f32 %v1495, %v1611
        %v1616 = vmul.f32 %v1499, %v1611
        %v1617 = vmul.f32 %v1503, %v1611
        %v1618 = vmul.f32 %v1507, %v1611
        %v1619 = vmul.f32 %v1511, %v1611
        %v1620 = vmul.f32 %v1515, %v1611
        %v1621 = vmul.f32 %v1519, %v1611
        %v1622 = vmul.f32 %v1523, %v1611
        %v1623 = vmul.f32 %v1527, %v1611
        %v1624 = vmul.f32 %v1531, %v1611
        %v1625 = vmul.f32 %v1535, %v1611
        %v1626 = vmul.f32 %v1539, %v1611
        %v1627 = vmul.f32 %v1543, %v1611
        %v1628 = vmul.f32 %v1547, %v1611
        %v1629 = vmul.f32 %v1551, %v1611
        %v1630 = vmul.f32 %v1555, %v1611
        %v1631 = vmul.f32 %v1559, %v1611
        %v1632 = vmul.f32 %v1563, %v1611
        %v1633 = vmul.f32 %v1567, %v1611
        %v1634 = vmul.f32 %v1571, %v1611
        %v1635 = vmul.f32 %v1575, %v1611
        %v1636 = vmul.f32 %v1579, %v1611
        %v1637 = vmul.f32 %v1583, %v1611
        %v1638 = vmul.f32 %v1587, %v1611
        %v1639 = vmul.f32 %v1591, %v1611
        %v1640 = vmul.f32 %v1595, %v1611
        %v1641 = vmul.f32 %v1599, %v1611
        %v1642 = vmul.f32 %v1603, %v1611
        %v1643 = vmul.f32 %v1607, %v1611
        %v1644 = vadd.f32 %v1448, %v1612
        %v1645 = vadd.f32 %v1449, %v1613
        %v1646 = vadd.f32 %v1450, %v1614
        %v1647 = vadd.f32 %v1451, %v1615
        %v1648 = vadd.f32 %v1452, %v1616
        %v1649 = vadd.f32 %v1453, %v1617
        %v1650 = vadd.f32 %v1454, %v1618
        %v1651 = vadd.f32 %v1455, %v1619
        %v1652 = vadd.f32 %v1456, %v1620
        %v1653 = vadd.f32 %v1457, %v1621
        %v1654 = vadd.f32 %v1458, %v1622
        %v1655 = vadd.f32 %v1459, %v1623
        %v1656 = vadd.f32 %v1460, %v1624
        %v1657 = vadd.f32 %v1461, %v1625
        %v1658 = vadd.f32 %v1462, %v1626
        %v1659 = vadd.f32 %v1463, %v1627
        %v1660 = vadd.f32 %v1464, %v1628
        %v1661 = vadd.f32 %v1465, %v1629
        %v1662 = vadd.f32 %v1466, %v1630
        %v1663 = vadd.f32 %v1467, %v1631
        %v1664 = vadd.f32 %v1468, %v1632
        %v1665 = vadd.f32 %v1469, %v1633
        %v1666 = vadd.f32 %v1470, %v1634
        %v1667 = vadd.f32 %v1471, %v1635
        %v1668 = vadd.f32 %v1472, %v1636
        %v1669 = vadd.f32 %v1473, %v1637
        %v1670 = vadd.f32 %v1474, %v1638
        %v1671 = vadd.f32 %v1475, %v1639
        %v1672 = vadd.f32 %v1476, %v1640
        %v1673 = vadd.f32 %v1477, %v1641
        %v1674 = vadd.f32 %v1478, %v1642
        %v1675 = vadd.f32 %v1479, %v1643
        %v1676 = vld [vmem:[#allocation2 + $0x2] sm:$0xff]
        %v1677 = vld [vmem:[#allocation2 + $0xa] sm:$0xff]
        %v1678 = vlaneseq
        %v1679 = vshrl.u32 %v1678, 7
        %v1680 = vsub.s32 0, %v1679
        %v1681 = vrot.slane %v1676, %v1680
        %1683 = vbcast.lane.b32.xlu0 %v1681, 256
        %v1684 = vpop.permute.xlu0 %1683
        %s1686 = sor.u32 256, 8
        %1687 = vbcast.lane.b32.xlu0 %v1681, %s1686
        %v1688 = vpop.permute.xlu0 %1687
        %v1689 = vlaneseq
        %v1690 = vshrl.u32 %v1689, 7
        %v1691 = vsub.s32 1, %v1690
        %v1692 = vrot.slane %v1676, %v1691
        %1694 = vbcast.lane.b32.xlu0 %v1692, 256
        %v1695 = vpop.permute.xlu0 %1694
        %s1697 = sor.u32 256, 8
        %1698 = vbcast.lane.b32.xlu0 %v1692, %s1697
        %v1699 = vpop.permute.xlu0 %1698
        %v1700 = vlaneseq
        %v1701 = vshrl.u32 %v1700, 7
        %v1702 = vsub.s32 2, %v1701
        %v1703 = vrot.slane %v1676, %v1702
        %1705 = vbcast.lane.b32.xlu0 %v1703, 256
        %v1706 = vpop.permute.xlu0 %1705
        %s1708 = sor.u32 256, 8
        %1709 = vbcast.lane.b32.xlu0 %v1703, %s1708
        %v1710 = vpop.permute.xlu0 %1709
        %v1711 = vlaneseq
        %v1712 = vshrl.u32 %v1711, 7
        %v1713 = vsub.s32 3, %v1712
        %v1714 = vrot.slane %v1676, %v1713
        %1716 = vbcast.lane.b32.xlu0 %v1714, 256
        %v1717 = vpop.permute.xlu0 %1716
        %s1719 = sor.u32 256, 8
        %1720 = vbcast.lane.b32.xlu0 %v1714, %s1719
        %v1721 = vpop.permute.xlu0 %1720
        %v1722 = vlaneseq
        %v1723 = vshrl.u32 %v1722, 7
        %v1724 = vsub.s32 4, %v1723
        %v1725 = vrot.slane %v1676, %v1724
        %1727 = vbcast.lane.b32.xlu0 %v1725, 256
        %v1728 = vpop.permute.xlu0 %1727
        %s1730 = sor.u32 256, 8
        %1731 = vbcast.lane.b32.xlu0 %v1725, %s1730
        %v1732 = vpop.permute.xlu0 %1731
        %v1733 = vlaneseq
        %v1734 = vshrl.u32 %v1733, 7
        %v1735 = vsub.s32 5, %v1734
        %v1736 = vrot.slane %v1676, %v1735
        %1738 = vbcast.lane.b32.xlu0 %v1736, 256
        %v1739 = vpop.permute.xlu0 %1738
        %s1741 = sor.u32 256, 8
        %1742 = vbcast.lane.b32.xlu0 %v1736, %s1741
        %v1743 = vpop.permute.xlu0 %1742
        %v1744 = vlaneseq
        %v1745 = vshrl.u32 %v1744, 7
        %v1746 = vsub.s32 6, %v1745
        %v1747 = vrot.slane %v1676, %v1746
        %1749 = vbcast.lane.b32.xlu0 %v1747, 256
        %v1750 = vpop.permute.xlu0 %1749
        %s1752 = sor.u32 256, 8
        %1753 = vbcast.lane.b32.xlu0 %v1747, %s1752
        %v1754 = vpop.permute.xlu0 %1753
        %v1755 = vlaneseq
        %v1756 = vshrl.u32 %v1755, 7
        %v1757 = vsub.s32 7, %v1756
        %v1758 = vrot.slane %v1676, %v1757
        %1760 = vbcast.lane.b32.xlu0 %v1758, 256
        %v1761 = vpop.permute.xlu0 %1760
        %s1763 = sor.u32 256, 8
        %1764 = vbcast.lane.b32.xlu0 %v1758, %s1763
        %v1765 = vpop.permute.xlu0 %1764
        %v1766 = vlaneseq
        %v1767 = vshrl.u32 %v1766, 7
        %v1768 = vsub.s32 0, %v1767
        %v1769 = vrot.slane %v1677, %v1768
        %1771 = vbcast.lane.b32.xlu0 %v1769, 256
        %v1772 = vpop.permute.xlu0 %1771
        %s1774 = sor.u32 256, 8
        %1775 = vbcast.lane.b32.xlu0 %v1769, %s1774
        %v1776 = vpop.permute.xlu0 %1775
        %v1777 = vlaneseq
        %v1778 = vshrl.u32 %v1777, 7
        %v1779 = vsub.s32 1, %v1778
        %v1780 = vrot.slane %v1677, %v1779
        %1782 = vbcast.lane.b32.xlu0 %v1780, 256
        %v1783 = vpop.permute.xlu0 %1782
        %s1785 = sor.u32 256, 8
        %1786 = vbcast.lane.b32.xlu0 %v1780, %s1785
        %v1787 = vpop.permute.xlu0 %1786
        %v1788 = vlaneseq
        %v1789 = vshrl.u32 %v1788, 7
        %v1790 = vsub.s32 2, %v1789
        %v1791 = vrot.slane %v1677, %v1790
        %1793 = vbcast.lane.b32.xlu0 %v1791, 256
        %v1794 = vpop.permute.xlu0 %1793
        %s1796 = sor.u32 256, 8
        %1797 = vbcast.lane.b32.xlu0 %v1791, %s1796
        %v1798 = vpop.permute.xlu0 %1797
        %v1799 = vlaneseq
        %v1800 = vshrl.u32 %v1799, 7
        %v1801 = vsub.s32 3, %v1800
        %v1802 = vrot.slane %v1677, %v1801
        %1804 = vbcast.lane.b32.xlu0 %v1802, 256
        %v1805 = vpop.permute.xlu0 %1804
        %s1807 = sor.u32 256, 8
        %1808 = vbcast.lane.b32.xlu0 %v1802, %s1807
        %v1809 = vpop.permute.xlu0 %1808
        %v1810 = vlaneseq
        %v1811 = vshrl.u32 %v1810, 7
        %v1812 = vsub.s32 4, %v1811
        %v1813 = vrot.slane %v1677, %v1812
        %1815 = vbcast.lane.b32.xlu0 %v1813, 256
        %v1816 = vpop.permute.xlu0 %1815
        %s1818 = sor.u32 256, 8
        %1819 = vbcast.lane.b32.xlu0 %v1813, %s1818
        %v1820 = vpop.permute.xlu0 %1819
        %v1821 = vlaneseq
        %v1822 = vshrl.u32 %v1821, 7
        %v1823 = vsub.s32 5, %v1822
        %v1824 = vrot.slane %v1677, %v1823
        %1826 = vbcast.lane.b32.xlu0 %v1824, 256
        %v1827 = vpop.permute.xlu0 %1826
        %s1829 = sor.u32 256, 8
        %1830 = vbcast.lane.b32.xlu0 %v1824, %s1829
        %v1831 = vpop.permute.xlu0 %1830
        %v1832 = vlaneseq
        %v1833 = vshrl.u32 %v1832, 7
        %v1834 = vsub.s32 6, %v1833
        %v1835 = vrot.slane %v1677, %v1834
        %1837 = vbcast.lane.b32.xlu0 %v1835, 256
        %v1838 = vpop.permute.xlu0 %1837
        %s1840 = sor.u32 256, 8
        %1841 = vbcast.lane.b32.xlu0 %v1835, %s1840
        %v1842 = vpop.permute.xlu0 %1841
        %v1843 = vlaneseq
        %v1844 = vshrl.u32 %v1843, 7
        %v1845 = vsub.s32 7, %v1844
        %v1846 = vrot.slane %v1677, %v1845
        %1848 = vbcast.lane.b32.xlu0 %v1846, 256
        %v1849 = vpop.permute.xlu0 %1848
        %s1851 = sor.u32 256, 8
        %1852 = vbcast.lane.b32.xlu0 %v1846, %s1851
        %v1853 = vpop.permute.xlu0 %1852
        %v1854 = vlaneseq
        %v1855 = vshrl.u32 %v1854, 7
        %v1856 = vsub.s32 6, %v1855
        %v1857 = vrot.slane %v398, %v1856
        %v1858 = vmul.f32 %v1684, %v1857
        %v1859 = vmul.f32 %v1688, %v1857
        %v1860 = vmul.f32 %v1695, %v1857
        %v1861 = vmul.f32 %v1699, %v1857
        %v1862 = vmul.f32 %v1706, %v1857
        %v1863 = vmul.f32 %v1710, %v1857
        %v1864 = vmul.f32 %v1717, %v1857
        %v1865 = vmul.f32 %v1721, %v1857
        %v1866 = vmul.f32 %v1728, %v1857
        %v1867 = vmul.f32 %v1732, %v1857
        %v1868 = vmul.f32 %v1739, %v1857
        %v1869 = vmul.f32 %v1743, %v1857
        %v1870 = vmul.f32 %v1750, %v1857
        %v1871 = vmul.f32 %v1754, %v1857
        %v1872 = vmul.f32 %v1761, %v1857
        %v1873 = vmul.f32 %v1765, %v1857
        %v1874 = vmul.f32 %v1772, %v1857
        %v1875 = vmul.f32 %v1776, %v1857
        %v1876 = vmul.f32 %v1783, %v1857
        %v1877 = vmul.f32 %v1787, %v1857
        %v1878 = vmul.f32 %v1794, %v1857
        %v1879 = vmul.f32 %v1798, %v1857
        %v1880 = vmul.f32 %v1805, %v1857
        %v1881 = vmul.f32 %v1809, %v1857
        %v1882 = vmul.f32 %v1816, %v1857
        %v1883 = vmul.f32 %v1820, %v1857
        %v1884 = vmul.f32 %v1827, %v1857
        %v1885 = vmul.f32 %v1831, %v1857
        %v1886 = vmul.f32 %v1838, %v1857
        %v1887 = vmul.f32 %v1842, %v1857
        %v1888 = vmul.f32 %v1849, %v1857
        %v1889 = vmul.f32 %v1853, %v1857
        %v1890 = vadd.f32 %v1644, %v1858
        %v1891 = vadd.f32 %v1645, %v1859
        %v1892 = vadd.f32 %v1646, %v1860
        %v1893 = vadd.f32 %v1647, %v1861
        %v1894 = vadd.f32 %v1648, %v1862
        %v1895 = vadd.f32 %v1649, %v1863
        %v1896 = vadd.f32 %v1650, %v1864
        %v1897 = vadd.f32 %v1651, %v1865
        %v1898 = vadd.f32 %v1652, %v1866
        %v1899 = vadd.f32 %v1653, %v1867
        %v1900 = vadd.f32 %v1654, %v1868
        %v1901 = vadd.f32 %v1655, %v1869
        %v1902 = vadd.f32 %v1656, %v1870
        %v1903 = vadd.f32 %v1657, %v1871
        %v1904 = vadd.f32 %v1658, %v1872
        %v1905 = vadd.f32 %v1659, %v1873
        %v1906 = vadd.f32 %v1660, %v1874
        %v1907 = vadd.f32 %v1661, %v1875
        %v1908 = vadd.f32 %v1662, %v1876
        %v1909 = vadd.f32 %v1663, %v1877
        %v1910 = vadd.f32 %v1664, %v1878
        %v1911 = vadd.f32 %v1665, %v1879
        %v1912 = vadd.f32 %v1666, %v1880
        %v1913 = vadd.f32 %v1667, %v1881
        %v1914 = vadd.f32 %v1668, %v1882
        %v1915 = vadd.f32 %v1669, %v1883
        %v1916 = vadd.f32 %v1670, %v1884
        %v1917 = vadd.f32 %v1671, %v1885
        %v1918 = vadd.f32 %v1672, %v1886
        %v1919 = vadd.f32 %v1673, %v1887
        %v1920 = vadd.f32 %v1674, %v1888
        %v1921 = vadd.f32 %v1675, %v1889
        %s1923 = sor.u32 256, 1
        %1924 = vbcast.lane.b32.xlu0 %v1681, %s1923
        %v1925 = vpop.permute.xlu0 %1924
        %s1927 = sor.u32 256, 9
        %1928 = vbcast.lane.b32.xlu0 %v1681, %s1927
        %v1929 = vpop.permute.xlu0 %1928
        %s1931 = sor.u32 256, 1
        %1932 = vbcast.lane.b32.xlu0 %v1692, %s1931
        %v1933 = vpop.permute.xlu0 %1932
        %s1935 = sor.u32 256, 9
        %1936 = vbcast.lane.b32.xlu0 %v1692, %s1935
        %v1937 = vpop.permute.xlu0 %1936
        %s1939 = sor.u32 256, 1
        %1940 = vbcast.lane.b32.xlu0 %v1703, %s1939
        %v1941 = vpop.permute.xlu0 %1940
        %s1943 = sor.u32 256, 9
        %1944 = vbcast.lane.b32.xlu0 %v1703, %s1943
        %v1945 = vpop.permute.xlu0 %1944
        %s1947 = sor.u32 256, 1
        %1948 = vbcast.lane.b32.xlu0 %v1714, %s1947
        %v1949 = vpop.permute.xlu0 %1948
        %s1951 = sor.u32 256, 9
        %1952 = vbcast.lane.b32.xlu0 %v1714, %s1951
        %v1953 = vpop.permute.xlu0 %1952
        %s1955 = sor.u32 256, 1
        %1956 = vbcast.lane.b32.xlu0 %v1725, %s1955
        %v1957 = vpop.permute.xlu0 %1956
        %s1959 = sor.u32 256, 9
        %1960 = vbcast.lane.b32.xlu0 %v1725, %s1959
        %v1961 = vpop.permute.xlu0 %1960
        %s1963 = sor.u32 256, 1
        %1964 = vbcast.lane.b32.xlu0 %v1736, %s1963
        %v1965 = vpop.permute.xlu0 %1964
        %s1967 = sor.u32 256, 9
        %1968 = vbcast.lane.b32.xlu0 %v1736, %s1967
        %v1969 = vpop.permute.xlu0 %1968
        %s1971 = sor.u32 256, 1
        %1972 = vbcast.lane.b32.xlu0 %v1747, %s1971
        %v1973 = vpop.permute.xlu0 %1972
        %s1975 = sor.u32 256, 9
        %1976 = vbcast.lane.b32.xlu0 %v1747, %s1975
        %v1977 = vpop.permute.xlu0 %1976
        %s1979 = sor.u32 256, 1
        %1980 = vbcast.lane.b32.xlu0 %v1758, %s1979
        %v1981 = vpop.permute.xlu0 %1980
        %s1983 = sor.u32 256, 9
        %1984 = vbcast.lane.b32.xlu0 %v1758, %s1983
        %v1985 = vpop.permute.xlu0 %1984
        %s1987 = sor.u32 256, 1
        %1988 = vbcast.lane.b32.xlu0 %v1769, %s1987
        %v1989 = vpop.permute.xlu0 %1988
        %s1991 = sor.u32 256, 9
        %1992 = vbcast.lane.b32.xlu0 %v1769, %s1991
        %v1993 = vpop.permute.xlu0 %1992
        %s1995 = sor.u32 256, 1
        %1996 = vbcast.lane.b32.xlu0 %v1780, %s1995
        %v1997 = vpop.permute.xlu0 %1996
        %s1999 = sor.u32 256, 9
        %2000 = vbcast.lane.b32.xlu0 %v1780, %s1999
        %v2001 = vpop.permute.xlu0 %2000
        %s2003 = sor.u32 256, 1
        %2004 = vbcast.lane.b32.xlu0 %v1791, %s2003
        %v2005 = vpop.permute.xlu0 %2004
        %s2007 = sor.u32 256, 9
        %2008 = vbcast.lane.b32.xlu0 %v1791, %s2007
        %v2009 = vpop.permute.xlu0 %2008
        %s2011 = sor.u32 256, 1
        %2012 = vbcast.lane.b32.xlu0 %v1802, %s2011
        %v2013 = vpop.permute.xlu0 %2012
        %s2015 = sor.u32 256, 9
        %2016 = vbcast.lane.b32.xlu0 %v1802, %s2015
        %v2017 = vpop.permute.xlu0 %2016
        %s2019 = sor.u32 256, 1
        %2020 = vbcast.lane.b32.xlu0 %v1813, %s2019
        %v2021 = vpop.permute.xlu0 %2020
        %s2023 = sor.u32 256, 9
        %2024 = vbcast.lane.b32.xlu0 %v1813, %s2023
        %v2025 = vpop.permute.xlu0 %2024
        %s2027 = sor.u32 256, 1
        %2028 = vbcast.lane.b32.xlu0 %v1824, %s2027
        %v2029 = vpop.permute.xlu0 %2028
        %s2031 = sor.u32 256, 9
        %2032 = vbcast.lane.b32.xlu0 %v1824, %s2031
        %v2033 = vpop.permute.xlu0 %2032
        %s2035 = sor.u32 256, 1
        %2036 = vbcast.lane.b32.xlu0 %v1835, %s2035
        %v2037 = vpop.permute.xlu0 %2036
        %s2039 = sor.u32 256, 9
        %2040 = vbcast.lane.b32.xlu0 %v1835, %s2039
        %v2041 = vpop.permute.xlu0 %2040
        %s2043 = sor.u32 256, 1
        %2044 = vbcast.lane.b32.xlu0 %v1846, %s2043
        %v2045 = vpop.permute.xlu0 %2044
        %s2047 = sor.u32 256, 9
        %2048 = vbcast.lane.b32.xlu0 %v1846, %s2047
        %v2049 = vpop.permute.xlu0 %2048
        %v2050 = vlaneseq
        %v2051 = vshrl.u32 %v2050, 7
        %v2052 = vsub.s32 7, %v2051
        %v2053 = vrot.slane %v398, %v2052
        %v2054 = vmul.f32 %v1925, %v2053
        %v2055 = vmul.f32 %v1929, %v2053
        %v2056 = vmul.f32 %v1933, %v2053
        %v2057 = vmul.f32 %v1937, %v2053
        %v2058 = vmul.f32 %v1941, %v2053
        %v2059 = vmul.f32 %v1945, %v2053
        %v2060 = vmul.f32 %v1949, %v2053
        %v2061 = vmul.f32 %v1953, %v2053
        %v2062 = vmul.f32 %v1957, %v2053
        %v2063 = vmul.f32 %v1961, %v2053
        %v2064 = vmul.f32 %v1965, %v2053
        %v2065 = vmul.f32 %v1969, %v2053
        %v2066 = vmul.f32 %v1973, %v2053
        %v2067 = vmul.f32 %v1977, %v2053
        %v2068 = vmul.f32 %v1981, %v2053
        %v2069 = vmul.f32 %v1985, %v2053
        %v2070 = vmul.f32 %v1989, %v2053
        %v2071 = vmul.f32 %v1993, %v2053
        %v2072 = vmul.f32 %v1997, %v2053
        %v2073 = vmul.f32 %v2001, %v2053
        %v2074 = vmul.f32 %v2005, %v2053
        %v2075 = vmul.f32 %v2009, %v2053
        %v2076 = vmul.f32 %v2013, %v2053
        %v2077 = vmul.f32 %v2017, %v2053
        %v2078 = vmul.f32 %v2021, %v2053
        %v2079 = vmul.f32 %v2025, %v2053
        %v2080 = vmul.f32 %v2029, %v2053
        %v2081 = vmul.f32 %v2033, %v2053
        %v2082 = vmul.f32 %v2037, %v2053
        %v2083 = vmul.f32 %v2041, %v2053
        %v2084 = vmul.f32 %v2045, %v2053
        %v2085 = vmul.f32 %v2049, %v2053
        %v2086 = vadd.f32 %v1890, %v2054
        %v2087 = vadd.f32 %v1891, %v2055
        %v2088 = vadd.f32 %v1892, %v2056
        %v2089 = vadd.f32 %v1893, %v2057
        %v2090 = vadd.f32 %v1894, %v2058
        %v2091 = vadd.f32 %v1895, %v2059
        %v2092 = vadd.f32 %v1896, %v2060
        %v2093 = vadd.f32 %v1897, %v2061
        %v2094 = vadd.f32 %v1898, %v2062
        %v2095 = vadd.f32 %v1899, %v2063
        %v2096 = vadd.f32 %v1900, %v2064
        %v2097 = vadd.f32 %v1901, %v2065
        %v2098 = vadd.f32 %v1902, %v2066
        %v2099 = vadd.f32 %v1903, %v2067
        %v2100 = vadd.f32 %v1904, %v2068
        %v2101 = vadd.f32 %v1905, %v2069
        %v2102 = vadd.f32 %v1906, %v2070
        %v2103 = vadd.f32 %v1907, %v2071
        %v2104 = vadd.f32 %v1908, %v2072
        %v2105 = vadd.f32 %v1909, %v2073
        %v2106 = vadd.f32 %v1910, %v2074
        %v2107 = vadd.f32 %v1911, %v2075
        %v2108 = vadd.f32 %v1912, %v2076
        %v2109 = vadd.f32 %v1913, %v2077
        %v2110 = vadd.f32 %v1914, %v2078
        %v2111 = vadd.f32 %v1915, %v2079
        %v2112 = vadd.f32 %v1916, %v2080
        %v2113 = vadd.f32 %v1917, %v2081
        %v2114 = vadd.f32 %v1918, %v2082
        %v2115 = vadd.f32 %v1919, %v2083
        %v2116 = vadd.f32 %v1920, %v2084
        %v2117 = vadd.f32 %v1921, %v2085
        %s2119 = sor.u32 256, 2
        %2120 = vbcast.lane.b32.xlu0 %v1681, %s2119
        %v2121 = vpop.permute.xlu0 %2120
        %s2123 = sor.u32 256, 10
        %2124 = vbcast.lane.b32.xlu0 %v1681, %s2123
        %v2125 = vpop.permute.xlu0 %2124
        %s2127 = sor.u32 256, 2
        %2128 = vbcast.lane.b32.xlu0 %v1692, %s2127
        %v2129 = vpop.permute.xlu0 %2128
        %s2131 = sor.u32 256, 10
        %2132 = vbcast.lane.b32.xlu0 %v1692, %s2131
        %v2133 = vpop.permute.xlu0 %2132
        %s2135 = sor.u32 256, 2
        %2136 = vbcast.lane.b32.xlu0 %v1703, %s2135
        %v2137 = vpop.permute.xlu0 %2136
        %s2139 = sor.u32 256, 10
        %2140 = vbcast.lane.b32.xlu0 %v1703, %s2139
        %v2141 = vpop.permute.xlu0 %2140
        %s2143 = sor.u32 256, 2
        %2144 = vbcast.lane.b32.xlu0 %v1714, %s2143
        %v2145 = vpop.permute.xlu0 %2144
        %s2147 = sor.u32 256, 10
        %2148 = vbcast.lane.b32.xlu0 %v1714, %s2147
        %v2149 = vpop.permute.xlu0 %2148
        %s2151 = sor.u32 256, 2
        %2152 = vbcast.lane.b32.xlu0 %v1725, %s2151
        %v2153 = vpop.permute.xlu0 %2152
        %s2155 = sor.u32 256, 10
        %2156 = vbcast.lane.b32.xlu0 %v1725, %s2155
        %v2157 = vpop.permute.xlu0 %2156
        %s2159 = sor.u32 256, 2
        %2160 = vbcast.lane.b32.xlu0 %v1736, %s2159
        %v2161 = vpop.permute.xlu0 %2160
        %s2163 = sor.u32 256, 10
        %2164 = vbcast.lane.b32.xlu0 %v1736, %s2163
        %v2165 = vpop.permute.xlu0 %2164
        %s2167 = sor.u32 256, 2
        %2168 = vbcast.lane.b32.xlu0 %v1747, %s2167
        %v2169 = vpop.permute.xlu0 %2168
        %s2171 = sor.u32 256, 10
        %2172 = vbcast.lane.b32.xlu0 %v1747, %s2171
        %v2173 = vpop.permute.xlu0 %2172
        %s2175 = sor.u32 256, 2
        %2176 = vbcast.lane.b32.xlu0 %v1758, %s2175
        %v2177 = vpop.permute.xlu0 %2176
        %s2179 = sor.u32 256, 10
        %2180 = vbcast.lane.b32.xlu0 %v1758, %s2179
        %v2181 = vpop.permute.xlu0 %2180
        %s2183 = sor.u32 256, 2
        %2184 = vbcast.lane.b32.xlu0 %v1769, %s2183
        %v2185 = vpop.permute.xlu0 %2184
        %s2187 = sor.u32 256, 10
        %2188 = vbcast.lane.b32.xlu0 %v1769, %s2187
        %v2189 = vpop.permute.xlu0 %2188
        %s2191 = sor.u32 256, 2
        %2192 = vbcast.lane.b32.xlu0 %v1780, %s2191
        %v2193 = vpop.permute.xlu0 %2192
        %s2195 = sor.u32 256, 10
        %2196 = vbcast.lane.b32.xlu0 %v1780, %s2195
        %v2197 = vpop.permute.xlu0 %2196
        %s2199 = sor.u32 256, 2
        %2200 = vbcast.lane.b32.xlu0 %v1791, %s2199
        %v2201 = vpop.permute.xlu0 %2200
        %s2203 = sor.u32 256, 10
        %2204 = vbcast.lane.b32.xlu0 %v1791, %s2203
        %v2205 = vpop.permute.xlu0 %2204
        %s2207 = sor.u32 256, 2
        %2208 = vbcast.lane.b32.xlu0 %v1802, %s2207
        %v2209 = vpop.permute.xlu0 %2208
        %s2211 = sor.u32 256, 10
        %2212 = vbcast.lane.b32.xlu0 %v1802, %s2211
        %v2213 = vpop.permute.xlu0 %2212
        %s2215 = sor.u32 256, 2
        %2216 = vbcast.lane.b32.xlu0 %v1813, %s2215
        %v2217 = vpop.permute.xlu0 %2216
        %s2219 = sor.u32 256, 10
        %2220 = vbcast.lane.b32.xlu0 %v1813, %s2219
        %v2221 = vpop.permute.xlu0 %2220
        %s2223 = sor.u32 256, 2
        %2224 = vbcast.lane.b32.xlu0 %v1824, %s2223
        %v2225 = vpop.permute.xlu0 %2224
        %s2227 = sor.u32 256, 10
        %2228 = vbcast.lane.b32.xlu0 %v1824, %s2227
        %v2229 = vpop.permute.xlu0 %2228
        %s2231 = sor.u32 256, 2
        %2232 = vbcast.lane.b32.xlu0 %v1835, %s2231
        %v2233 = vpop.permute.xlu0 %2232
        %s2235 = sor.u32 256, 10
        %2236 = vbcast.lane.b32.xlu0 %v1835, %s2235
        %v2237 = vpop.permute.xlu0 %2236
        %s2239 = sor.u32 256, 2
        %2240 = vbcast.lane.b32.xlu0 %v1846, %s2239
        %v2241 = vpop.permute.xlu0 %2240
        %s2243 = sor.u32 256, 10
        %2244 = vbcast.lane.b32.xlu0 %v1846, %s2243
        %v2245 = vpop.permute.xlu0 %2244
        %v2246 = vlaneseq
        %v2247 = vshrl.u32 %v2246, 7
        %v2248 = vsub.s32 0, %v2247
        %v2249 = vrot.slane %v399, %v2248
        %v2250 = vmul.f32 %v2121, %v2249
        %v2251 = vmul.f32 %v2125, %v2249
        %v2252 = vmul.f32 %v2129, %v2249
        %v2253 = vmul.f32 %v2133, %v2249
        %v2254 = vmul.f32 %v2137, %v2249
        %v2255 = vmul.f32 %v2141, %v2249
        %v2256 = vmul.f32 %v2145, %v2249
        %v2257 = vmul.f32 %v2149, %v2249
        %v2258 = vmul.f32 %v2153, %v2249
        %v2259 = vmul.f32 %v2157, %v2249
        %v2260 = vmul.f32 %v2161, %v2249
        %v2261 = vmul.f32 %v2165, %v2249
        %v2262 = vmul.f32 %v2169, %v2249
        %v2263 = vmul.f32 %v2173, %v2249
        %v2264 = vmul.f32 %v2177, %v2249
        %v2265 = vmul.f32 %v2181, %v2249
        %v2266 = vmul.f32 %v2185, %v2249
        %v2267 = vmul.f32 %v2189, %v2249
        %v2268 = vmul.f32 %v2193, %v2249
        %v2269 = vmul.f32 %v2197, %v2249
        %v2270 = vmul.f32 %v2201, %v2249
        %v2271 = vmul.f32 %v2205, %v2249
        %v2272 = vmul.f32 %v2209, %v2249
        %v2273 = vmul.f32 %v2213, %v2249
        %v2274 = vmul.f32 %v2217, %v2249
        %v2275 = vmul.f32 %v2221, %v2249
        %v2276 = vmul.f32 %v2225, %v2249
        %v2277 = vmul.f32 %v2229, %v2249
        %v2278 = vmul.f32 %v2233, %v2249
        %v2279 = vmul.f32 %v2237, %v2249
        %v2280 = vmul.f32 %v2241, %v2249
        %v2281 = vmul.f32 %v2245, %v2249
        %v2282 = vadd.f32 %v2086, %v2250
        %v2283 = vadd.f32 %v2087, %v2251
        %v2284 = vadd.f32 %v2088, %v2252
        %v2285 = vadd.f32 %v2089, %v2253
        %v2286 = vadd.f32 %v2090, %v2254
        %v2287 = vadd.f32 %v2091, %v2255
        %v2288 = vadd.f32 %v2092, %v2256
        %v2289 = vadd.f32 %v2093, %v2257
        %v2290 = vadd.f32 %v2094, %v2258
        %v2291 = vadd.f32 %v2095, %v2259
        %v2292 = vadd.f32 %v2096, %v2260
        %v2293 = vadd.f32 %v2097, %v2261
        %v2294 = vadd.f32 %v2098, %v2262
        %v2295 = vadd.f32 %v2099, %v2263
        %v2296 = vadd.f32 %v2100, %v2264
        %v2297 = vadd.f32 %v2101, %v2265
        %v2298 = vadd.f32 %v2102, %v2266
        %v2299 = vadd.f32 %v2103, %v2267
        %v2300 = vadd.f32 %v2104, %v2268
        %v2301 = vadd.f32 %v2105, %v2269
        %v2302 = vadd.f32 %v2106, %v2270
        %v2303 = vadd.f32 %v2107, %v2271
        %v2304 = vadd.f32 %v2108, %v2272
        %v2305 = vadd.f32 %v2109, %v2273
        %v2306 = vadd.f32 %v2110, %v2274
        %v2307 = vadd.f32 %v2111, %v2275
        %v2308 = vadd.f32 %v2112, %v2276
        %v2309 = vadd.f32 %v2113, %v2277
        %v2310 = vadd.f32 %v2114, %v2278
        %v2311 = vadd.f32 %v2115, %v2279
        %v2312 = vadd.f32 %v2116, %v2280
        %v2313 = vadd.f32 %v2117, %v2281
        %v2314 = vld [vmem:[%s2] sm:$0x1]
        %v2316 = vlaneseq
        %v2317 = vshrl.u32 %v2316, 7
        %v2318 = vsub.s32 0, %v2317
        %v2319 = vrot.slane %v2314, %v2318
        %v2321 = vadd.f32 %v2282, %v2319
        %v2322 = vadd.f32 %v2283, %v2319
        %v2323 = vadd.f32 %v2284, %v2319
        %v2324 = vadd.f32 %v2285, %v2319
        %v2325 = vadd.f32 %v2286, %v2319
        %v2326 = vadd.f32 %v2287, %v2319
        %v2327 = vadd.f32 %v2288, %v2319
        %v2328 = vadd.f32 %v2289, %v2319
        %v2329 = vadd.f32 %v2290, %v2319
        %v2330 = vadd.f32 %v2291, %v2319
        %v2331 = vadd.f32 %v2292, %v2319
        %v2332 = vadd.f32 %v2293, %v2319
        %v2333 = vadd.f32 %v2294, %v2319
        %v2334 = vadd.f32 %v2295, %v2319
        %v2335 = vadd.f32 %v2296, %v2319
        %v2336 = vadd.f32 %v2297, %v2319
        %v2337 = vadd.f32 %v2298, %v2319
        %v2338 = vadd.f32 %v2299, %v2319
        %v2339 = vadd.f32 %v2300, %v2319
        %v2340 = vadd.f32 %v2301, %v2319
        %v2341 = vadd.f32 %v2302, %v2319
        %v2342 = vadd.f32 %v2303, %v2319
        %v2343 = vadd.f32 %v2304, %v2319
        %v2344 = vadd.f32 %v2305, %v2319
        %v2345 = vadd.f32 %v2306, %v2319
        %v2346 = vadd.f32 %v2307, %v2319
        %v2347 = vadd.f32 %v2308, %v2319
        %v2348 = vadd.f32 %v2309, %v2319
        %v2349 = vadd.f32 %v2310, %v2319
        %v2350 = vadd.f32 %v2311, %v2319
        %v2351 = vadd.f32 %v2312, %v2319
        %v2352 = vadd.f32 %v2313, %v2319
        %v2353 = vmax.f32 %v2321, 0.0
        %v2354 = vmax.f32 %v2322, 0.0
        %v2355 = vmax.f32 %v2323, 0.0
        %v2356 = vmax.f32 %v2324, 0.0
        %v2357 = vmax.f32 %v2325, 0.0
        %v2358 = vmax.f32 %v2326, 0.0
        %v2359 = vmax.f32 %v2327, 0.0
        %v2360 = vmax.f32 %v2328, 0.0
        %v2361 = vmax.f32 %v2329, 0.0
        %v2362 = vmax.f32 %v2330, 0.0
        %v2363 = vmax.f32 %v2331, 0.0
        %v2364 = vmax.f32 %v2332, 0.0
        %v2365 = vmax.f32 %v2333, 0.0
        %v2366 = vmax.f32 %v2334, 0.0
        %v2367 = vmax.f32 %v2335, 0.0
        %v2368 = vmax.f32 %v2336, 0.0
        %v2369 = vmax.f32 %v2337, 0.0
        %v2370 = vmax.f32 %v2338, 0.0
        %v2371 = vmax.f32 %v2339, 0.0
        %v2372 = vmax.f32 %v2340, 0.0
        %v2373 = vmax.f32 %v2341, 0.0
        %v2374 = vmax.f32 %v2342, 0.0
        %v2375 = vmax.f32 %v2343, 0.0
        %v2376 = vmax.f32 %v2344, 0.0
        %v2377 = vmax.f32 %v2345, 0.0
        %v2378 = vmax.f32 %v2346, 0.0
        %v2379 = vmax.f32 %v2347, 0.0
        %v2380 = vmax.f32 %v2348, 0.0
        %v2381 = vmax.f32 %v2349, 0.0
        %v2382 = vmax.f32 %v2350, 0.0
        %v2383 = vmax.f32 %v2351, 0.0
        %v2384 = vmax.f32 %v2352, 0.0
        %v2385 = vld [vmem:[%s3] sm:$0x1]
        %v2387 = vlaneseq
        %v2388 = vshrl.u32 %v2387, 7
        %v2389 = vsub.s32 0, %v2388
        %v2390 = vrot.slane %v2385, %v2389
        %v2392 = vmul.f32 %v2353, %v2390
        %v2393 = vmul.f32 %v2354, %v2390
        %v2394 = vmul.f32 %v2355, %v2390
        %v2395 = vmul.f32 %v2356, %v2390
        %v2396 = vmul.f32 %v2357, %v2390
        %v2397 = vmul.f32 %v2358, %v2390
        %v2398 = vmul.f32 %v2359, %v2390
        %v2399 = vmul.f32 %v2360, %v2390
        %v2400 = vmul.f32 %v2361, %v2390
        %v2401 = vmul.f32 %v2362, %v2390
        %v2402 = vmul.f32 %v2363, %v2390
        %v2403 = vmul.f32 %v2364, %v2390
        %v2404 = vmul.f32 %v2365, %v2390
        %v2405 = vmul.f32 %v2366, %v2390
        %v2406 = vmul.f32 %v2367, %v2390
        %v2407 = vmul.f32 %v2368, %v2390
        %v2408 = vmul.f32 %v2369, %v2390
        %v2409 = vmul.f32 %v2370, %v2390
        %v2410 = vmul.f32 %v2371, %v2390
        %v2411 = vmul.f32 %v2372, %v2390
        %v2412 = vmul.f32 %v2373, %v2390
        %v2413 = vmul.f32 %v2374, %v2390
        %v2414 = vmul.f32 %v2375, %v2390
        %v2415 = vmul.f32 %v2376, %v2390
        %v2416 = vmul.f32 %v2377, %v2390
        %v2417 = vmul.f32 %v2378, %v2390
        %v2418 = vmul.f32 %v2379, %v2390
        %v2419 = vmul.f32 %v2380, %v2390
        %v2420 = vmul.f32 %v2381, %v2390
        %v2421 = vmul.f32 %v2382, %v2390
        %v2422 = vmul.f32 %v2383, %v2390
        %v2423 = vmul.f32 %v2384, %v2390
        %v2424 = vld [vmem:[%s4] sm:$0x1]
        %v2426 = vlaneseq
        %v2427 = vshrl.u32 %v2426, 7
        %v2428 = vsub.s32 0, %v2427
        %v2429 = vrot.slane %v2424, %v2428
        %v2431 = vadd.f32 %v2392, %v2429
        %v2432 = vadd.f32 %v2393, %v2429
        %v2433 = vadd.f32 %v2394, %v2429
        %v2434 = vadd.f32 %v2395, %v2429
        %v2435 = vadd.f32 %v2396, %v2429
        %v2436 = vadd.f32 %v2397, %v2429
        %v2437 = vadd.f32 %v2398, %v2429
        %v2438 = vadd.f32 %v2399, %v2429
        %v2439 = vadd.f32 %v2400, %v2429
        %v2440 = vadd.f32 %v2401, %v2429
        %v2441 = vadd.f32 %v2402, %v2429
        %v2442 = vadd.f32 %v2403, %v2429
        %v2443 = vadd.f32 %v2404, %v2429
        %v2444 = vadd.f32 %v2405, %v2429
        %v2445 = vadd.f32 %v2406, %v2429
        %v2446 = vadd.f32 %v2407, %v2429
        %v2447 = vadd.f32 %v2408, %v2429
        %v2448 = vadd.f32 %v2409, %v2429
        %v2449 = vadd.f32 %v2410, %v2429
        %v2450 = vadd.f32 %v2411, %v2429
        %v2451 = vadd.f32 %v2412, %v2429
        %v2452 = vadd.f32 %v2413, %v2429
        %v2453 = vadd.f32 %v2414, %v2429
        %v2454 = vadd.f32 %v2415, %v2429
        %v2455 = vadd.f32 %v2416, %v2429
        %v2456 = vadd.f32 %v2417, %v2429
        %v2457 = vadd.f32 %v2418, %v2429
        %v2458 = vadd.f32 %v2419, %v2429
        %v2459 = vadd.f32 %v2420, %v2429
        %v2460 = vadd.f32 %v2421, %v2429
        %v2461 = vadd.f32 %v2422, %v2429
        %v2462 = vadd.f32 %v2423, %v2429
        %v2463 = vmax.f32 %v2431, %v2433
        %v2464 = vmax.f32 %v2432, %v2434
        %v2465 = vmax.f32 %v2435, %v2437
        %v2466 = vmax.f32 %v2436, %v2438
        %v2467 = vmax.f32 %v2439, %v2441
        %v2468 = vmax.f32 %v2440, %v2442
        %v2469 = vmax.f32 %v2443, %v2445
        %v2470 = vmax.f32 %v2444, %v2446
        %v2471 = vmax.f32 %v2447, %v2449
        %v2472 = vmax.f32 %v2448, %v2450
        %v2473 = vmax.f32 %v2451, %v2453
        %v2474 = vmax.f32 %v2452, %v2454
        %v2475 = vmax.f32 %v2455, %v2457
        %v2476 = vmax.f32 %v2456, %v2458
        %v2477 = vmax.f32 %v2459, %v2461
        %v2478 = vmax.f32 %v2460, %v2462
        %v2495 = vcombine.high %v2463, %v2463
        %v2497 = vunpack.c.l.s4 1983009808
        %v2498 = vunpack.c.0.s8 %v2497
        %v2499 = vlaneseq
        %v2500 = vshrl.u32 %v2499, 7
        %v2501 = vsub.s32 %v2498, %v2500
        %v2502 = vrot.slane %v2463, %v2501
        %v2504 = vunpack.c.l.s4 1983009808
        %v2505 = vunpack.c.0.s8 %v2504
        %v2506 = vlaneseq
        %v2507 = vshrl.u32 %v2506, 7
        %v2508 = vsub.s32 %v2505, %v2507
        %v2509 = vrot.slane %v2495, %v2508
        %v2510 = vcombine.high %v2502, %v2502
        %v2511 = vcombine.high %v2509, %v2509
        %v2512 = vcombine.high %v2464, %v2464
        %v2514 = vunpack.c.l.s4 1983009808
        %v2515 = vunpack.c.0.s8 %v2514
        %v2516 = vlaneseq
        %v2517 = vshrl.u32 %v2516, 7
        %v2518 = vsub.s32 %v2515, %v2517
        %v2519 = vrot.slane %v2464, %v2518
        %v2521 = vunpack.c.l.s4 1983009808
        %v2522 = vunpack.c.0.s8 %v2521
        %v2523 = vlaneseq
        %v2524 = vshrl.u32 %v2523, 7
        %v2525 = vsub.s32 %v2522, %v2524
        %v2526 = vrot.slane %v2512, %v2525
        %v2527 = vcombine.high %v2519, %v2519
        %v2528 = vcombine.high %v2526, %v2526
        %v2529 = vcombine.high %v2465, %v2465
        %v2531 = vunpack.c.l.s4 1983009808
        %v2532 = vunpack.c.0.s8 %v2531
        %v2533 = vlaneseq
        %v2534 = vshrl.u32 %v2533, 7
        %v2535 = vsub.s32 %v2532, %v2534
        %v2536 = vrot.slane %v2465, %v2535
        %v2538 = vunpack.c.l.s4 1983009808
        %v2539 = vunpack.c.0.s8 %v2538
        %v2540 = vlaneseq
        %v2541 = vshrl.u32 %v2540, 7
        %v2542 = vsub.s32 %v2539, %v2541
        %v2543 = vrot.slane %v2529, %v2542
        %v2544 = vcombine.high %v2536, %v2536
        %v2545 = vcombine.high %v2543, %v2543
        %v2546 = vcombine.high %v2466, %v2466
        %v2548 = vunpack.c.l.s4 1983009808
        %v2549 = vunpack.c.0.s8 %v2548
        %v2550 = vlaneseq
        %v2551 = vshrl.u32 %v2550, 7
        %v2552 = vsub.s32 %v2549, %v2551
        %v2553 = vrot.slane %v2466, %v2552
        %v2555 = vunpack.c.l.s4 1983009808
        %v2556 = vunpack.c.0.s8 %v2555
        %v2557 = vlaneseq
        %v2558 = vshrl.u32 %v2557, 7
        %v2559 = vsub.s32 %v2556, %v2558
        %v2560 = vrot.slane %v2546, %v2559
        %v2561 = vcombine.high %v2553, %v2553
        %v2562 = vcombine.high %v2560, %v2560
        %v2563 = vcombine.high %v2467, %v2467
        %v2565 = vunpack.c.l.s4 1983009808
        %v2566 = vunpack.c.0.s8 %v2565
        %v2567 = vlaneseq
        %v2568 = vshrl.u32 %v2567, 7
        %v2569 = vsub.s32 %v2566, %v2568
        %v2570 = vrot.slane %v2467, %v2569
        %v2572 = vunpack.c.l.s4 1983009808
        %v2573 = vunpack.c.0.s8 %v2572
        %v2574 = vlaneseq
        %v2575 = vshrl.u32 %v2574, 7
        %v2576 = vsub.s32 %v2573, %v2575
        %v2577 = vrot.slane %v2563, %v2576
        %v2578 = vcombine.high %v2570, %v2570
        %v2579 = vcombine.high %v2577, %v2577
        %v2580 = vcombine.high %v2468, %v2468
        %v2582 = vunpack.c.l.s4 1983009808
        %v2583 = vunpack.c.0.s8 %v2582
        %v2584 = vlaneseq
        %v2585 = vshrl.u32 %v2584, 7
        %v2586 = vsub.s32 %v2583, %v2585
        %v2587 = vrot.slane %v2468, %v2586
        %v2589 = vunpack.c.l.s4 1983009808
        %v2590 = vunpack.c.0.s8 %v2589
        %v2591 = vlaneseq
        %v2592 = vshrl.u32 %v2591, 7
        %v2593 = vsub.s32 %v2590, %v2592
        %v2594 = vrot.slane %v2580, %v2593
        %v2595 = vcombine.high %v2587, %v2587
        %v2596 = vcombine.high %v2594, %v2594
        %v2597 = vcombine.high %v2469, %v2469
        %v2599 = vunpack.c.l.s4 1983009808
        %v2600 = vunpack.c.0.s8 %v2599
        %v2601 = vlaneseq
        %v2602 = vshrl.u32 %v2601, 7
        %v2603 = vsub.s32 %v2600, %v2602
        %v2604 = vrot.slane %v2469, %v2603
        %v2606 = vunpack.c.l.s4 1983009808
        %v2607 = vunpack.c.0.s8 %v2606
        %v2608 = vlaneseq
        %v2609 = vshrl.u32 %v2608, 7
        %v2610 = vsub.s32 %v2607, %v2609
        %v2611 = vrot.slane %v2597, %v2610
        %v2612 = vcombine.high %v2604, %v2604
        %v2613 = vcombine.high %v2611, %v2611
        %v2614 = vcombine.high %v2470, %v2470
        %v2616 = vunpack.c.l.s4 1983009808
        %v2617 = vunpack.c.0.s8 %v2616
        %v2618 = vlaneseq
        %v2619 = vshrl.u32 %v2618, 7
        %v2620 = vsub.s32 %v2617, %v2619
        %v2621 = vrot.slane %v2470, %v2620
        %v2623 = vunpack.c.l.s4 1983009808
        %v2624 = vunpack.c.0.s8 %v2623
        %v2625 = vlaneseq
        %v2626 = vshrl.u32 %v2625, 7
        %v2627 = vsub.s32 %v2624, %v2626
        %v2628 = vrot.slane %v2614, %v2627
        %v2629 = vcombine.high %v2621, %v2621
        %v2630 = vcombine.high %v2628, %v2628
        %v2631 = vcombine.high %v2471, %v2471
        %v2633 = vunpack.c.l.s4 1983009808
        %v2634 = vunpack.c.0.s8 %v2633
        %v2635 = vlaneseq
        %v2636 = vshrl.u32 %v2635, 7
        %v2637 = vsub.s32 %v2634, %v2636
        %v2638 = vrot.slane %v2471, %v2637
        %v2640 = vunpack.c.l.s4 1983009808
        %v2641 = vunpack.c.0.s8 %v2640
        %v2642 = vlaneseq
        %v2643 = vshrl.u32 %v2642, 7
        %v2644 = vsub.s32 %v2641, %v2643
        %v2645 = vrot.slane %v2631, %v2644
        %v2646 = vcombine.high %v2638, %v2638
        %v2647 = vcombine.high %v2645, %v2645
        %v2648 = vcombine.high %v2472, %v2472
        %v2650 = vunpack.c.l.s4 1983009808
        %v2651 = vunpack.c.0.s8 %v2650
        %v2652 = vlaneseq
        %v2653 = vshrl.u32 %v2652, 7
        %v2654 = vsub.s32 %v2651, %v2653
        %v2655 = vrot.slane %v2472, %v2654
        %v2657 = vunpack.c.l.s4 1983009808
        %v2658 = vunpack.c.0.s8 %v2657
        %v2659 = vlaneseq
        %v2660 = vshrl.u32 %v2659, 7
        %v2661 = vsub.s32 %v2658, %v2660
        %v2662 = vrot.slane %v2648, %v2661
        %v2663 = vcombine.high %v2655, %v2655
        %v2664 = vcombine.high %v2662, %v2662
        %v2665 = vcombine.high %v2473, %v2473
        %v2667 = vunpack.c.l.s4 1983009808
        %v2668 = vunpack.c.0.s8 %v2667
        %v2669 = vlaneseq
        %v2670 = vshrl.u32 %v2669, 7
        %v2671 = vsub.s32 %v2668, %v2670
        %v2672 = vrot.slane %v2473, %v2671
        %v2674 = vunpack.c.l.s4 1983009808
        %v2675 = vunpack.c.0.s8 %v2674
        %v2676 = vlaneseq
        %v2677 = vshrl.u32 %v2676, 7
        %v2678 = vsub.s32 %v2675, %v2677
        %v2679 = vrot.slane %v2665, %v2678
        %v2680 = vcombine.high %v2672, %v2672
        %v2681 = vcombine.high %v2679, %v2679
        %v2682 = vcombine.high %v2474, %v2474
        %v2684 = vunpack.c.l.s4 1983009808
        %v2685 = vunpack.c.0.s8 %v2684
        %v2686 = vlaneseq
        %v2687 = vshrl.u32 %v2686, 7
        %v2688 = vsub.s32 %v2685, %v2687
        %v2689 = vrot.slane %v2474, %v2688
        %v2691 = vunpack.c.l.s4 1983009808
        %v2692 = vunpack.c.0.s8 %v2691
        %v2693 = vlaneseq
        %v2694 = vshrl.u32 %v2693, 7
        %v2695 = vsub.s32 %v2692, %v2694
        %v2696 = vrot.slane %v2682, %v2695
        %v2697 = vcombine.high %v2689, %v2689
        %v2698 = vcombine.high %v2696, %v2696
        %v2699 = vcombine.high %v2475, %v2475
        %v2701 = vunpack.c.l.s4 1983009808
        %v2702 = vunpack.c.0.s8 %v2701
        %v2703 = vlaneseq
        %v2704 = vshrl.u32 %v2703, 7
        %v2705 = vsub.s32 %v2702, %v2704
        %v2706 = vrot.slane %v2475, %v2705
        %v2708 = vunpack.c.l.s4 1983009808
        %v2709 = vunpack.c.0.s8 %v2708
        %v2710 = vlaneseq
        %v2711 = vshrl.u32 %v2710, 7
        %v2712 = vsub.s32 %v2709, %v2711
        %v2713 = vrot.slane %v2699, %v2712
        %v2714 = vcombine.high %v2706, %v2706
        %v2715 = vcombine.high %v2713, %v2713
        %v2716 = vcombine.high %v2476, %v2476
        %v2718 = vunpack.c.l.s4 1983009808
        %v2719 = vunpack.c.0.s8 %v2718
        %v2720 = vlaneseq
        %v2721 = vshrl.u32 %v2720, 7
        %v2722 = vsub.s32 %v2719, %v2721
        %v2723 = vrot.slane %v2476, %v2722
        %v2725 = vunpack.c.l.s4 1983009808
        %v2726 = vunpack.c.0.s8 %v2725
        %v2727 = vlaneseq
        %v2728 = vshrl.u32 %v2727, 7
        %v2729 = vsub.s32 %v2726, %v2728
        %v2730 = vrot.slane %v2716, %v2729
        %v2731 = vcombine.high %v2723, %v2723
        %v2732 = vcombine.high %v2730, %v2730
        %v2733 = vcombine.high %v2477, %v2477
        %v2735 = vunpack.c.l.s4 1983009808
        %v2736 = vunpack.c.0.s8 %v2735
        %v2737 = vlaneseq
        %v2738 = vshrl.u32 %v2737, 7
        %v2739 = vsub.s32 %v2736, %v2738
        %v2740 = vrot.slane %v2477, %v2739
        %v2742 = vunpack.c.l.s4 1983009808
        %v2743 = vunpack.c.0.s8 %v2742
        %v2744 = vlaneseq
        %v2745 = vshrl.u32 %v2744, 7
        %v2746 = vsub.s32 %v2743, %v2745
        %v2747 = vrot.slane %v2733, %v2746
        %v2748 = vcombine.high %v2740, %v2740
        %v2749 = vcombine.high %v2747, %v2747
        %v2750 = vcombine.high %v2478, %v2478
        %v2752 = vunpack.c.l.s4 1983009808
        %v2753 = vunpack.c.0.s8 %v2752
        %v2754 = vlaneseq
        %v2755 = vshrl.u32 %v2754, 7
        %v2756 = vsub.s32 %v2753, %v2755
        %v2757 = vrot.slane %v2478, %v2756
        %v2759 = vunpack.c.l.s4 1983009808
        %v2760 = vunpack.c.0.s8 %v2759
        %v2761 = vlaneseq
        %v2762 = vshrl.u32 %v2761, 7
        %v2763 = vsub.s32 %v2760, %v2762
        %v2764 = vrot.slane %v2750, %v2763
        %v2765 = vcombine.high %v2757, %v2757
        %v2766 = vcombine.high %v2764, %v2764
        %v2831 = vrot.slane %v2502, 7
        %v2832 = vrot.slane %v2831, 2
        %v2833 = vrot.slane %v2510, 7
        %v2834 = vrot.slane %v2833, 2
        %v2835 = vrot.slane %v2509, 7
        %v2836 = vrot.slane %v2835, 2
        %v2837 = vrot.slane %v2511, 7
        %v2838 = vrot.slane %v2837, 2
        %v2839 = vrot.slane %v2519, 7
        %v2840 = vrot.slane %v2839, 2
        %v2841 = vrot.slane %v2527, 7
        %v2842 = vrot.slane %v2841, 2
        %v2843 = vrot.slane %v2526, 7
        %v2844 = vrot.slane %v2843, 2
        %v2845 = vrot.slane %v2528, 7
        %v2846 = vrot.slane %v2845, 2
        %v2847 = vrot.slane %v2536, 7
        %v2848 = vrot.slane %v2847, 2
        %v2849 = vrot.slane %v2544, 7
        %v2850 = vrot.slane %v2849, 2
        %v2851 = vrot.slane %v2543, 7
        %v2852 = vrot.slane %v2851, 2
        %v2853 = vrot.slane %v2545, 7
        %v2854 = vrot.slane %v2853, 2
        %v2855 = vrot.slane %v2553, 7
        %v2856 = vrot.slane %v2855, 2
        %v2857 = vrot.slane %v2561, 7
        %v2858 = vrot.slane %v2857, 2
        %v2859 = vrot.slane %v2560, 7
        %v2860 = vrot.slane %v2859, 2
        %v2861 = vrot.slane %v2562, 7
        %v2862 = vrot.slane %v2861, 2
        %v2863 = vrot.slane %v2570, 7
        %v2864 = vrot.slane %v2863, 2
        %v2865 = vrot.slane %v2578, 7
        %v2866 = vrot.slane %v2865, 2
        %v2867 = vrot.slane %v2577, 7
        %v2868 = vrot.slane %v2867, 2
        %v2869 = vrot.slane %v2579, 7
        %v2870 = vrot.slane %v2869, 2
        %v2871 = vrot.slane %v2587, 7
        %v2872 = vrot.slane %v2871, 2
        %v2873 = vrot.slane %v2595, 7
        %v2874 = vrot.slane %v2873, 2
        %v2875 = vrot.slane %v2594, 7
        %v2876 = vrot.slane %v2875, 2
        %v2877 = vrot.slane %v2596, 7
        %v2878 = vrot.slane %v2877, 2
        %v2879 = vrot.slane %v2604, 7
        %v2880 = vrot.slane %v2879, 2
        %v2881 = vrot.slane %v2612, 7
        %v2882 = vrot.slane %v2881, 2
        %v2883 = vrot.slane %v2611, 7
        %v2884 = vrot.slane %v2883, 2
        %v2885 = vrot.slane %v2613, 7
        %v2886 = vrot.slane %v2885, 2
        %v2887 = vrot.slane %v2621, 7
        %v2888 = vrot.slane %v2887, 2
        %v2889 = vrot.slane %v2629, 7
        %v2890 = vrot.slane %v2889, 2
        %v2891 = vrot.slane %v2628, 7
        %v2892 = vrot.slane %v2891, 2
        %v2893 = vrot.slane %v2630, 7
        %v2894 = vrot.slane %v2893, 2
        %v2895 = vrot.slane %v2638, 7
        %v2896 = vrot.slane %v2895, 2
        %v2897 = vrot.slane %v2646, 7
        %v2898 = vrot.slane %v2897, 2
        %v2899 = vrot.slane %v2645, 7
        %v2900 = vrot.slane %v2899, 2
        %v2901 = vrot.slane %v2647, 7
        %v2902 = vrot.slane %v2901, 2
        %v2903 = vrot.slane %v2655, 7
        %v2904 = vrot.slane %v2903, 2
        %v2905 = vrot.slane %v2663, 7
        %v2906 = vrot.slane %v2905, 2
        %v2907 = vrot.slane %v2662, 7
        %v2908 = vrot.slane %v2907, 2
        %v2909 = vrot.slane %v2664, 7
        %v2910 = vrot.slane %v2909, 2
        %v2911 = vrot.slane %v2672, 7
        %v2912 = vrot.slane %v2911, 2
        %v2913 = vrot.slane %v2680, 7
        %v2914 = vrot.slane %v2913, 2
        %v2915 = vrot.slane %v2679, 7
        %v2916 = vrot.slane %v2915, 2
        %v2917 = vrot.slane %v2681, 7
        %v2918 = vrot.slane %v2917, 2
        %v2919 = vrot.slane %v2689, 7
        %v2920 = vrot.slane %v2919, 2
        %v2921 = vrot.slane %v2697, 7
        %v2922 = vrot.slane %v2921, 2
        %v2923 = vrot.slane %v2696, 7
        %v2924 = vrot.slane %v2923, 2
        %v2925 = vrot.slane %v2698, 7
        %v2926 = vrot.slane %v2925, 2
        %v2927 = vrot.slane %v2706, 7
        %v2928 = vrot.slane %v2927, 2
        %v2929 = vrot.slane %v2714, 7
        %v2930 = vrot.slane %v2929, 2
        %v2931 = vrot.slane %v2713, 7
        %v2932 = vrot.slane %v2931, 2
        %v2933 = vrot.slane %v2715, 7
        %v2934 = vrot.slane %v2933, 2
        %v2935 = vrot.slane %v2723, 7
        %v2936 = vrot.slane %v2935, 2
        %v2937 = vrot.slane %v2731, 7
        %v2938 = vrot.slane %v2937, 2
        %v2939 = vrot.slane %v2730, 7
        %v2940 = vrot.slane %v2939, 2
        %v2941 = vrot.slane %v2732, 7
        %v2942 = vrot.slane %v2941, 2
        %v2943 = vrot.slane %v2740, 7
        %v2944 = vrot.slane %v2943, 2
        %v2945 = vrot.slane %v2748, 7
        %v2946 = vrot.slane %v2945, 2
        %v2947 = vrot.slane %v2747, 7
        %v2948 = vrot.slane %v2947, 2
        %v2949 = vrot.slane %v2749, 7
        %v2950 = vrot.slane %v2949, 2
        %v2951 = vrot.slane %v2757, 7
        %v2952 = vrot.slane %v2951, 2
        %v2953 = vrot.slane %v2765, 7
        %v2954 = vrot.slane %v2953, 2
        %v2955 = vrot.slane %v2764, 7
        %v2956 = vrot.slane %v2955, 2
        %v2957 = vrot.slane %v2766, 7
        %v2958 = vrot.slane %v2957, 2
        %v3023 = vmax.f32 %v2502, %v2832
        %v3024 = vmax.f32 %v2510, %v2834
        %v3025 = vmax.f32 %v2509, %v2836
        %v3026 = vmax.f32 %v2511, %v2838
        %v3027 = vmax.f32 %v2519, %v2840
        %v3028 = vmax.f32 %v2527, %v2842
        %v3029 = vmax.f32 %v2526, %v2844
        %v3030 = vmax.f32 %v2528, %v2846
        %v3031 = vmax.f32 %v2536, %v2848
        %v3032 = vmax.f32 %v2544, %v2850
        %v3033 = vmax.f32 %v2543, %v2852
        %v3034 = vmax.f32 %v2545, %v2854
        %v3035 = vmax.f32 %v2553, %v2856
        %v3036 = vmax.f32 %v2561, %v2858
        %v3037 = vmax.f32 %v2560, %v2860
        %v3038 = vmax.f32 %v2562, %v2862
        %v3039 = vmax.f32 %v2570, %v2864
        %v3040 = vmax.f32 %v2578, %v2866
        %v3041 = vmax.f32 %v2577, %v2868
        %v3042 = vmax.f32 %v2579, %v2870
        %v3043 = vmax.f32 %v2587, %v2872
        %v3044 = vmax.f32 %v2595, %v2874
        %v3045 = vmax.f32 %v2594, %v2876
        %v3046 = vmax.f32 %v2596, %v2878
        %v3047 = vmax.f32 %v2604, %v2880
        %v3048 = vmax.f32 %v2612, %v2882
        %v3049 = vmax.f32 %v2611, %v2884
        %v3050 = vmax.f32 %v2613, %v2886
        %v3051 = vmax.f32 %v2621, %v2888
        %v3052 = vmax.f32 %v2629, %v2890
        %v3053 = vmax.f32 %v2628, %v2892
        %v3054 = vmax.f32 %v2630, %v2894
        %v3055 = vmax.f32 %v2638, %v2896
        %v3056 = vmax.f32 %v2646, %v2898
        %v3057 = vmax.f32 %v2645, %v2900
        %v3058 = vmax.f32 %v2647, %v2902
        %v3059 = vmax.f32 %v2655, %v2904
        %v3060 = vmax.f32 %v2663, %v2906
        %v3061 = vmax.f32 %v2662, %v2908
        %v3062 = vmax.f32 %v2664, %v2910
        %v3063 = vmax.f32 %v2672, %v2912
        %v3064 = vmax.f32 %v2680, %v2914
        %v3065 = vmax.f32 %v2679, %v2916
        %v3066 = vmax.f32 %v2681, %v2918
        %v3067 = vmax.f32 %v2689, %v2920
        %v3068 = vmax.f32 %v2697, %v2922
        %v3069 = vmax.f32 %v2696, %v2924
        %v3070 = vmax.f32 %v2698, %v2926
        %v3071 = vmax.f32 %v2706, %v2928
        %v3072 = vmax.f32 %v2714, %v2930
        %v3073 = vmax.f32 %v2713, %v2932
        %v3074 = vmax.f32 %v2715, %v2934
        %v3075 = vmax.f32 %v2723, %v2936
        %v3076 = vmax.f32 %v2731, %v2938
        %v3077 = vmax.f32 %v2730, %v2940
        %v3078 = vmax.f32 %v2732, %v2942
        %v3079 = vmax.f32 %v2740, %v2944
        %v3080 = vmax.f32 %v2748, %v2946
        %v3081 = vmax.f32 %v2747, %v2948
        %v3082 = vmax.f32 %v2749, %v2950
        %v3083 = vmax.f32 %v2757, %v2952
        %v3084 = vmax.f32 %v2765, %v2954
        %v3085 = vmax.f32 %v2764, %v2956
        %v3086 = vmax.f32 %v2766, %v2958
        %vm3087 = vcmask 130048
        %3088 = vst.msk [vmem:[#allocation3] sm:$0xff] %vm3087, 0.0
        %vm3089 = vcmask 123904
        %3090 = vst.msk [vmem:[#allocation3 + $0x8] sm:$0x3] %vm3089, 0.0
        %3091 = vst.msk [vmem:[#allocation3 + $0x10] sm:$0xff] %vm3087, 0.0
        %3092 = vst.msk [vmem:[#allocation3 + $0x18] sm:$0x3] %vm3089, 0.0
        %3093 = vst.msk [vmem:[#allocation3 + $0x20] sm:$0xff] %vm3087, 0.0
        %3094 = vst.msk [vmem:[#allocation3 + $0x28] sm:$0x3] %vm3089, 0.0
        %3095 = vst.msk [vmem:[#allocation3 + $0x30] sm:$0xff] %vm3087, 0.0
        %3096 = vst.msk [vmem:[#allocation3 + $0x38] sm:$0x3] %vm3089, 0.0
        %3097 = vst.msk [vmem:[#allocation3 + $0x40] sm:$0xff] %vm3087, 0.0
        %3098 = vst.msk [vmem:[#allocation3 + $0x48] sm:$0x3] %vm3089, 0.0
        %3099 = vst.msk [vmem:[#allocation3 + $0x50] sm:$0xff] %vm3087, 0.0
        %3100 = vst.msk [vmem:[#allocation3 + $0x58] sm:$0x3] %vm3089, 0.0
        %3101 = vst.msk [vmem:[#allocation3 + $0x60] sm:$0xff] %vm3087, 0.0
        %3102 = vst.msk [vmem:[#allocation3 + $0x68] sm:$0x3] %vm3089, 0.0
        %3103 = vst.msk [vmem:[#allocation3 + $0x70] sm:$0xff] %vm3087, 0.0
        %3104 = vst.msk [vmem:[#allocation3 + $0x78] sm:$0x3] %vm3089, 0.0
        %3105 = vst.msk [vmem:[#allocation3 + $0x80] sm:$0xff] %vm3087, 0.0
        %3106 = vst.msk [vmem:[#allocation3 + $0x88] sm:$0x3] %vm3089, 0.0
        %3107 = vst.msk [vmem:[#allocation3 + $0x90] sm:$0xff] %vm3087, 0.0
        %3108 = vst.msk [vmem:[#allocation3 + $0x98] sm:$0x3] %vm3089, 0.0
        %v3173 = vlaneseq
        %v3174 = vshrl.u32 %v3173, 7
        %v3175 = vsub.s32 0, %v3174
        %v3176 = vrot.slane %v3023, %v3175
        %v3177 = vlaneseq
        %v3178 = vshrl.u32 %v3177, 7
        %v3179 = vsub.s32 0, %v3178
        %v3180 = vrot.slane %v3024, %v3179
        %v3181 = vlaneseq
        %v3182 = vshrl.u32 %v3181, 7
        %v3183 = vsub.s32 0, %v3182
        %v3184 = vrot.slane %v3025, %v3183
        %v3185 = vlaneseq
        %v3186 = vshrl.u32 %v3185, 7
        %v3187 = vsub.s32 0, %v3186
        %v3188 = vrot.slane %v3026, %v3187
        %v3189 = vlaneseq
        %v3190 = vshrl.u32 %v3189, 7
        %v3191 = vsub.s32 0, %v3190
        %v3192 = vrot.slane %v3027, %v3191
        %v3193 = vlaneseq
        %v3194 = vshrl.u32 %v3193, 7
        %v3195 = vsub.s32 0, %v3194
        %v3196 = vrot.slane %v3028, %v3195
        %v3197 = vlaneseq
        %v3198 = vshrl.u32 %v3197, 7
        %v3199 = vsub.s32 0, %v3198
        %v3200 = vrot.slane %v3029, %v3199
        %v3201 = vlaneseq
        %v3202 = vshrl.u32 %v3201, 7
        %v3203 = vsub.s32 0, %v3202
        %v3204 = vrot.slane %v3030, %v3203
        %v3205 = vlaneseq
        %v3206 = vshrl.u32 %v3205, 7
        %v3207 = vsub.s32 0, %v3206
        %v3208 = vrot.slane %v3031, %v3207
        %v3209 = vlaneseq
        %v3210 = vshrl.u32 %v3209, 7
        %v3211 = vsub.s32 0, %v3210
        %v3212 = vrot.slane %v3032, %v3211
        %v3213 = vlaneseq
        %v3214 = vshrl.u32 %v3213, 7
        %v3215 = vsub.s32 0, %v3214
        %v3216 = vrot.slane %v3033, %v3215
        %v3217 = vlaneseq
        %v3218 = vshrl.u32 %v3217, 7
        %v3219 = vsub.s32 0, %v3218
        %v3220 = vrot.slane %v3034, %v3219
        %v3221 = vlaneseq
        %v3222 = vshrl.u32 %v3221, 7
        %v3223 = vsub.s32 0, %v3222
        %v3224 = vrot.slane %v3035, %v3223
        %v3225 = vlaneseq
        %v3226 = vshrl.u32 %v3225, 7
        %v3227 = vsub.s32 0, %v3226
        %v3228 = vrot.slane %v3036, %v3227
        %v3229 = vlaneseq
        %v3230 = vshrl.u32 %v3229, 7
        %v3231 = vsub.s32 0, %v3230
        %v3232 = vrot.slane %v3037, %v3231
        %v3233 = vlaneseq
        %v3234 = vshrl.u32 %v3233, 7
        %v3235 = vsub.s32 0, %v3234
        %v3236 = vrot.slane %v3038, %v3235
        %v3237 = vlaneseq
        %v3238 = vshrl.u32 %v3237, 7
        %v3239 = vsub.s32 0, %v3238
        %v3240 = vrot.slane %v3039, %v3239
        %v3241 = vlaneseq
        %v3242 = vshrl.u32 %v3241, 7
        %v3243 = vsub.s32 0, %v3242
        %v3244 = vrot.slane %v3040, %v3243
        %v3245 = vlaneseq
        %v3246 = vshrl.u32 %v3245, 7
        %v3247 = vsub.s32 0, %v3246
        %v3248 = vrot.slane %v3041, %v3247
        %v3249 = vlaneseq
        %v3250 = vshrl.u32 %v3249, 7
        %v3251 = vsub.s32 0, %v3250
        %v3252 = vrot.slane %v3042, %v3251
        %v3253 = vlaneseq
        %v3254 = vshrl.u32 %v3253, 7
        %v3255 = vsub.s32 0, %v3254
        %v3256 = vrot.slane %v3043, %v3255
        %v3257 = vlaneseq
        %v3258 = vshrl.u32 %v3257, 7
        %v3259 = vsub.s32 0, %v3258
        %v3260 = vrot.slane %v3044, %v3259
        %v3261 = vlaneseq
        %v3262 = vshrl.u32 %v3261, 7
        %v3263 = vsub.s32 0, %v3262
        %v3264 = vrot.slane %v3045, %v3263
        %v3265 = vlaneseq
        %v3266 = vshrl.u32 %v3265, 7
        %v3267 = vsub.s32 0, %v3266
        %v3268 = vrot.slane %v3046, %v3267
        %v3269 = vlaneseq
        %v3270 = vshrl.u32 %v3269, 7
        %v3271 = vsub.s32 0, %v3270
        %v3272 = vrot.slane %v3047, %v3271
        %v3273 = vlaneseq
        %v3274 = vshrl.u32 %v3273, 7
        %v3275 = vsub.s32 0, %v3274
        %v3276 = vrot.slane %v3048, %v3275
        %v3277 = vlaneseq
        %v3278 = vshrl.u32 %v3277, 7
        %v3279 = vsub.s32 0, %v3278
        %v3280 = vrot.slane %v3049, %v3279
        %v3281 = vlaneseq
        %v3282 = vshrl.u32 %v3281, 7
        %v3283 = vsub.s32 0, %v3282
        %v3284 = vrot.slane %v3050, %v3283
        %v3285 = vlaneseq
        %v3286 = vshrl.u32 %v3285, 7
        %v3287 = vsub.s32 0, %v3286
        %v3288 = vrot.slane %v3051, %v3287
        %v3289 = vlaneseq
        %v3290 = vshrl.u32 %v3289, 7
        %v3291 = vsub.s32 0, %v3290
        %v3292 = vrot.slane %v3052, %v3291
        %v3293 = vlaneseq
        %v3294 = vshrl.u32 %v3293, 7
        %v3295 = vsub.s32 0, %v3294
        %v3296 = vrot.slane %v3053, %v3295
        %v3297 = vlaneseq
        %v3298 = vshrl.u32 %v3297, 7
        %v3299 = vsub.s32 0, %v3298
        %v3300 = vrot.slane %v3054, %v3299
        %v3301 = vlaneseq
        %v3302 = vshrl.u32 %v3301, 7
        %v3303 = vsub.s32 0, %v3302
        %v3304 = vrot.slane %v3055, %v3303
        %v3305 = vlaneseq
        %v3306 = vshrl.u32 %v3305, 7
        %v3307 = vsub.s32 0, %v3306
        %v3308 = vrot.slane %v3056, %v3307
        %v3309 = vlaneseq
        %v3310 = vshrl.u32 %v3309, 7
        %v3311 = vsub.s32 0, %v3310
        %v3312 = vrot.slane %v3057, %v3311
        %v3313 = vlaneseq
        %v3314 = vshrl.u32 %v3313, 7
        %v3315 = vsub.s32 0, %v3314
        %v3316 = vrot.slane %v3058, %v3315
        %v3317 = vlaneseq
        %v3318 = vshrl.u32 %v3317, 7
        %v3319 = vsub.s32 0, %v3318
        %v3320 = vrot.slane %v3059, %v3319
        %v3321 = vlaneseq
        %v3322 = vshrl.u32 %v3321, 7
        %v3323 = vsub.s32 0, %v3322
        %v3324 = vrot.slane %v3060, %v3323
        %v3325 = vlaneseq
        %v3326 = vshrl.u32 %v3325, 7
        %v3327 = vsub.s32 0, %v3326
        %v3328 = vrot.slane %v3061, %v3327
        %v3329 = vlaneseq
        %v3330 = vshrl.u32 %v3329, 7
        %v3331 = vsub.s32 0, %v3330
        %v3332 = vrot.slane %v3062, %v3331
        %v3333 = vlaneseq
        %v3334 = vshrl.u32 %v3333, 7
        %v3335 = vsub.s32 0, %v3334
        %v3336 = vrot.slane %v3063, %v3335
        %v3337 = vlaneseq
        %v3338 = vshrl.u32 %v3337, 7
        %v3339 = vsub.s32 0, %v3338
        %v3340 = vrot.slane %v3064, %v3339
        %v3341 = vlaneseq
        %v3342 = vshrl.u32 %v3341, 7
        %v3343 = vsub.s32 0, %v3342
        %v3344 = vrot.slane %v3065, %v3343
        %v3345 = vlaneseq
        %v3346 = vshrl.u32 %v3345, 7
        %v3347 = vsub.s32 0, %v3346
        %v3348 = vrot.slane %v3066, %v3347
        %v3349 = vlaneseq
        %v3350 = vshrl.u32 %v3349, 7
        %v3351 = vsub.s32 0, %v3350
        %v3352 = vrot.slane %v3067, %v3351
        %v3353 = vlaneseq
        %v3354 = vshrl.u32 %v3353, 7
        %v3355 = vsub.s32 0, %v3354
        %v3356 = vrot.slane %v3068, %v3355
        %v3357 = vlaneseq
        %v3358 = vshrl.u32 %v3357, 7
        %v3359 = vsub.s32 0, %v3358
        %v3360 = vrot.slane %v3069, %v3359
        %v3361 = vlaneseq
        %v3362 = vshrl.u32 %v3361, 7
        %v3363 = vsub.s32 0, %v3362
        %v3364 = vrot.slane %v3070, %v3363
        %v3365 = vlaneseq
        %v3366 = vshrl.u32 %v3365, 7
        %v3367 = vsub.s32 0, %v3366
        %v3368 = vrot.slane %v3071, %v3367
        %v3369 = vlaneseq
        %v3370 = vshrl.u32 %v3369, 7
        %v3371 = vsub.s32 0, %v3370
        %v3372 = vrot.slane %v3072, %v3371
        %v3373 = vlaneseq
        %v3374 = vshrl.u32 %v3373, 7
        %v3375 = vsub.s32 0, %v3374
        %v3376 = vrot.slane %v3073, %v3375
        %v3377 = vlaneseq
        %v3378 = vshrl.u32 %v3377, 7
        %v3379 = vsub.s32 0, %v3378
        %v3380 = vrot.slane %v3074, %v3379
        %v3381 = vlaneseq
        %v3382 = vshrl.u32 %v3381, 7
        %v3383 = vsub.s32 0, %v3382
        %v3384 = vrot.slane %v3075, %v3383
        %v3385 = vlaneseq
        %v3386 = vshrl.u32 %v3385, 7
        %v3387 = vsub.s32 0, %v3386
        %v3388 = vrot.slane %v3076, %v3387
        %v3389 = vlaneseq
        %v3390 = vshrl.u32 %v3389, 7
        %v3391 = vsub.s32 0, %v3390
        %v3392 = vrot.slane %v3077, %v3391
        %v3393 = vlaneseq
        %v3394 = vshrl.u32 %v3393, 7
        %v3395 = vsub.s32 0, %v3394
        %v3396 = vrot.slane %v3078, %v3395
        %v3397 = vlaneseq
        %v3398 = vshrl.u32 %v3397, 7
        %v3399 = vsub.s32 0, %v3398
        %v3400 = vrot.slane %v3079, %v3399
        %v3401 = vlaneseq
        %v3402 = vshrl.u32 %v3401, 7
        %v3403 = vsub.s32 0, %v3402
        %v3404 = vrot.slane %v3080, %v3403
        %v3405 = vlaneseq
        %v3406 = vshrl.u32 %v3405, 7
        %v3407 = vsub.s32 0, %v3406
        %v3408 = vrot.slane %v3081, %v3407
        %v3409 = vlaneseq
        %v3410 = vshrl.u32 %v3409, 7
        %v3411 = vsub.s32 0, %v3410
        %v3412 = vrot.slane %v3082, %v3411
        %v3413 = vlaneseq
        %v3414 = vshrl.u32 %v3413, 7
        %v3415 = vsub.s32 0, %v3414
        %v3416 = vrot.slane %v3083, %v3415
        %v3417 = vlaneseq
        %v3418 = vshrl.u32 %v3417, 7
        %v3419 = vsub.s32 0, %v3418
        %v3420 = vrot.slane %v3084, %v3419
        %v3421 = vlaneseq
        %v3422 = vshrl.u32 %v3421, 7
        %v3423 = vsub.s32 0, %v3422
        %v3424 = vrot.slane %v3085, %v3423
        %v3425 = vlaneseq
        %v3426 = vshrl.u32 %v3425, 7
        %v3427 = vsub.s32 0, %v3426
        %v3428 = vrot.slane %v3086, %v3427
        %vm3429 = vcmask 1041409
        %v3430 = vsel %vm3429, %v3180, %v3176
        %vm3431 = vcmask 1042434
        %v3432 = vsel %vm3431, %v3184, %v3430
        %vm3433 = vcmask 1043459
        %v3434 = vsel %vm3433, %v3188, %v3432
        %vm3435 = vcmask 1044484
        %v3436 = vsel %vm3435, %v3192, %v3434
        %vm3437 = vcmask 1045509
        %v3438 = vsel %vm3437, %v3196, %v3436
        %vm3439 = vcmask 1046534
        %v3440 = vsel %vm3439, %v3200, %v3438
        %vm3441 = vcmask 1047559
        %v3442 = vsel %vm3441, %v3204, %v3440
        %v3443 = vsel %vm3429, %v3212, %v3208
        %v3444 = vsel %vm3431, %v3216, %v3443
        %v3445 = vsel %vm3433, %v3220, %v3444
        %v3446 = vsel %vm3435, %v3224, %v3445
        %v3447 = vsel %vm3437, %v3228, %v3446
        %v3448 = vsel %vm3439, %v3232, %v3447
        %v3449 = vsel %vm3441, %v3236, %v3448
        %v3450 = vsel %vm3429, %v3244, %v3240
        %v3451 = vsel %vm3431, %v3248, %v3450
        %v3452 = vsel %vm3433, %v3252, %v3451
        %v3453 = vsel %vm3435, %v3256, %v3452
        %v3454 = vsel %vm3437, %v3260, %v3453
        %v3455 = vsel %vm3439, %v3264, %v3454
        %v3456 = vsel %vm3441, %v3268, %v3455
        %v3457 = vsel %vm3429, %v3276, %v3272
        %v3458 = vsel %vm3431, %v3280, %v3457
        %v3459 = vsel %vm3433, %v3284, %v3458
        %v3460 = vsel %vm3435, %v3288, %v3459
        %v3461 = vsel %vm3437, %v3292, %v3460
        %v3462 = vsel %vm3439, %v3296, %v3461
        %v3463 = vsel %vm3441, %v3300, %v3462
        %v3464 = vsel %vm3429, %v3308, %v3304
        %v3465 = vsel %vm3431, %v3312, %v3464
        %v3466 = vsel %vm3433, %v3316, %v3465
        %v3467 = vsel %vm3435, %v3320, %v3466
        %v3468 = vsel %vm3437, %v3324, %v3467
        %v3469 = vsel %vm3439, %v3328, %v3468
        %v3470 = vsel %vm3441, %v3332, %v3469
        %v3471 = vsel %vm3429, %v3340, %v3336
        %v3472 = vsel %vm3431, %v3344, %v3471
        %v3473 = vsel %vm3433, %v3348, %v3472
        %v3474 = vsel %vm3435, %v3352, %v3473
        %v3475 = vsel %vm3437, %v3356, %v3474
        %v3476 = vsel %vm3439, %v3360, %v3475
        %v3477 = vsel %vm3441, %v3364, %v3476
        %v3478 = vsel %vm3429, %v3372, %v3368
        %v3479 = vsel %vm3431, %v3376, %v3478
        %v3480 = vsel %vm3433, %v3380, %v3479
        %v3481 = vsel %vm3435, %v3384, %v3480
        %v3482 = vsel %vm3437, %v3388, %v3481
        %v3483 = vsel %vm3439, %v3392, %v3482
        %v3484 = vsel %vm3441, %v3396, %v3483
        %v3485 = vsel %vm3429, %v3404, %v3400
        %v3486 = vsel %vm3431, %v3408, %v3485
        %v3487 = vsel %vm3433, %v3412, %v3486
        %v3488 = vsel %vm3435, %v3416, %v3487
        %v3489 = vsel %vm3437, %v3420, %v3488
        %v3490 = vsel %vm3439, %v3424, %v3489
        %v3491 = vsel %vm3441, %v3428, %v3490
        %s3500 = scalar_lea.vmem [#allocation3], 16
        %3501 = vst.msk [vmem:[%s3500 + $0x1] sm:$0xff] %vm3087, %v3442
        %3502 = vst.msk [vmem:[%s3500 + $0x11] sm:$0xff] %vm3087, %v3449
        %3503 = vst.msk [vmem:[%s3500 + $0x21] sm:$0xff] %vm3087, %v3456
        %3504 = vst.msk [vmem:[%s3500 + $0x31] sm:$0xff] %vm3087, %v3463
        %3505 = vst.msk [vmem:[%s3500 + $0x41] sm:$0xff] %vm3087, %v3470
        %3506 = vst.msk [vmem:[%s3500 + $0x51] sm:$0xff] %vm3087, %v3477
        %3507 = vst.msk [vmem:[%s3500 + $0x61] sm:$0xff] %vm3087, %v3484
        %3508 = vst.msk [vmem:[%s3500 + $0x71] sm:$0xff] %vm3087, %v3491
        %v3509 = vld [vmem:[#allocation3] sm:$0xff]
        %v3510 = vld [vmem:[#allocation3 + $0x10] sm:$0xff]
        %v3511 = vld [vmem:[#allocation3 + $0x20] sm:$0xff]
        %v3512 = vld [vmem:[#allocation3 + $0x30] sm:$0xff]
        %v3513 = vld [vmem:[#allocation3 + $0x40] sm:$0xff]
        %v3514 = vld [vmem:[#allocation3 + $0x50] sm:$0xff]
        %v3515 = vld [vmem:[#allocation3 + $0x60] sm:$0xff]
        %v3516 = vld [vmem:[#allocation3 + $0x70] sm:$0xff]
        %v3517 = vld [vmem:[#allocation9] sm:$0xff]
        %v3518 = vld [vmem:[#allocation9 + $0x8] sm:$0xff]
        %v3519 = vld [vmem:[#allocation3 + $0x1] sm:$0xff]
        %v3520 = vld [vmem:[#allocation3 + $0x11] sm:$0xff]
        %v3521 = vld [vmem:[#allocation3 + $0x21] sm:$0xff]
        %v3522 = vld [vmem:[#allocation3 + $0x31] sm:$0xff]
        %v3523 = vld [vmem:[#allocation3 + $0x41] sm:$0xff]
        %v3524 = vld [vmem:[#allocation3 + $0x51] sm:$0xff]
        %v3525 = vld [vmem:[#allocation3 + $0x61] sm:$0xff]
        %v3526 = vld [vmem:[#allocation3 + $0x71] sm:$0xff]
        %s3527 = scalar_lea.vmem [#allocation9], 16
        %v3528 = vld [vmem:[%s3527] sm:$0xff]
        %v3529 = vld [vmem:[%s3527 + $0x8] sm:$0xff]
        %v3531 = vsel %vm3087, %v3519, 0
        %v3534 = vsel %vm3087, %v3520, 0
        %v3537 = vsel %vm3087, %v3521, 0
        %v3540 = vsel %vm3087, %v3522, 0
        %v3543 = vsel %vm3087, %v3523, 0
        %v3546 = vsel %vm3087, %v3524, 0
        %v3549 = vsel %vm3087, %v3525, 0
        %v3552 = vsel %vm3087, %v3526, 0
        %3554 = vmatprep.subr.mxu0 0.0
        %3555 = vmatpush1.msra.mxu0 %v3528
        %3556 = vmatprep.subr.mxu0 0.0
        %3557 = vmatpush1.msra.mxu0 %v3529
        %3558 = vmatprep.subr.mxu0 0.0
        %3559 = vmatpush1.msra.mxu0 0.0
        %3560 = vmatprep.subr.mxu0 0.0
        %3561 = vmatpush1.msra.mxu0 0.0
        %3562 = vmatprep.subr.mxu0 0.0
        %3563 = vmatpush1.msra.mxu0 0.0
        %3564 = vmatprep.subr.mxu0 0.0
        %3565 = vmatpush1.msra.mxu0 0.0
        %3566 = vmatprep.subr.mxu0 0.0
        %3567 = vmatpush1.msra.mxu0 0.0
        %3568 = vmatprep.subr.mxu0 0.0
        %3569 = vmatpush1.msra.mxu0 0.0
        %3570 = vmatprep.subr.mxu0 0.0
        %3571 = vmatpush1.msra.mxu0 0.0
        %3572 = vmatprep.subr.mxu0 0.0
        %3573 = vmatpush1.msra.mxu0 0.0
        %3574 = vmatprep.subr.mxu0 0.0
        %3575 = vmatpush1.msra.mxu0 0.0
        %3576 = vmatprep.subr.mxu0 0.0
        %3577 = vmatpush1.msra.mxu0 0.0
        %3578 = vmatprep.subr.mxu0 0.0
        %3579 = vmatpush1.msra.mxu0 0.0
        %3580 = vmatprep.subr.mxu0 0.0
        %3581 = vmatpush1.msra.mxu0 0.0
        %3582 = vmatprep.subr.mxu0 0.0
        %3583 = vmatpush1.msra.mxu0 0.0
        %3584 = vmatprep.subr.mxu0 0.0
        %3585 = vmatpush1.msra.mxu0 0.0
        %3586 = vmatprep.subr.mxu0 0.0
        %3587 = vmatpush1.msra.mxu0 0.0
        %3588 = vmatprep.subr.mxu0 0.0
        %3589 = vmatpush1.msra.mxu0 0.0
        %3590 = vmatprep.subr.mxu0 0.0
        %3591 = vmatpush1.msra.mxu0 0.0
        %3592 = vmatprep.subr.mxu0 0.0
        %3593 = vmatpush1.msra.mxu0 0.0
        %3594 = vmatprep.subr.mxu0 0.0
        %3595 = vmatpush1.msra.mxu0 0.0
        %3596 = vmatprep.subr.mxu0 0.0
        %3597 = vmatpush1.msra.mxu0 0.0
        %3598 = vmatprep.subr.mxu0 0.0
        %3599 = vmatpush1.msra.mxu0 0.0
        %3600 = vmatprep.subr.mxu0 0.0
        %3601 = vmatpush1.msra.mxu0 0.0
        %3602 = vmatprep.subr.mxu0 0.0
        %3603 = vmatpush1.msra.mxu0 0.0
        %3604 = vmatprep.subr.mxu0 0.0
        %3605 = vmatpush1.msra.mxu0 0.0
        %3606 = vmatprep.subr.mxu0 0.0
        %3607 = vmatpush1.msra.mxu0 0.0
        %3608 = vmatprep.subr.mxu0 0.0
        %3609 = vmatpush1.msra.mxu0 0.0
        %3610 = vmatprep.subr.mxu0 0.0
        %3611 = vmatpush1.msra.mxu0 0.0
        %3612 = vmatprep.subr.mxu0 0.0
        %3613 = vmatpush1.msra.mxu0 0.0
        %3614 = vmatprep.subr.mxu0 0.0
        %3615 = vmatpush1.msra.mxu0 0.0
        %3616 = vmatprep.subr.mxu0 0.0
        %3617 = vmatpush1.msra.mxu0 0.0
        %3618 = vmatprep.mubr.f32.mxu0 0.0
        %3619 = vmatmul.mubr.f32.gmra.mrb[0].mxu0 %v3531
        %v3620 = vpop.f32.mrb[0].mxu0
        %v3621 = vadd.f32 0.0, %v3620
        %v3622 = vpop.f32.mrb[0].mxu0
        %3623 = vmatprep.mubr.f32.mxu0 0.0
        %3624 = vmatmul.mubr.f32.gmra.mrb[0].mxu0 %v3534
        %v3625 = vpop.f32.mrb[0].mxu0
        %v3626 = vadd.f32 0.0, %v3625
        %v3627 = vpop.f32.mrb[0].mxu0
        %3628 = vmatprep.mubr.f32.mxu0 0.0
        %3629 = vmatmul.mubr.f32.gmra.mrb[0].mxu0 %v3537
        %v3630 = vpop.f32.mrb[0].mxu0
        %v3631 = vadd.f32 0.0, %v3630
        %v3632 = vpop.f32.mrb[0].mxu0
        %3633 = vmatprep.mubr.f32.mxu0 0.0
        %3634 = vmatmul.mubr.f32.gmra.mrb[0].mxu0 %v3540
        %v3635 = vpop.f32.mrb[0].mxu0
        %v3636 = vadd.f32 0.0, %v3635
        %v3637 = vpop.f32.mrb[0].mxu0
        %3638 = vmatprep.mubr.f32.mxu0 0.0
        %3639 = vmatmul.mubr.f32.gmra.mrb[0].mxu0 %v3543
        %v3640 = vpop.f32.mrb[0].mxu0
        %v3641 = vadd.f32 0.0, %v3640
        %v3642 = vpop.f32.mrb[0].mxu0
        %3643 = vmatprep.mubr.f32.mxu0 0.0
        %3644 = vmatmul.mubr.f32.gmra.mrb[0].mxu0 %v3546
        %v3645 = vpop.f32.mrb[0].mxu0
        %v3646 = vadd.f32 0.0, %v3645
        %v3647 = vpop.f32.mrb[0].mxu0
        %3648 = vmatprep.mubr.f32.mxu0 0.0
        %3649 = vmatmul.mubr.f32.gmra.mrb[0].mxu0 %v3549
        %v3650 = vpop.f32.mrb[0].mxu0
        %v3651 = vadd.f32 0.0, %v3650
        %v3652 = vpop.f32.mrb[0].mxu0
        %3653 = vmatprep.mubr.f32.mxu0 0.0
        %3654 = vmatmul.mubr.f32.gmra.mrb[0].mxu0 %v3552
        %v3655 = vpop.f32.mrb[0].mxu0
        %v3656 = vadd.f32 0.0, %v3655
        %v3657 = vpop.f32.mrb[0].mxu0
        %3658 = vdwg.mxu0
        %v3660 = vsel %vm3087, %v3509, 0
        %v3663 = vsel %vm3087, %v3510, 0
        %v3666 = vsel %vm3087, %v3511, 0
        %v3669 = vsel %vm3087, %v3512, 0
        %v3672 = vsel %vm3087, %v3513, 0
        %v3675 = vsel %vm3087, %v3514, 0
        %v3678 = vsel %vm3087, %v3515, 0
        %v3681 = vsel %vm3087, %v3516, 0
        %3683 = vmatprep.subr.mxu0 0.0
        %3684 = vmatpush1.msra.mxu0 %v3517
        %3685 = vmatprep.subr.mxu0 0.0
        %3686 = vmatpush1.msra.mxu0 %v3518
        %3687 = vmatprep.subr.mxu0 0.0
        %3688 = vmatpush1.msra.mxu0 0.0
        %3689 = vmatprep.subr.mxu0 0.0
        %3690 = vmatpush1.msra.mxu0 0.0
        %3691 = vmatprep.subr.mxu0 0.0
        %3692 = vmatpush1.msra.mxu0 0.0
        %3693 = vmatprep.subr.mxu0 0.0
        %3694 = vmatpush1.msra.mxu0 0.0
        %3695 = vmatprep.subr.mxu0 0.0
        %3696 = vmatpush1.msra.mxu0 0.0
        %3697 = vmatprep.subr.mxu0 0.0
        %3698 = vmatpush1.msra.mxu0 0.0
        %3699 = vmatprep.subr.mxu0 0.0
        %3700 = vmatpush1.msra.mxu0 0.0
        %3701 = vmatprep.subr.mxu0 0.0
        %3702 = vmatpush1.msra.mxu0 0.0
        %3703 = vmatprep.subr.mxu0 0.0
        %3704 = vmatpush1.msra.mxu0 0.0
        %3705 = vmatprep.subr.mxu0 0.0
        %3706 = vmatpush1.msra.mxu0 0.0
        %3707 = vmatprep.subr.mxu0 0.0
        %3708 = vmatpush1.msra.mxu0 0.0
        %3709 = vmatprep.subr.mxu0 0.0
        %3710 = vmatpush1.msra.mxu0 0.0
        %3711 = vmatprep.subr.mxu0 0.0
        %3712 = vmatpush1.msra.mxu0 0.0
        %3713 = vmatprep.subr.mxu0 0.0
        %3714 = vmatpush1.msra.mxu0 0.0
        %3715 = vmatprep.subr.mxu0 0.0
        %3716 = vmatpush1.msra.mxu0 0.0
        %3717 = vmatprep.subr.mxu0 0.0
        %3718 = vmatpush1.msra.mxu0 0.0
        %3719 = vmatprep.subr.mxu0 0.0
        %3720 = vmatpush1.msra.mxu0 0.0
        %3721 = vmatprep.subr.mxu0 0.0
        %3722 = vmatpush1.msra.mxu0 0.0
        %3723 = vmatprep.subr.mxu0 0.0
        %3724 = vmatpush1.msra.mxu0 0.0
        %3725 = vmatprep.subr.mxu0 0.0
        %3726 = vmatpush1.msra.mxu0 0.0
        %3727 = vmatprep.subr.mxu0 0.0
        %3728 = vmatpush1.msra.mxu0 0.0
        %3729 = vmatprep.subr.mxu0 0.0
        %3730 = vmatpush1.msra.mxu0 0.0
        %3731 = vmatprep.subr.mxu0 0.0
        %3732 = vmatpush1.msra.mxu0 0.0
        %3733 = vmatprep.subr.mxu0 0.0
        %3734 = vmatpush1.msra.mxu0 0.0
        %3735 = vmatprep.subr.mxu0 0.0
        %3736 = vmatpush1.msra.mxu0 0.0
        %3737 = vmatprep.subr.mxu0 0.0
        %3738 = vmatpush1.msra.mxu0 0.0
        %3739 = vmatprep.subr.mxu0 0.0
        %3740 = vmatpush1.msra.mxu0 0.0
        %3741 = vmatprep.subr.mxu0 0.0
        %3742 = vmatpush1.msra.mxu0 0.0
        %3743 = vmatprep.subr.mxu0 0.0
        %3744 = vmatpush1.msra.mxu0 0.0
        %3745 = vmatprep.subr.mxu0 0.0
        %3746 = vmatpush1.msra.mxu0 0.0
        %3747 = vmatprep.mubr.f32.mxu0 0.0
        %3748 = vmatmul.mubr.f32.gmra.mrb[0].mxu0 %v3660
        %v3749 = vpop.f32.mrb[0].mxu0
        %v3750 = vadd.f32 %v3621, %v3749
        %v3751 = vpop.f32.mrb[0].mxu0
        %3752 = vmatprep.mubr.f32.mxu0 0.0
        %3753 = vmatmul.mubr.f32.gmra.mrb[0].mxu0 %v3663
        %v3754 = vpop.f32.mrb[0].mxu0
        %v3755 = vadd.f32 %v3626, %v3754
        %v3756 = vpop.f32.mrb[0].mxu0
        %3757 = vmatprep.mubr.f32.mxu0 0.0
        %3758 = vmatmul.mubr.f32.gmra.mrb[0].mxu0 %v3666
        %v3759 = vpop.f32.mrb[0].mxu0
        %v3760 = vadd.f32 %v3631, %v3759
        %v3761 = vpop.f32.mrb[0].mxu0
        %3762 = vmatprep.mubr.f32.mxu0 0.0
        %3763 = vmatmul.mubr.f32.gmra.mrb[0].mxu0 %v3669
        %v3764 = vpop.f32.mrb[0].mxu0
        %v3765 = vadd.f32 %v3636, %v3764
        %v3766 = vpop.f32.mrb[0].mxu0
        %3767 = vmatprep.mubr.f32.mxu0 0.0
        %3768 = vmatmul.mubr.f32.gmra.mrb[0].mxu0 %v3672
        %v3769 = vpop.f32.mrb[0].mxu0
        %v3770 = vadd.f32 %v3641, %v3769
        %v3771 = vpop.f32.mrb[0].mxu0
        %3772 = vmatprep.mubr.f32.mxu0 0.0
        %3773 = vmatmul.mubr.f32.gmra.mrb[0].mxu0 %v3675
        %v3774 = vpop.f32.mrb[0].mxu0
        %v3775 = vadd.f32 %v3646, %v3774
        %v3776 = vpop.f32.mrb[0].mxu0
        %3777 = vmatprep.mubr.f32.mxu0 0.0
        %3778 = vmatmul.mubr.f32.gmra.mrb[0].mxu0 %v3678
        %v3779 = vpop.f32.mrb[0].mxu0
        %v3780 = vadd.f32 %v3651, %v3779
        %v3781 = vpop.f32.mrb[0].mxu0
        %3782 = vmatprep.mubr.f32.mxu0 0.0
        %3783 = vmatmul.mubr.f32.gmra.mrb[0].mxu0 %v3681
        %v3784 = vpop.f32.mrb[0].mxu0
        %v3785 = vadd.f32 %v3656, %v3784
        %v3786 = vpop.f32.mrb[0].mxu0
        %3787 = vdwg.mxu0
        %v3788 = vld [vmem:[#allocation3 + $0x2] sm:$0xff]
        %v3789 = vld [vmem:[#allocation3 + $0x12] sm:$0xff]
        %v3790 = vld [vmem:[#allocation3 + $0x22] sm:$0xff]
        %v3791 = vld [vmem:[#allocation3 + $0x32] sm:$0xff]
        %v3792 = vld [vmem:[#allocation3 + $0x42] sm:$0xff]
        %v3793 = vld [vmem:[#allocation3 + $0x52] sm:$0xff]
        %v3794 = vld [vmem:[#allocation3 + $0x62] sm:$0xff]
        %v3795 = vld [vmem:[#allocation3 + $0x72] sm:$0xff]
        %s3796 = scalar_lea.vmem [#allocation9], 32
        %v3797 = vld [vmem:[%s3796] sm:$0xff]
        %v3798 = vld [vmem:[%s3796 + $0x8] sm:$0xff]
        %v3800 = vsel %vm3087, %v3788, 0
        %v3803 = vsel %vm3087, %v3789, 0
        %v3806 = vsel %vm3087, %v3790, 0
        %v3809 = vsel %vm3087, %v3791, 0
        %v3812 = vsel %vm3087, %v3792, 0
        %v3815 = vsel %vm3087, %v3793, 0
        %v3818 = vsel %vm3087, %v3794, 0
        %v3821 = vsel %vm3087, %v3795, 0
        %3823 = vmatprep.subr.mxu0 0.0
        %3824 = vmatpush1.msra.mxu0 %v3797
        %3825 = vmatprep.subr.mxu0 0.0
        %3826 = vmatpush1.msra.mxu0 %v3798
        %3827 = vmatprep.subr.mxu0 0.0
        %3828 = vmatpush1.msra.mxu0 0.0
        %3829 = vmatprep.subr.mxu0 0.0
        %3830 = vmatpush1.msra.mxu0 0.0
        %3831 = vmatprep.subr.mxu0 0.0
        %3832 = vmatpush1.msra.mxu0 0.0
        %3833 = vmatprep.subr.mxu0 0.0
        %3834 = vmatpush1.msra.mxu0 0.0
        %3835 = vmatprep.subr.mxu0 0.0
        %3836 = vmatpush1.msra.mxu0 0.0
        %3837 = vmatprep.subr.mxu0 0.0
        %3838 = vmatpush1.msra.mxu0 0.0
        %3839 = vmatprep.subr.mxu0 0.0
        %3840 = vmatpush1.msra.mxu0 0.0
        %3841 = vmatprep.subr.mxu0 0.0
        %3842 = vmatpush1.msra.mxu0 0.0
        %3843 = vmatprep.subr.mxu0 0.0
        %3844 = vmatpush1.msra.mxu0 0.0
        %3845 = vmatprep.subr.mxu0 0.0
        %3846 = vmatpush1.msra.mxu0 0.0
        %3847 = vmatprep.subr.mxu0 0.0
        %3848 = vmatpush1.msra.mxu0 0.0
        %3849 = vmatprep.subr.mxu0 0.0
        %3850 = vmatpush1.msra.mxu0 0.0
        %3851 = vmatprep.subr.mxu0 0.0
        %3852 = vmatpush1.msra.mxu0 0.0
        %3853 = vmatprep.subr.mxu0 0.0
        %3854 = vmatpush1.msra.mxu0 0.0
        %3855 = vmatprep.subr.mxu0 0.0
        %3856 = vmatpush1.msra.mxu0 0.0
        %3857 = vmatprep.subr.mxu0 0.0
        %3858 = vmatpush1.msra.mxu0 0.0
        %3859 = vmatprep.subr.mxu0 0.0
        %3860 = vmatpush1.msra.mxu0 0.0
        %3861 = vmatprep.subr.mxu0 0.0
        %3862 = vmatpush1.msra.mxu0 0.0
        %3863 = vmatprep.subr.mxu0 0.0
        %3864 = vmatpush1.msra.mxu0 0.0
        %3865 = vmatprep.subr.mxu0 0.0
        %3866 = vmatpush1.msra.mxu0 0.0
        %3867 = vmatprep.subr.mxu0 0.0
        %3868 = vmatpush1.msra.mxu0 0.0
        %3869 = vmatprep.subr.mxu0 0.0
        %3870 = vmatpush1.msra.mxu0 0.0
        %3871 = vmatprep.subr.mxu0 0.0
        %3872 = vmatpush1.msra.mxu0 0.0
        %3873 = vmatprep.subr.mxu0 0.0
        %3874 = vmatpush1.msra.mxu0 0.0
        %3875 = vmatprep.subr.mxu0 0.0
        %3876 = vmatpush1.msra.mxu0 0.0
        %3877 = vmatprep.subr.mxu0 0.0
        %3878 = vmatpush1.msra.mxu0 0.0
        %3879 = vmatprep.subr.mxu0 0.0
        %3880 = vmatpush1.msra.mxu0 0.0
        %3881 = vmatprep.subr.mxu0 0.0
        %3882 = vmatpush1.msra.mxu0 0.0
        %3883 = vmatprep.subr.mxu0 0.0
        %3884 = vmatpush1.msra.mxu0 0.0
        %3885 = vmatprep.subr.mxu0 0.0
        %3886 = vmatpush1.msra.mxu0 0.0
        %3887 = vmatprep.mubr.f32.mxu0 0.0
        %3888 = vmatmul.mubr.f32.gmra.mrb[0].mxu0 %v3800
        %v3889 = vpop.f32.mrb[0].mxu0
        %v3890 = vadd.f32 0.0, %v3889
        %v3891 = vpop.f32.mrb[0].mxu0
        %3892 = vmatprep.mubr.f32.mxu0 0.0
        %3893 = vmatmul.mubr.f32.gmra.mrb[0].mxu0 %v3803
        %v3894 = vpop.f32.mrb[0].mxu0
        %v3895 = vadd.f32 0.0, %v3894
        %v3896 = vpop.f32.mrb[0].mxu0
        %3897 = vmatprep.mubr.f32.mxu0 0.0
        %3898 = vmatmul.mubr.f32.gmra.mrb[0].mxu0 %v3806
        %v3899 = vpop.f32.mrb[0].mxu0
        %v3900 = vadd.f32 0.0, %v3899
        %v3901 = vpop.f32.mrb[0].mxu0
        %3902 = vmatprep.mubr.f32.mxu0 0.0
        %3903 = vmatmul.mubr.f32.gmra.mrb[0].mxu0 %v3809
        %v3904 = vpop.f32.mrb[0].mxu0
        %v3905 = vadd.f32 0.0, %v3904
        %v3906 = vpop.f32.mrb[0].mxu0
        %3907 = vmatprep.mubr.f32.mxu0 0.0
        %3908 = vmatmul.mubr.f32.gmra.mrb[0].mxu0 %v3812
        %v3909 = vpop.f32.mrb[0].mxu0
        %v3910 = vadd.f32 0.0, %v3909
        %v3911 = vpop.f32.mrb[0].mxu0
        %3912 = vmatprep.mubr.f32.mxu0 0.0
        %3913 = vmatmul.mubr.f32.gmra.mrb[0].mxu0 %v3815
        %v3914 = vpop.f32.mrb[0].mxu0
        %v3915 = vadd.f32 0.0, %v3914
        %v3916 = vpop.f32.mrb[0].mxu0
        %3917 = vmatprep.mubr.f32.mxu0 0.0
        %3918 = vmatmul.mubr.f32.gmra.mrb[0].mxu0 %v3818
        %v3919 = vpop.f32.mrb[0].mxu0
        %v3920 = vadd.f32 0.0, %v3919
        %v3921 = vpop.f32.mrb[0].mxu0
        %3922 = vmatprep.mubr.f32.mxu0 0.0
        %3923 = vmatmul.mubr.f32.gmra.mrb[0].mxu0 %v3821
        %v3924 = vpop.f32.mrb[0].mxu0
        %v3925 = vadd.f32 0.0, %v3924
        %v3926 = vpop.f32.mrb[0].mxu0
        %3927 = vdwg.mxu0
        %v3928 = vadd.f32 %v3750, %v3890
        %v3929 = vadd.f32 %v3755, %v3895
        %v3930 = vadd.f32 %v3760, %v3900
        %v3931 = vadd.f32 %v3765, %v3905
        %v3932 = vadd.f32 %v3770, %v3910
        %v3933 = vadd.f32 %v3775, %v3915
        %v3934 = vadd.f32 %v3780, %v3920
        %v3935 = vadd.f32 %v3785, %v3925
        %v3936 = vld [vmem:[%s3500] sm:$0xff]
        %v3937 = vld [vmem:[%s3500 + $0x10] sm:$0xff]
        %v3938 = vld [vmem:[%s3500 + $0x20] sm:$0xff]
        %v3939 = vld [vmem:[%s3500 + $0x30] sm:$0xff]
        %v3940 = vld [vmem:[%s3500 + $0x40] sm:$0xff]
        %v3941 = vld [vmem:[%s3500 + $0x50] sm:$0xff]
        %v3942 = vld [vmem:[%s3500 + $0x60] sm:$0xff]
        %v3943 = vld [vmem:[%s3500 + $0x70] sm:$0xff]
        %s3944 = scalar_lea.vmem [#allocation9], 48
        %v3945 = vld [vmem:[%s3944] sm:$0xff]
        %v3946 = vld [vmem:[%s3944 + $0x8] sm:$0xff]
        %v3948 = vsel %vm3087, %v3936, 0
        %v3951 = vsel %vm3087, %v3937, 0
        %v3954 = vsel %vm3087, %v3938, 0
        %v3957 = vsel %vm3087, %v3939, 0
        %v3960 = vsel %vm3087, %v3940, 0
        %v3963 = vsel %vm3087, %v3941, 0
        %v3966 = vsel %vm3087, %v3942, 0
        %v3969 = vsel %vm3087, %v3943, 0
        %3971 = vmatprep.subr.mxu0 0.0
        %3972 = vmatpush1.msra.mxu0 %v3945
        %3973 = vmatprep.subr.mxu0 0.0
        %3974 = vmatpush1.msra.mxu0 %v3946
        %3975 = vmatprep.subr.mxu0 0.0
        %3976 = vmatpush1.msra.mxu0 0.0
        %3977 = vmatprep.subr.mxu0 0.0
        %3978 = vmatpush1.msra.mxu0 0.0
        %3979 = vmatprep.subr.mxu0 0.0
        %3980 = vmatpush1.msra.mxu0 0.0
        %3981 = vmatprep.subr.mxu0 0.0
        %3982 = vmatpush1.msra.mxu0 0.0
        %3983 = vmatprep.subr.mxu0 0.0
        %3984 = vmatpush1.msra.mxu0 0.0
        %3985 = vmatprep.subr.mxu0 0.0
        %3986 = vmatpush1.msra.mxu0 0.0
        %3987 = vmatprep.subr.mxu0 0.0
        %3988 = vmatpush1.msra.mxu0 0.0
        %3989 = vmatprep.subr.mxu0 0.0
        %3990 = vmatpush1.msra.mxu0 0.0
        %3991 = vmatprep.subr.mxu0 0.0
        %3992 = vmatpush1.msra.mxu0 0.0
        %3993 = vmatprep.subr.mxu0 0.0
        %3994 = vmatpush1.msra.mxu0 0.0
        %3995 = vmatprep.subr.mxu0 0.0
        %3996 = vmatpush1.msra.mxu0 0.0
        %3997 = vmatprep.subr.mxu0 0.0
        %3998 = vmatpush1.msra.mxu0 0.0
        %3999 = vmatprep.subr.mxu0 0.0
        %4000 = vmatpush1.msra.mxu0 0.0
        %4001 = vmatprep.subr.mxu0 0.0
        %4002 = vmatpush1.msra.mxu0 0.0
        %4003 = vmatprep.subr.mxu0 0.0
        %4004 = vmatpush1.msra.mxu0 0.0
        %4005 = vmatprep.subr.mxu0 0.0
        %4006 = vmatpush1.msra.mxu0 0.0
        %4007 = vmatprep.subr.mxu0 0.0
        %4008 = vmatpush1.msra.mxu0 0.0
        %4009 = vmatprep.subr.mxu0 0.0
        %4010 = vmatpush1.msra.mxu0 0.0
        %4011 = vmatprep.subr.mxu0 0.0
        %4012 = vmatpush1.msra.mxu0 0.0
        %4013 = vmatprep.subr.mxu0 0.0
        %4014 = vmatpush1.msra.mxu0 0.0
        %4015 = vmatprep.subr.mxu0 0.0
        %4016 = vmatpush1.msra.mxu0 0.0
        %4017 = vmatprep.subr.mxu0 0.0
        %4018 = vmatpush1.msra.mxu0 0.0
        %4019 = vmatprep.subr.mxu0 0.0
        %4020 = vmatpush1.msra.mxu0 0.0
        %4021 = vmatprep.subr.mxu0 0.0
        %4022 = vmatpush1.msra.mxu0 0.0
        %4023 = vmatprep.subr.mxu0 0.0
        %4024 = vmatpush1.msra.mxu0 0.0
        %4025 = vmatprep.subr.mxu0 0.0
        %4026 = vmatpush1.msra.mxu0 0.0
        %4027 = vmatprep.subr.mxu0 0.0
        %4028 = vmatpush1.msra.mxu0 0.0
        %4029 = vmatprep.subr.mxu0 0.0
        %4030 = vmatpush1.msra.mxu0 0.0
        %4031 = vmatprep.subr.mxu0 0.0
        %4032 = vmatpush1.msra.mxu0 0.0
        %4033 = vmatprep.subr.mxu0 0.0
        %4034 = vmatpush1.msra.mxu0 0.0
        %4035 = vmatprep.mubr.f32.mxu0 0.0
        %4036 = vmatmul.mubr.f32.gmra.mrb[0].mxu0 %v3948
        %v4037 = vpop.f32.mrb[0].mxu0
        %v4038 = vadd.f32 0.0, %v4037
        %v4039 = vpop.f32.mrb[0].mxu0
        %4040 = vmatprep.mubr.f32.mxu0 0.0
        %4041 = vmatmul.mubr.f32.gmra.mrb[0].mxu0 %v3951
        %v4042 = vpop.f32.mrb[0].mxu0
        %v4043 = vadd.f32 0.0, %v4042
        %v4044 = vpop.f32.mrb[0].mxu0
        %4045 = vmatprep.mubr.f32.mxu0 0.0
        %4046 = vmatmul.mubr.f32.gmra.mrb[0].mxu0 %v3954
        %v4047 = vpop.f32.mrb[0].mxu0
        %v4048 = vadd.f32 0.0, %v4047
        %v4049 = vpop.f32.mrb[0].mxu0
        %4050 = vmatprep.mubr.f32.mxu0 0.0
        %4051 = vmatmul.mubr.f32.gmra.mrb[0].mxu0 %v3957
        %v4052 = vpop.f32.mrb[0].mxu0
        %v4053 = vadd.f32 0.0, %v4052
        %v4054 = vpop.f32.mrb[0].mxu0
        %4055 = vmatprep.mubr.f32.mxu0 0.0
        %4056 = vmatmul.mubr.f32.gmra.mrb[0].mxu0 %v3960
        %v4057 = vpop.f32.mrb[0].mxu0
        %v4058 = vadd.f32 0.0, %v4057
        %v4059 = vpop.f32.mrb[0].mxu0
        %4060 = vmatprep.mubr.f32.mxu0 0.0
        %4061 = vmatmul.mubr.f32.gmra.mrb[0].mxu0 %v3963
        %v4062 = vpop.f32.mrb[0].mxu0
        %v4063 = vadd.f32 0.0, %v4062
        %v4064 = vpop.f32.mrb[0].mxu0
        %4065 = vmatprep.mubr.f32.mxu0 0.0
        %4066 = vmatmul.mubr.f32.gmra.mrb[0].mxu0 %v3966
        %v4067 = vpop.f32.mrb[0].mxu0
        %v4068 = vadd.f32 0.0, %v4067
        %v4069 = vpop.f32.mrb[0].mxu0
        %4070 = vmatprep.mubr.f32.mxu0 0.0
        %4071 = vmatmul.mubr.f32.gmra.mrb[0].mxu0 %v3969
        %v4072 = vpop.f32.mrb[0].mxu0
        %v4073 = vadd.f32 0.0, %v4072
        %v4074 = vpop.f32.mrb[0].mxu0
        %4075 = vdwg.mxu0
        %v4076 = vadd.f32 %v3928, %v4038
        %v4077 = vadd.f32 %v3929, %v4043
        %v4078 = vadd.f32 %v3930, %v4048
        %v4079 = vadd.f32 %v3931, %v4053
        %v4080 = vadd.f32 %v3932, %v4058
        %v4081 = vadd.f32 %v3933, %v4063
        %v4082 = vadd.f32 %v3934, %v4068
        %v4083 = vadd.f32 %v3935, %v4073
        %v4084 = vld [vmem:[%s3500 + $0x1] sm:$0xff]
        %v4085 = vld [vmem:[%s3500 + $0x11] sm:$0xff]
        %v4086 = vld [vmem:[%s3500 + $0x21] sm:$0xff]
        %v4087 = vld [vmem:[%s3500 + $0x31] sm:$0xff]
        %v4088 = vld [vmem:[%s3500 + $0x41] sm:$0xff]
        %v4089 = vld [vmem:[%s3500 + $0x51] sm:$0xff]
        %v4090 = vld [vmem:[%s3500 + $0x61] sm:$0xff]
        %v4091 = vld [vmem:[%s3500 + $0x71] sm:$0xff]
        %s4092 = scalar_lea.vmem [#allocation9], 64
        %v4093 = vld [vmem:[%s4092] sm:$0xff]
        %v4094 = vld [vmem:[%s4092 + $0x8] sm:$0xff]
        %v4096 = vsel %vm3087, %v4084, 0
        %v4099 = vsel %vm3087, %v4085, 0
        %v4102 = vsel %vm3087, %v4086, 0
        %v4105 = vsel %vm3087, %v4087, 0
        %v4108 = vsel %vm3087, %v4088, 0
        %v4111 = vsel %vm3087, %v4089, 0
        %v4114 = vsel %vm3087, %v4090, 0
        %v4117 = vsel %vm3087, %v4091, 0
        %4119 = vmatprep.subr.mxu0 0.0
        %4120 = vmatpush1.msra.mxu0 %v4093
        %4121 = vmatprep.subr.mxu0 0.0
        %4122 = vmatpush1.msra.mxu0 %v4094
        %4123 = vmatprep.subr.mxu0 0.0
        %4124 = vmatpush1.msra.mxu0 0.0
        %4125 = vmatprep.subr.mxu0 0.0
        %4126 = vmatpush1.msra.mxu0 0.0
        %4127 = vmatprep.subr.mxu0 0.0
        %4128 = vmatpush1.msra.mxu0 0.0
        %4129 = vmatprep.subr.mxu0 0.0
        %4130 = vmatpush1.msra.mxu0 0.0
        %4131 = vmatprep.subr.mxu0 0.0
        %4132 = vmatpush1.msra.mxu0 0.0
        %4133 = vmatprep.subr.mxu0 0.0
        %4134 = vmatpush1.msra.mxu0 0.0
        %4135 = vmatprep.subr.mxu0 0.0
        %4136 = vmatpush1.msra.mxu0 0.0
        %4137 = vmatprep.subr.mxu0 0.0
        %4138 = vmatpush1.msra.mxu0 0.0
        %4139 = vmatprep.subr.mxu0 0.0
        %4140 = vmatpush1.msra.mxu0 0.0
        %4141 = vmatprep.subr.mxu0 0.0
        %4142 = vmatpush1.msra.mxu0 0.0
        %4143 = vmatprep.subr.mxu0 0.0
        %4144 = vmatpush1.msra.mxu0 0.0
        %4145 = vmatprep.subr.mxu0 0.0
        %4146 = vmatpush1.msra.mxu0 0.0
        %4147 = vmatprep.subr.mxu0 0.0
        %4148 = vmatpush1.msra.mxu0 0.0
        %4149 = vmatprep.subr.mxu0 0.0
        %4150 = vmatpush1.msra.mxu0 0.0
        %4151 = vmatprep.subr.mxu0 0.0
        %4152 = vmatpush1.msra.mxu0 0.0
        %4153 = vmatprep.subr.mxu0 0.0
        %4154 = vmatpush1.msra.mxu0 0.0
        %4155 = vmatprep.subr.mxu0 0.0
        %4156 = vmatpush1.msra.mxu0 0.0
        %4157 = vmatprep.subr.mxu0 0.0
        %4158 = vmatpush1.msra.mxu0 0.0
        %4159 = vmatprep.subr.mxu0 0.0
        %4160 = vmatpush1.msra.mxu0 0.0
        %4161 = vmatprep.subr.mxu0 0.0
        %4162 = vmatpush1.msra.mxu0 0.0
        %4163 = vmatprep.subr.mxu0 0.0
        %4164 = vmatpush1.msra.mxu0 0.0
        %4165 = vmatprep.subr.mxu0 0.0
        %4166 = vmatpush1.msra.mxu0 0.0
        %4167 = vmatprep.subr.mxu0 0.0
        %4168 = vmatpush1.msra.mxu0 0.0
        %4169 = vmatprep.subr.mxu0 0.0
        %4170 = vmatpush1.msra.mxu0 0.0
        %4171 = vmatprep.subr.mxu0 0.0
        %4172 = vmatpush1.msra.mxu0 0.0
        %4173 = vmatprep.subr.mxu0 0.0
        %4174 = vmatpush1.msra.mxu0 0.0
        %4175 = vmatprep.subr.mxu0 0.0
        %4176 = vmatpush1.msra.mxu0 0.0
        %4177 = vmatprep.subr.mxu0 0.0
        %4178 = vmatpush1.msra.mxu0 0.0
        %4179 = vmatprep.subr.mxu0 0.0
        %4180 = vmatpush1.msra.mxu0 0.0
        %4181 = vmatprep.subr.mxu0 0.0
        %4182 = vmatpush1.msra.mxu0 0.0
        %4183 = vmatprep.mubr.f32.mxu0 0.0
        %4184 = vmatmul.mubr.f32.gmra.mrb[0].mxu0 %v4096
        %v4185 = vpop.f32.mrb[0].mxu0
        %v4186 = vadd.f32 0.0, %v4185
        %v4187 = vpop.f32.mrb[0].mxu0
        %4188 = vmatprep.mubr.f32.mxu0 0.0
        %4189 = vmatmul.mubr.f32.gmra.mrb[0].mxu0 %v4099
        %v4190 = vpop.f32.mrb[0].mxu0
        %v4191 = vadd.f32 0.0, %v4190
        %v4192 = vpop.f32.mrb[0].mxu0
        %4193 = vmatprep.mubr.f32.mxu0 0.0
        %4194 = vmatmul.mubr.f32.gmra.mrb[0].mxu0 %v4102
        %v4195 = vpop.f32.mrb[0].mxu0
        %v4196 = vadd.f32 0.0, %v4195
        %v4197 = vpop.f32.mrb[0].mxu0
        %4198 = vmatprep.mubr.f32.mxu0 0.0
        %4199 = vmatmul.mubr.f32.gmra.mrb[0].mxu0 %v4105
        %v4200 = vpop.f32.mrb[0].mxu0
        %v4201 = vadd.f32 0.0, %v4200
        %v4202 = vpop.f32.mrb[0].mxu0
        %4203 = vmatprep.mubr.f32.mxu0 0.0
        %4204 = vmatmul.mubr.f32.gmra.mrb[0].mxu0 %v4108
        %v4205 = vpop.f32.mrb[0].mxu0
        %v4206 = vadd.f32 0.0, %v4205
        %v4207 = vpop.f32.mrb[0].mxu0
        %4208 = vmatprep.mubr.f32.mxu0 0.0
        %4209 = vmatmul.mubr.f32.gmra.mrb[0].mxu0 %v4111
        %v4210 = vpop.f32.mrb[0].mxu0
        %v4211 = vadd.f32 0.0, %v4210
        %v4212 = vpop.f32.mrb[0].mxu0
        %4213 = vmatprep.mubr.f32.mxu0 0.0
        %4214 = vmatmul.mubr.f32.gmra.mrb[0].mxu0 %v4114
        %v4215 = vpop.f32.mrb[0].mxu0
        %v4216 = vadd.f32 0.0, %v4215
        %v4217 = vpop.f32.mrb[0].mxu0
        %4218 = vmatprep.mubr.f32.mxu0 0.0
        %4219 = vmatmul.mubr.f32.gmra.mrb[0].mxu0 %v4117
        %v4220 = vpop.f32.mrb[0].mxu0
        %v4221 = vadd.f32 0.0, %v4220
        %v4222 = vpop.f32.mrb[0].mxu0
        %4223 = vdwg.mxu0
        %v4224 = vadd.f32 %v4076, %v4186
        %v4225 = vadd.f32 %v4077, %v4191
        %v4226 = vadd.f32 %v4078, %v4196
        %v4227 = vadd.f32 %v4079, %v4201
        %v4228 = vadd.f32 %v4080, %v4206
        %v4229 = vadd.f32 %v4081, %v4211
        %v4230 = vadd.f32 %v4082, %v4216
        %v4231 = vadd.f32 %v4083, %v4221
        %v4232 = vld [vmem:[%s3500 + $0x2] sm:$0xff]
        %v4233 = vld [vmem:[%s3500 + $0x12] sm:$0xff]
        %v4234 = vld [vmem:[%s3500 + $0x22] sm:$0xff]
        %v4235 = vld [vmem:[%s3500 + $0x32] sm:$0xff]
        %v4236 = vld [vmem:[%s3500 + $0x42] sm:$0xff]
        %v4237 = vld [vmem:[%s3500 + $0x52] sm:$0xff]
        %v4238 = vld [vmem:[%s3500 + $0x62] sm:$0xff]
        %v4239 = vld [vmem:[%s3500 + $0x72] sm:$0xff]
        %s4240 = scalar_lea.vmem [#allocation9], 80
        %v4241 = vld [vmem:[%s4240] sm:$0xff]
        %v4242 = vld [vmem:[%s4240 + $0x8] sm:$0xff]
        %v4244 = vsel %vm3087, %v4232, 0
        %v4247 = vsel %vm3087, %v4233, 0
        %v4250 = vsel %vm3087, %v4234, 0
        %v4253 = vsel %vm3087, %v4235, 0
        %v4256 = vsel %vm3087, %v4236, 0
        %v4259 = vsel %vm3087, %v4237, 0
        %v4262 = vsel %vm3087, %v4238, 0
        %v4265 = vsel %vm3087, %v4239, 0
        %4267 = vmatprep.subr.mxu0 0.0
        %4268 = vmatpush1.msra.mxu0 %v4241
        %4269 = vmatprep.subr.mxu0 0.0
        %4270 = vmatpush1.msra.mxu0 %v4242
        %4271 = vmatprep.subr.mxu0 0.0
        %4272 = vmatpush1.msra.mxu0 0.0
        %4273 = vmatprep.subr.mxu0 0.0
        %4274 = vmatpush1.msra.mxu0 0.0
        %4275 = vmatprep.subr.mxu0 0.0
        %4276 = vmatpush1.msra.mxu0 0.0
        %4277 = vmatprep.subr.mxu0 0.0
        %4278 = vmatpush1.msra.mxu0 0.0
        %4279 = vmatprep.subr.mxu0 0.0
        %4280 = vmatpush1.msra.mxu0 0.0
        %4281 = vmatprep.subr.mxu0 0.0
        %4282 = vmatpush1.msra.mxu0 0.0
        %4283 = vmatprep.subr.mxu0 0.0
        %4284 = vmatpush1.msra.mxu0 0.0
        %4285 = vmatprep.subr.mxu0 0.0
        %4286 = vmatpush1.msra.mxu0 0.0
        %4287 = vmatprep.subr.mxu0 0.0
        %4288 = vmatpush1.msra.mxu0 0.0
        %4289 = vmatprep.subr.mxu0 0.0
        %4290 = vmatpush1.msra.mxu0 0.0
        %4291 = vmatprep.subr.mxu0 0.0
        %4292 = vmatpush1.msra.mxu0 0.0
        %4293 = vmatprep.subr.mxu0 0.0
        %4294 = vmatpush1.msra.mxu0 0.0
        %4295 = vmatprep.subr.mxu0 0.0
        %4296 = vmatpush1.msra.mxu0 0.0
        %4297 = vmatprep.subr.mxu0 0.0
        %4298 = vmatpush1.msra.mxu0 0.0
        %4299 = vmatprep.subr.mxu0 0.0
        %4300 = vmatpush1.msra.mxu0 0.0
        %4301 = vmatprep.subr.mxu0 0.0
        %4302 = vmatpush1.msra.mxu0 0.0
        %4303 = vmatprep.subr.mxu0 0.0
        %4304 = vmatpush1.msra.mxu0 0.0
        %4305 = vmatprep.subr.mxu0 0.0
        %4306 = vmatpush1.msra.mxu0 0.0
        %4307 = vmatprep.subr.mxu0 0.0
        %4308 = vmatpush1.msra.mxu0 0.0
        %4309 = vmatprep.subr.mxu0 0.0
        %4310 = vmatpush1.msra.mxu0 0.0
        %4311 = vmatprep.subr.mxu0 0.0
        %4312 = vmatpush1.msra.mxu0 0.0
        %4313 = vmatprep.subr.mxu0 0.0
        %4314 = vmatpush1.msra.mxu0 0.0
        %4315 = vmatprep.subr.mxu0 0.0
        %4316 = vmatpush1.msra.mxu0 0.0
        %4317 = vmatprep.subr.mxu0 0.0
        %4318 = vmatpush1.msra.mxu0 0.0
        %4319 = vmatprep.subr.mxu0 0.0
        %4320 = vmatpush1.msra.mxu0 0.0
        %4321 = vmatprep.subr.mxu0 0.0
        %4322 = vmatpush1.msra.mxu0 0.0
        %4323 = vmatprep.subr.mxu0 0.0
        %4324 = vmatpush1.msra.mxu0 0.0
        %4325 = vmatprep.subr.mxu0 0.0
        %4326 = vmatpush1.msra.mxu0 0.0
        %4327 = vmatprep.subr.mxu0 0.0
        %4328 = vmatpush1.msra.mxu0 0.0
        %4329 = vmatprep.subr.mxu0 0.0
        %4330 = vmatpush1.msra.mxu0 0.0
        %4331 = vmatprep.mubr.f32.mxu0 0.0
        %4332 = vmatmul.mubr.f32.gmra.mrb[0].mxu0 %v4244
        %v4333 = vpop.f32.mrb[0].mxu0
        %v4334 = vadd.f32 0.0, %v4333
        %v4335 = vpop.f32.mrb[0].mxu0
        %4336 = vmatprep.mubr.f32.mxu0 0.0
        %4337 = vmatmul.mubr.f32.gmra.mrb[0].mxu0 %v4247
        %v4338 = vpop.f32.mrb[0].mxu0
        %v4339 = vadd.f32 0.0, %v4338
        %v4340 = vpop.f32.mrb[0].mxu0
        %4341 = vmatprep.mubr.f32.mxu0 0.0
        %4342 = vmatmul.mubr.f32.gmra.mrb[0].mxu0 %v4250
        %v4343 = vpop.f32.mrb[0].mxu0
        %v4344 = vadd.f32 0.0, %v4343
        %v4345 = vpop.f32.mrb[0].mxu0
        %4346 = vmatprep.mubr.f32.mxu0 0.0
        %4347 = vmatmul.mubr.f32.gmra.mrb[0].mxu0 %v4253
        %v4348 = vpop.f32.mrb[0].mxu0
        %v4349 = vadd.f32 0.0, %v4348
        %v4350 = vpop.f32.mrb[0].mxu0
        %4351 = vmatprep.mubr.f32.mxu0 0.0
        %4352 = vmatmul.mubr.f32.gmra.mrb[0].mxu0 %v4256
        %v4353 = vpop.f32.mrb[0].mxu0
        %v4354 = vadd.f32 0.0, %v4353
        %v4355 = vpop.f32.mrb[0].mxu0
        %4356 = vmatprep.mubr.f32.mxu0 0.0
        %4357 = vmatmul.mubr.f32.gmra.mrb[0].mxu0 %v4259
        %v4358 = vpop.f32.mrb[0].mxu0
        %v4359 = vadd.f32 0.0, %v4358
        %v4360 = vpop.f32.mrb[0].mxu0
        %4361 = vmatprep.mubr.f32.mxu0 0.0
        %4362 = vmatmul.mubr.f32.gmra.mrb[0].mxu0 %v4262
        %v4363 = vpop.f32.mrb[0].mxu0
        %v4364 = vadd.f32 0.0, %v4363
        %v4365 = vpop.f32.mrb[0].mxu0
        %4366 = vmatprep.mubr.f32.mxu0 0.0
        %4367 = vmatmul.mubr.f32.gmra.mrb[0].mxu0 %v4265
        %v4368 = vpop.f32.mrb[0].mxu0
        %v4369 = vadd.f32 0.0, %v4368
        %v4370 = vpop.f32.mrb[0].mxu0
        %4371 = vdwg.mxu0
        %v4372 = vadd.f32 %v4224, %v4334
        %v4373 = vadd.f32 %v4225, %v4339
        %v4374 = vadd.f32 %v4226, %v4344
        %v4375 = vadd.f32 %v4227, %v4349
        %v4376 = vadd.f32 %v4228, %v4354
        %v4377 = vadd.f32 %v4229, %v4359
        %v4378 = vadd.f32 %v4230, %v4364
        %v4379 = vadd.f32 %v4231, %v4369
        %s4380 = scalar_lea.vmem [#allocation3], 32
        %v4381 = vld [vmem:[%s4380] sm:$0xff]
        %v4382 = vld [vmem:[%s4380 + $0x10] sm:$0xff]
        %v4383 = vld [vmem:[%s4380 + $0x20] sm:$0xff]
        %v4384 = vld [vmem:[%s4380 + $0x30] sm:$0xff]
        %v4385 = vld [vmem:[%s4380 + $0x40] sm:$0xff]
        %v4386 = vld [vmem:[%s4380 + $0x50] sm:$0xff]
        %v4387 = vld [vmem:[%s4380 + $0x60] sm:$0xff]
        %v4388 = vld [vmem:[%s4380 + $0x70] sm:$0xff]
        %s4389 = scalar_lea.vmem [#allocation9], 96
        %v4390 = vld [vmem:[%s4389] sm:$0xff]
        %v4391 = vld [vmem:[%s4389 + $0x8] sm:$0xff]
        %v4393 = vsel %vm3087, %v4381, 0
        %v4396 = vsel %vm3087, %v4382, 0
        %v4399 = vsel %vm3087, %v4383, 0
        %v4402 = vsel %vm3087, %v4384, 0
        %v4405 = vsel %vm3087, %v4385, 0
        %v4408 = vsel %vm3087, %v4386, 0
        %v4411 = vsel %vm3087, %v4387, 0
        %v4414 = vsel %vm3087, %v4388, 0
        %4416 = vmatprep.subr.mxu0 0.0
        %4417 = vmatpush1.msra.mxu0 %v4390
        %4418 = vmatprep.subr.mxu0 0.0
        %4419 = vmatpush1.msra.mxu0 %v4391
        %4420 = vmatprep.subr.mxu0 0.0
        %4421 = vmatpush1.msra.mxu0 0.0
        %4422 = vmatprep.subr.mxu0 0.0
        %4423 = vmatpush1.msra.mxu0 0.0
        %4424 = vmatprep.subr.mxu0 0.0
        %4425 = vmatpush1.msra.mxu0 0.0
        %4426 = vmatprep.subr.mxu0 0.0
        %4427 = vmatpush1.msra.mxu0 0.0
        %4428 = vmatprep.subr.mxu0 0.0
        %4429 = vmatpush1.msra.mxu0 0.0
        %4430 = vmatprep.subr.mxu0 0.0
        %4431 = vmatpush1.msra.mxu0 0.0
        %4432 = vmatprep.subr.mxu0 0.0
        %4433 = vmatpush1.msra.mxu0 0.0
        %4434 = vmatprep.subr.mxu0 0.0
        %4435 = vmatpush1.msra.mxu0 0.0
        %4436 = vmatprep.subr.mxu0 0.0
        %4437 = vmatpush1.msra.mxu0 0.0
        %4438 = vmatprep.subr.mxu0 0.0
        %4439 = vmatpush1.msra.mxu0 0.0
        %4440 = vmatprep.subr.mxu0 0.0
        %4441 = vmatpush1.msra.mxu0 0.0
        %4442 = vmatprep.subr.mxu0 0.0
        %4443 = vmatpush1.msra.mxu0 0.0
        %4444 = vmatprep.subr.mxu0 0.0
        %4445 = vmatpush1.msra.mxu0 0.0
        %4446 = vmatprep.subr.mxu0 0.0
        %4447 = vmatpush1.msra.mxu0 0.0
        %4448 = vmatprep.subr.mxu0 0.0
        %4449 = vmatpush1.msra.mxu0 0.0
        %4450 = vmatprep.subr.mxu0 0.0
        %4451 = vmatpush1.msra.mxu0 0.0
        %4452 = vmatprep.subr.mxu0 0.0
        %4453 = vmatpush1.msra.mxu0 0.0
        %4454 = vmatprep.subr.mxu0 0.0
        %4455 = vmatpush1.msra.mxu0 0.0
        %4456 = vmatprep.subr.mxu0 0.0
        %4457 = vmatpush1.msra.mxu0 0.0
        %4458 = vmatprep.subr.mxu0 0.0
        %4459 = vmatpush1.msra.mxu0 0.0
        %4460 = vmatprep.subr.mxu0 0.0
        %4461 = vmatpush1.msra.mxu0 0.0
        %4462 = vmatprep.subr.mxu0 0.0
        %4463 = vmatpush1.msra.mxu0 0.0
        %4464 = vmatprep.subr.mxu0 0.0
        %4465 = vmatpush1.msra.mxu0 0.0
        %4466 = vmatprep.subr.mxu0 0.0
        %4467 = vmatpush1.msra.mxu0 0.0
        %4468 = vmatprep.subr.mxu0 0.0
        %4469 = vmatpush1.msra.mxu0 0.0
        %4470 = vmatprep.subr.mxu0 0.0
        %4471 = vmatpush1.msra.mxu0 0.0
        %4472 = vmatprep.subr.mxu0 0.0
        %4473 = vmatpush1.msra.mxu0 0.0
        %4474 = vmatprep.subr.mxu0 0.0
        %4475 = vmatpush1.msra.mxu0 0.0
        %4476 = vmatprep.subr.mxu0 0.0
        %4477 = vmatpush1.msra.mxu0 0.0
        %4478 = vmatprep.subr.mxu0 0.0
        %4479 = vmatpush1.msra.mxu0 0.0
        %4480 = vmatprep.mubr.f32.mxu0 0.0
        %4481 = vmatmul.mubr.f32.gmra.mrb[0].mxu0 %v4393
        %v4482 = vpop.f32.mrb[0].mxu0
        %v4483 = vadd.f32 0.0, %v4482
        %v4484 = vpop.f32.mrb[0].mxu0
        %4485 = vmatprep.mubr.f32.mxu0 0.0
        %4486 = vmatmul.mubr.f32.gmra.mrb[0].mxu0 %v4396
        %v4487 = vpop.f32.mrb[0].mxu0
        %v4488 = vadd.f32 0.0, %v4487
        %v4489 = vpop.f32.mrb[0].mxu0
        %4490 = vmatprep.mubr.f32.mxu0 0.0
        %4491 = vmatmul.mubr.f32.gmra.mrb[0].mxu0 %v4399
        %v4492 = vpop.f32.mrb[0].mxu0
        %v4493 = vadd.f32 0.0, %v4492
        %v4494 = vpop.f32.mrb[0].mxu0
        %4495 = vmatprep.mubr.f32.mxu0 0.0
        %4496 = vmatmul.mubr.f32.gmra.mrb[0].mxu0 %v4402
        %v4497 = vpop.f32.mrb[0].mxu0
        %v4498 = vadd.f32 0.0, %v4497
        %v4499 = vpop.f32.mrb[0].mxu0
        %4500 = vmatprep.mubr.f32.mxu0 0.0
        %4501 = vmatmul.mubr.f32.gmra.mrb[0].mxu0 %v4405
        %v4502 = vpop.f32.mrb[0].mxu0
        %v4503 = vadd.f32 0.0, %v4502
        %v4504 = vpop.f32.mrb[0].mxu0
        %4505 = vmatprep.mubr.f32.mxu0 0.0
        %4506 = vmatmul.mubr.f32.gmra.mrb[0].mxu0 %v4408
        %v4507 = vpop.f32.mrb[0].mxu0
        %v4508 = vadd.f32 0.0, %v4507
        %v4509 = vpop.f32.mrb[0].mxu0
        %4510 = vmatprep.mubr.f32.mxu0 0.0
        %4511 = vmatmul.mubr.f32.gmra.mrb[0].mxu0 %v4411
        %v4512 = vpop.f32.mrb[0].mxu0
        %v4513 = vadd.f32 0.0, %v4512
        %v4514 = vpop.f32.mrb[0].mxu0
        %4515 = vmatprep.mubr.f32.mxu0 0.0
        %4516 = vmatmul.mubr.f32.gmra.mrb[0].mxu0 %v4414
        %v4517 = vpop.f32.mrb[0].mxu0
        %v4518 = vadd.f32 0.0, %v4517
        %v4519 = vpop.f32.mrb[0].mxu0
        %4520 = vdwg.mxu0
        %v4521 = vadd.f32 %v4372, %v4483
        %v4522 = vadd.f32 %v4373, %v4488
        %v4523 = vadd.f32 %v4374, %v4493
        %v4524 = vadd.f32 %v4375, %v4498
        %v4525 = vadd.f32 %v4376, %v4503
        %v4526 = vadd.f32 %v4377, %v4508
        %v4527 = vadd.f32 %v4378, %v4513
        %v4528 = vadd.f32 %v4379, %v4518
        %v4529 = vld [vmem:[%s4380 + $0x1] sm:$0xff]
        %v4530 = vld [vmem:[%s4380 + $0x11] sm:$0xff]
        %v4531 = vld [vmem:[%s4380 + $0x21] sm:$0xff]
        %v4532 = vld [vmem:[%s4380 + $0x31] sm:$0xff]
        %v4533 = vld [vmem:[%s4380 + $0x41] sm:$0xff]
        %v4534 = vld [vmem:[%s4380 + $0x51] sm:$0xff]
        %v4535 = vld [vmem:[%s4380 + $0x61] sm:$0xff]
        %v4536 = vld [vmem:[%s4380 + $0x71] sm:$0xff]
        %s4537 = scalar_lea.vmem [#allocation9], 112
        %v4538 = vld [vmem:[%s4537] sm:$0xff]
        %v4539 = vld [vmem:[%s4537 + $0x8] sm:$0xff]
        %v4541 = vsel %vm3087, %v4529, 0
        %v4544 = vsel %vm3087, %v4530, 0
        %v4547 = vsel %vm3087, %v4531, 0
        %v4550 = vsel %vm3087, %v4532, 0
        %v4553 = vsel %vm3087, %v4533, 0
        %v4556 = vsel %vm3087, %v4534, 0
        %v4559 = vsel %vm3087, %v4535, 0
        %v4562 = vsel %vm3087, %v4536, 0
        %4564 = vmatprep.subr.mxu0 0.0
        %4565 = vmatpush1.msra.mxu0 %v4538
        %4566 = vmatprep.subr.mxu0 0.0
        %4567 = vmatpush1.msra.mxu0 %v4539
        %4568 = vmatprep.subr.mxu0 0.0
        %4569 = vmatpush1.msra.mxu0 0.0
        %4570 = vmatprep.subr.mxu0 0.0
        %4571 = vmatpush1.msra.mxu0 0.0
        %4572 = vmatprep.subr.mxu0 0.0
        %4573 = vmatpush1.msra.mxu0 0.0
        %4574 = vmatprep.subr.mxu0 0.0
        %4575 = vmatpush1.msra.mxu0 0.0
        %4576 = vmatprep.subr.mxu0 0.0
        %4577 = vmatpush1.msra.mxu0 0.0
        %4578 = vmatprep.subr.mxu0 0.0
        %4579 = vmatpush1.msra.mxu0 0.0
        %4580 = vmatprep.subr.mxu0 0.0
        %4581 = vmatpush1.msra.mxu0 0.0
        %4582 = vmatprep.subr.mxu0 0.0
        %4583 = vmatpush1.msra.mxu0 0.0
        %4584 = vmatprep.subr.mxu0 0.0
        %4585 = vmatpush1.msra.mxu0 0.0
        %4586 = vmatprep.subr.mxu0 0.0
        %4587 = vmatpush1.msra.mxu0 0.0
        %4588 = vmatprep.subr.mxu0 0.0
        %4589 = vmatpush1.msra.mxu0 0.0
        %4590 = vmatprep.subr.mxu0 0.0
        %4591 = vmatpush1.msra.mxu0 0.0
        %4592 = vmatprep.subr.mxu0 0.0
        %4593 = vmatpush1.msra.mxu0 0.0
        %4594 = vmatprep.subr.mxu0 0.0
        %4595 = vmatpush1.msra.mxu0 0.0
        %4596 = vmatprep.subr.mxu0 0.0
        %4597 = vmatpush1.msra.mxu0 0.0
        %4598 = vmatprep.subr.mxu0 0.0
        %4599 = vmatpush1.msra.mxu0 0.0
        %4600 = vmatprep.subr.mxu0 0.0
        %4601 = vmatpush1.msra.mxu0 0.0
        %4602 = vmatprep.subr.mxu0 0.0
        %4603 = vmatpush1.msra.mxu0 0.0
        %4604 = vmatprep.subr.mxu0 0.0
        %4605 = vmatpush1.msra.mxu0 0.0
        %4606 = vmatprep.subr.mxu0 0.0
        %4607 = vmatpush1.msra.mxu0 0.0
        %4608 = vmatprep.subr.mxu0 0.0
        %4609 = vmatpush1.msra.mxu0 0.0
        %4610 = vmatprep.subr.mxu0 0.0
        %4611 = vmatpush1.msra.mxu0 0.0
        %4612 = vmatprep.subr.mxu0 0.0
        %4613 = vmatpush1.msra.mxu0 0.0
        %4614 = vmatprep.subr.mxu0 0.0
        %4615 = vmatpush1.msra.mxu0 0.0
        %4616 = vmatprep.subr.mxu0 0.0
        %4617 = vmatpush1.msra.mxu0 0.0
        %4618 = vmatprep.subr.mxu0 0.0
        %4619 = vmatpush1.msra.mxu0 0.0
        %4620 = vmatprep.subr.mxu0 0.0
        %4621 = vmatpush1.msra.mxu0 0.0
        %4622 = vmatprep.subr.mxu0 0.0
        %4623 = vmatpush1.msra.mxu0 0.0
        %4624 = vmatprep.subr.mxu0 0.0
        %4625 = vmatpush1.msra.mxu0 0.0
        %4626 = vmatprep.subr.mxu0 0.0
        %4627 = vmatpush1.msra.mxu0 0.0
        %4628 = vmatprep.mubr.f32.mxu0 0.0
        %4629 = vmatmul.mubr.f32.gmra.mrb[0].mxu0 %v4541
        %v4630 = vpop.f32.mrb[0].mxu0
        %v4631 = vadd.f32 0.0, %v4630
        %v4632 = vpop.f32.mrb[0].mxu0
        %4633 = vmatprep.mubr.f32.mxu0 0.0
        %4634 = vmatmul.mubr.f32.gmra.mrb[0].mxu0 %v4544
        %v4635 = vpop.f32.mrb[0].mxu0
        %v4636 = vadd.f32 0.0, %v4635
        %v4637 = vpop.f32.mrb[0].mxu0
        %4638 = vmatprep.mubr.f32.mxu0 0.0
        %4639 = vmatmul.mubr.f32.gmra.mrb[0].mxu0 %v4547
        %v4640 = vpop.f32.mrb[0].mxu0
        %v4641 = vadd.f32 0.0, %v4640
        %v4642 = vpop.f32.mrb[0].mxu0
        %4643 = vmatprep.mubr.f32.mxu0 0.0
        %4644 = vmatmul.mubr.f32.gmra.mrb[0].mxu0 %v4550
        %v4645 = vpop.f32.mrb[0].mxu0
        %v4646 = vadd.f32 0.0, %v4645
        %v4647 = vpop.f32.mrb[0].mxu0
        %4648 = vmatprep.mubr.f32.mxu0 0.0
        %4649 = vmatmul.mubr.f32.gmra.mrb[0].mxu0 %v4553
        %v4650 = vpop.f32.mrb[0].mxu0
        %v4651 = vadd.f32 0.0, %v4650
        %v4652 = vpop.f32.mrb[0].mxu0
        %4653 = vmatprep.mubr.f32.mxu0 0.0
        %4654 = vmatmul.mubr.f32.gmra.mrb[0].mxu0 %v4556
        %v4655 = vpop.f32.mrb[0].mxu0
        %v4656 = vadd.f32 0.0, %v4655
        %v4657 = vpop.f32.mrb[0].mxu0
        %4658 = vmatprep.mubr.f32.mxu0 0.0
        %4659 = vmatmul.mubr.f32.gmra.mrb[0].mxu0 %v4559
        %v4660 = vpop.f32.mrb[0].mxu0
        %v4661 = vadd.f32 0.0, %v4660
        %v4662 = vpop.f32.mrb[0].mxu0
        %4663 = vmatprep.mubr.f32.mxu0 0.0
        %4664 = vmatmul.mubr.f32.gmra.mrb[0].mxu0 %v4562
        %v4665 = vpop.f32.mrb[0].mxu0
        %v4666 = vadd.f32 0.0, %v4665
        %v4667 = vpop.f32.mrb[0].mxu0
        %4668 = vdwg.mxu0
        %v4669 = vadd.f32 %v4521, %v4631
        %v4670 = vadd.f32 %v4522, %v4636
        %v4671 = vadd.f32 %v4523, %v4641
        %v4672 = vadd.f32 %v4524, %v4646
        %v4673 = vadd.f32 %v4525, %v4651
        %v4674 = vadd.f32 %v4526, %v4656
        %v4675 = vadd.f32 %v4527, %v4661
        %v4676 = vadd.f32 %v4528, %v4666
        %v4677 = vld [vmem:[%s4380 + $0x2] sm:$0xff]
        %v4678 = vld [vmem:[%s4380 + $0x12] sm:$0xff]
        %v4679 = vld [vmem:[%s4380 + $0x22] sm:$0xff]
        %v4680 = vld [vmem:[%s4380 + $0x32] sm:$0xff]
        %v4681 = vld [vmem:[%s4380 + $0x42] sm:$0xff]
        %v4682 = vld [vmem:[%s4380 + $0x52] sm:$0xff]
        %v4683 = vld [vmem:[%s4380 + $0x62] sm:$0xff]
        %v4684 = vld [vmem:[%s4380 + $0x72] sm:$0xff]
        %s4685 = scalar_lea.vmem [#allocation9], 128
        %v4686 = vld [vmem:[%s4685] sm:$0xff]
        %v4687 = vld [vmem:[%s4685 + $0x8] sm:$0xff]
        %v4689 = vsel %vm3087, %v4677, 0
        %v4692 = vsel %vm3087, %v4678, 0
        %v4695 = vsel %vm3087, %v4679, 0
        %v4698 = vsel %vm3087, %v4680, 0
        %v4701 = vsel %vm3087, %v4681, 0
        %v4704 = vsel %vm3087, %v4682, 0
        %v4707 = vsel %vm3087, %v4683, 0
        %v4710 = vsel %vm3087, %v4684, 0
        %4712 = vmatprep.subr.mxu0 0.0
        %4713 = vmatpush1.msra.mxu0 %v4686
        %4714 = vmatprep.subr.mxu0 0.0
        %4715 = vmatpush1.msra.mxu0 %v4687
        %4716 = vmatprep.subr.mxu0 0.0
        %4717 = vmatpush1.msra.mxu0 0.0
        %4718 = vmatprep.subr.mxu0 0.0
        %4719 = vmatpush1.msra.mxu0 0.0
        %4720 = vmatprep.subr.mxu0 0.0
        %4721 = vmatpush1.msra.mxu0 0.0
        %4722 = vmatprep.subr.mxu0 0.0
        %4723 = vmatpush1.msra.mxu0 0.0
        %4724 = vmatprep.subr.mxu0 0.0
        %4725 = vmatpush1.msra.mxu0 0.0
        %4726 = vmatprep.subr.mxu0 0.0
        %4727 = vmatpush1.msra.mxu0 0.0
        %4728 = vmatprep.subr.mxu0 0.0
        %4729 = vmatpush1.msra.mxu0 0.0
        %4730 = vmatprep.subr.mxu0 0.0
        %4731 = vmatpush1.msra.mxu0 0.0
        %4732 = vmatprep.subr.mxu0 0.0
        %4733 = vmatpush1.msra.mxu0 0.0
        %4734 = vmatprep.subr.mxu0 0.0
        %4735 = vmatpush1.msra.mxu0 0.0
        %4736 = vmatprep.subr.mxu0 0.0
        %4737 = vmatpush1.msra.mxu0 0.0
        %4738 = vmatprep.subr.mxu0 0.0
        %4739 = vmatpush1.msra.mxu0 0.0
        %4740 = vmatprep.subr.mxu0 0.0
        %4741 = vmatpush1.msra.mxu0 0.0
        %4742 = vmatprep.subr.mxu0 0.0
        %4743 = vmatpush1.msra.mxu0 0.0
        %4744 = vmatprep.subr.mxu0 0.0
        %4745 = vmatpush1.msra.mxu0 0.0
        %4746 = vmatprep.subr.mxu0 0.0
        %4747 = vmatpush1.msra.mxu0 0.0
        %4748 = vmatprep.subr.mxu0 0.0
        %4749 = vmatpush1.msra.mxu0 0.0
        %4750 = vmatprep.subr.mxu0 0.0
        %4751 = vmatpush1.msra.mxu0 0.0
        %4752 = vmatprep.subr.mxu0 0.0
        %4753 = vmatpush1.msra.mxu0 0.0
        %4754 = vmatprep.subr.mxu0 0.0
        %4755 = vmatpush1.msra.mxu0 0.0
        %4756 = vmatprep.subr.mxu0 0.0
        %4757 = vmatpush1.msra.mxu0 0.0
        %4758 = vmatprep.subr.mxu0 0.0
        %4759 = vmatpush1.msra.mxu0 0.0
        %4760 = vmatprep.subr.mxu0 0.0
        %4761 = vmatpush1.msra.mxu0 0.0
        %4762 = vmatprep.subr.mxu0 0.0
        %4763 = vmatpush1.msra.mxu0 0.0
        %4764 = vmatprep.subr.mxu0 0.0
        %4765 = vmatpush1.msra.mxu0 0.0
        %4766 = vmatprep.subr.mxu0 0.0
        %4767 = vmatpush1.msra.mxu0 0.0
        %4768 = vmatprep.subr.mxu0 0.0
        %4769 = vmatpush1.msra.mxu0 0.0
        %4770 = vmatprep.subr.mxu0 0.0
        %4771 = vmatpush1.msra.mxu0 0.0
        %4772 = vmatprep.subr.mxu0 0.0
        %4773 = vmatpush1.msra.mxu0 0.0
        %4774 = vmatprep.subr.mxu0 0.0
        %4775 = vmatpush1.msra.mxu0 0.0
        %4776 = vmatprep.mubr.f32.mxu0 0.0
        %4777 = vmatmul.mubr.f32.gmra.mrb[0].mxu0 %v4689
        %v4778 = vpop.f32.mrb[0].mxu0
        %v4779 = vadd.f32 0.0, %v4778
        %v4780 = vpop.f32.mrb[0].mxu0
        %4781 = vmatprep.mubr.f32.mxu0 0.0
        %4782 = vmatmul.mubr.f32.gmra.mrb[0].mxu0 %v4692
        %v4783 = vpop.f32.mrb[0].mxu0
        %v4784 = vadd.f32 0.0, %v4783
        %v4785 = vpop.f32.mrb[0].mxu0
        %4786 = vmatprep.mubr.f32.mxu0 0.0
        %4787 = vmatmul.mubr.f32.gmra.mrb[0].mxu0 %v4695
        %v4788 = vpop.f32.mrb[0].mxu0
        %v4789 = vadd.f32 0.0, %v4788
        %v4790 = vpop.f32.mrb[0].mxu0
        %4791 = vmatprep.mubr.f32.mxu0 0.0
        %4792 = vmatmul.mubr.f32.gmra.mrb[0].mxu0 %v4698
        %v4793 = vpop.f32.mrb[0].mxu0
        %v4794 = vadd.f32 0.0, %v4793
        %v4795 = vpop.f32.mrb[0].mxu0
        %4796 = vmatprep.mubr.f32.mxu0 0.0
        %4797 = vmatmul.mubr.f32.gmra.mrb[0].mxu0 %v4701
        %v4798 = vpop.f32.mrb[0].mxu0
        %v4799 = vadd.f32 0.0, %v4798
        %v4800 = vpop.f32.mrb[0].mxu0
        %4801 = vmatprep.mubr.f32.mxu0 0.0
        %4802 = vmatmul.mubr.f32.gmra.mrb[0].mxu0 %v4704
        %v4803 = vpop.f32.mrb[0].mxu0
        %v4804 = vadd.f32 0.0, %v4803
        %v4805 = vpop.f32.mrb[0].mxu0
        %4806 = vmatprep.mubr.f32.mxu0 0.0
        %4807 = vmatmul.mubr.f32.gmra.mrb[0].mxu0 %v4707
        %v4808 = vpop.f32.mrb[0].mxu0
        %v4809 = vadd.f32 0.0, %v4808
        %v4810 = vpop.f32.mrb[0].mxu0
        %4811 = vmatprep.mubr.f32.mxu0 0.0
        %4812 = vmatmul.mubr.f32.gmra.mrb[0].mxu0 %v4710
        %v4813 = vpop.f32.mrb[0].mxu0
        %v4814 = vadd.f32 0.0, %v4813
        %v4815 = vpop.f32.mrb[0].mxu0
        %4816 = vdwg.mxu0
        %v4817 = vadd.f32 %v4669, %v4779
        %v4818 = vadd.f32 %v4670, %v4784
        %v4819 = vadd.f32 %v4671, %v4789
        %v4820 = vadd.f32 %v4672, %v4794
        %v4821 = vadd.f32 %v4673, %v4799
        %v4822 = vadd.f32 %v4674, %v4804
        %v4823 = vadd.f32 %v4675, %v4809
        %v4824 = vadd.f32 %v4676, %v4814
        %v4825 = vld [vmem:[%s6] sm:$0x1]
        %v4827 = vlaneseq
        %v4828 = vshrl.u32 %v4827, 7
        %v4829 = vsub.s32 0, %v4828
        %v4830 = vrot.slane %v4825, %v4829
        %v4832 = vadd.f32 %v4817, %v4830
        %v4833 = vadd.f32 %v4818, %v4830
        %v4834 = vadd.f32 %v4819, %v4830
        %v4835 = vadd.f32 %v4820, %v4830
        %v4836 = vadd.f32 %v4821, %v4830
        %v4837 = vadd.f32 %v4822, %v4830
        %v4838 = vadd.f32 %v4823, %v4830
        %v4839 = vadd.f32 %v4824, %v4830
        %v4840 = vmax.f32 %v4832, 0.0
        %v4841 = vmax.f32 %v4833, 0.0
        %v4842 = vmax.f32 %v4834, 0.0
        %v4843 = vmax.f32 %v4835, 0.0
        %v4844 = vmax.f32 %v4836, 0.0
        %v4845 = vmax.f32 %v4837, 0.0
        %v4846 = vmax.f32 %v4838, 0.0
        %v4847 = vmax.f32 %v4839, 0.0
        %v4848 = vld [vmem:[%s7] sm:$0x1]
        %v4850 = vlaneseq
        %v4851 = vshrl.u32 %v4850, 7
        %v4852 = vsub.s32 0, %v4851
        %v4853 = vrot.slane %v4848, %v4852
        %v4855 = vmul.f32 %v4840, %v4853
        %v4856 = vmul.f32 %v4841, %v4853
        %v4857 = vmul.f32 %v4842, %v4853
        %v4858 = vmul.f32 %v4843, %v4853
        %v4859 = vmul.f32 %v4844, %v4853
        %v4860 = vmul.f32 %v4845, %v4853
        %v4861 = vmul.f32 %v4846, %v4853
        %v4862 = vmul.f32 %v4847, %v4853
        %v4863 = vld [vmem:[%s8] sm:$0x1]
        %v4865 = vlaneseq
        %v4866 = vshrl.u32 %v4865, 7
        %v4867 = vsub.s32 0, %v4866
        %v4868 = vrot.slane %v4863, %v4867
        %v4870 = vadd.f32 %v4855, %v4868
        %v4871 = vadd.f32 %v4856, %v4868
        %v4872 = vadd.f32 %v4857, %v4868
        %v4873 = vadd.f32 %v4858, %v4868
        %v4874 = vadd.f32 %v4859, %v4868
        %v4875 = vadd.f32 %v4860, %v4868
        %v4876 = vadd.f32 %v4861, %v4868
        %v4877 = vadd.f32 %v4862, %v4868
        %v4878 = vmax.f32 %v4870, %v4871
        %v4879 = vmax.f32 %v4872, %v4873
        %v4880 = vmax.f32 %v4874, %v4875
        %v4881 = vmax.f32 %v4876, %v4877
        %v4886 = vcombine.high %v4878, %v4878
        %v4888 = vunpack.c.l.s4 1983009808
        %v4889 = vunpack.c.0.s8 %v4888
        %v4890 = vlaneseq
        %v4891 = vshrl.u32 %v4890, 7
        %v4892 = vsub.s32 %v4889, %v4891
        %v4893 = vrot.slane %v4878, %v4892
        %v4895 = vunpack.c.l.s4 1983009808
        %v4896 = vunpack.c.0.s8 %v4895
        %v4897 = vlaneseq
        %v4898 = vshrl.u32 %v4897, 7
        %v4899 = vsub.s32 %v4896, %v4898
        %v4900 = vrot.slane %v4886, %v4899
        %v4901 = vcombine.high %v4893, %v4893
        %v4902 = vcombine.high %v4900, %v4900
        %v4903 = vcombine.high %v4879, %v4879
        %v4905 = vunpack.c.l.s4 1983009808
        %v4906 = vunpack.c.0.s8 %v4905
        %v4907 = vlaneseq
        %v4908 = vshrl.u32 %v4907, 7
        %v4909 = vsub.s32 %v4906, %v4908
        %v4910 = vrot.slane %v4879, %v4909
        %v4912 = vunpack.c.l.s4 1983009808
        %v4913 = vunpack.c.0.s8 %v4912
        %v4914 = vlaneseq
        %v4915 = vshrl.u32 %v4914, 7
        %v4916 = vsub.s32 %v4913, %v4915
        %v4917 = vrot.slane %v4903, %v4916
        %v4918 = vcombine.high %v4910, %v4910
        %v4919 = vcombine.high %v4917, %v4917
        %v4920 = vcombine.high %v4880, %v4880
        %v4922 = vunpack.c.l.s4 1983009808
        %v4923 = vunpack.c.0.s8 %v4922
        %v4924 = vlaneseq
        %v4925 = vshrl.u32 %v4924, 7
        %v4926 = vsub.s32 %v4923, %v4925
        %v4927 = vrot.slane %v4880, %v4926
        %v4929 = vunpack.c.l.s4 1983009808
        %v4930 = vunpack.c.0.s8 %v4929
        %v4931 = vlaneseq
        %v4932 = vshrl.u32 %v4931, 7
        %v4933 = vsub.s32 %v4930, %v4932
        %v4934 = vrot.slane %v4920, %v4933
        %v4935 = vcombine.high %v4927, %v4927
        %v4936 = vcombine.high %v4934, %v4934
        %v4937 = vcombine.high %v4881, %v4881
        %v4939 = vunpack.c.l.s4 1983009808
        %v4940 = vunpack.c.0.s8 %v4939
        %v4941 = vlaneseq
        %v4942 = vshrl.u32 %v4941, 7
        %v4943 = vsub.s32 %v4940, %v4942
        %v4944 = vrot.slane %v4881, %v4943
        %v4946 = vunpack.c.l.s4 1983009808
        %v4947 = vunpack.c.0.s8 %v4946
        %v4948 = vlaneseq
        %v4949 = vshrl.u32 %v4948, 7
        %v4950 = vsub.s32 %v4947, %v4949
        %v4951 = vrot.slane %v4937, %v4950
        %v4952 = vcombine.high %v4944, %v4944
        %v4953 = vcombine.high %v4951, %v4951
        %v4970 = vrot.slane %v4893, 7
        %v4971 = vrot.slane %v4970, 2
        %v4972 = vrot.slane %v4901, 7
        %v4973 = vrot.slane %v4972, 2
        %v4974 = vrot.slane %v4900, 7
        %v4975 = vrot.slane %v4974, 2
        %v4976 = vrot.slane %v4902, 7
        %v4977 = vrot.slane %v4976, 2
        %v4978 = vrot.slane %v4910, 7
        %v4979 = vrot.slane %v4978, 2
        %v4980 = vrot.slane %v4918, 7
        %v4981 = vrot.slane %v4980, 2
        %v4982 = vrot.slane %v4917, 7
        %v4983 = vrot.slane %v4982, 2
        %v4984 = vrot.slane %v4919, 7
        %v4985 = vrot.slane %v4984, 2
        %v4986 = vrot.slane %v4927, 7
        %v4987 = vrot.slane %v4986, 2
        %v4988 = vrot.slane %v4935, 7
        %v4989 = vrot.slane %v4988, 2
        %v4990 = vrot.slane %v4934, 7
        %v4991 = vrot.slane %v4990, 2
        %v4992 = vrot.slane %v4936, 7
        %v4993 = vrot.slane %v4992, 2
        %v4994 = vrot.slane %v4944, 7
        %v4995 = vrot.slane %v4994, 2
        %v4996 = vrot.slane %v4952, 7
        %v4997 = vrot.slane %v4996, 2
        %v4998 = vrot.slane %v4951, 7
        %v4999 = vrot.slane %v4998, 2
        %v5000 = vrot.slane %v4953, 7
        %v5001 = vrot.slane %v5000, 2
        %v5018 = vmax.f32 %v4893, %v4971
        %v5019 = vmax.f32 %v4901, %v4973
        %v5020 = vmax.f32 %v4900, %v4975
        %v5021 = vmax.f32 %v4902, %v4977
        %v5022 = vmax.f32 %v4910, %v4979
        %v5023 = vmax.f32 %v4918, %v4981
        %v5024 = vmax.f32 %v4917, %v4983
        %v5025 = vmax.f32 %v4919, %v4985
        %v5026 = vmax.f32 %v4927, %v4987
        %v5027 = vmax.f32 %v4935, %v4989
        %v5028 = vmax.f32 %v4934, %v4991
        %v5029 = vmax.f32 %v4936, %v4993
        %v5030 = vmax.f32 %v4944, %v4995
        %v5031 = vmax.f32 %v4952, %v4997
        %v5032 = vmax.f32 %v4951, %v4999
        %v5033 = vmax.f32 %v4953, %v5001
        %v5050 = vsel %vm3435, %v5018, %v5018
        %v5051 = vsel %vm3439, %v5018, %v5050
        %v5052 = vrot.slane %v5019, 7
        %v5053 = vsel %vm3429, %v5052, %v5051
        %v5054 = vsel %vm3433, %v5052, %v5053
        %v5055 = vsel %vm3437, %v5052, %v5054
        %v5056 = vsel %vm3441, %v5052, %v5055
        %v5057 = vsel %vm3435, %v5020, %v5020
        %v5058 = vsel %vm3439, %v5020, %v5057
        %v5059 = vrot.slane %v5021, 7
        %v5060 = vsel %vm3429, %v5059, %v5058
        %v5061 = vsel %vm3433, %v5059, %v5060
        %v5062 = vsel %vm3437, %v5059, %v5061
        %v5063 = vsel %vm3441, %v5059, %v5062
        %v5064 = vsel %vm3435, %v5022, %v5022
        %v5065 = vsel %vm3439, %v5022, %v5064
        %v5066 = vrot.slane %v5023, 7
        %v5067 = vsel %vm3429, %v5066, %v5065
        %v5068 = vsel %vm3433, %v5066, %v5067
        %v5069 = vsel %vm3437, %v5066, %v5068
        %v5070 = vsel %vm3441, %v5066, %v5069
        %v5071 = vsel %vm3435, %v5024, %v5024
        %v5072 = vsel %vm3439, %v5024, %v5071
        %v5073 = vrot.slane %v5025, 7
        %v5074 = vsel %vm3429, %v5073, %v5072
        %v5075 = vsel %vm3433, %v5073, %v5074
        %v5076 = vsel %vm3437, %v5073, %v5075
        %v5077 = vsel %vm3441, %v5073, %v5076
        %v5078 = vsel %vm3435, %v5026, %v5026
        %v5079 = vsel %vm3439, %v5026, %v5078
        %v5080 = vrot.slane %v5027, 7
        %v5081 = vsel %vm3429, %v5080, %v5079
        %v5082 = vsel %vm3433, %v5080, %v5081
        %v5083 = vsel %vm3437, %v5080, %v5082
        %v5084 = vsel %vm3441, %v5080, %v5083
        %v5085 = vsel %vm3435, %v5028, %v5028
        %v5086 = vsel %vm3439, %v5028, %v5085
        %v5087 = vrot.slane %v5029, 7
        %v5088 = vsel %vm3429, %v5087, %v5086
        %v5089 = vsel %vm3433, %v5087, %v5088
        %v5090 = vsel %vm3437, %v5087, %v5089
        %v5091 = vsel %vm3441, %v5087, %v5090
        %v5092 = vsel %vm3435, %v5030, %v5030
        %v5093 = vsel %vm3439, %v5030, %v5092
        %v5094 = vrot.slane %v5031, 7
        %v5095 = vsel %vm3429, %v5094, %v5093
        %v5096 = vsel %vm3433, %v5094, %v5095
        %v5097 = vsel %vm3437, %v5094, %v5096
        %v5098 = vsel %vm3441, %v5094, %v5097
        %v5099 = vsel %vm3435, %v5032, %v5032
        %v5100 = vsel %vm3439, %v5032, %v5099
        %v5101 = vrot.slane %v5033, 7
        %v5102 = vsel %vm3429, %v5101, %v5100
        %v5103 = vsel %vm3433, %v5101, %v5102
        %v5104 = vsel %vm3437, %v5101, %v5103
        %v5105 = vsel %vm3441, %v5101, %v5104
        %v5114 = vcombine.low %v5056, %v5070
        %v5116 = vunpack.c.l.s4 1934713408
        %v5117 = vunpack.c.0.s8 %v5116
        %v5118 = vlaneseq
        %v5119 = vshrl.u32 %v5118, 7
        %v5120 = vsub.s32 %v5117, %v5119
        %v5121 = vrot.slane %v5114, %v5120
        %v5122 = vcombine.high %v5121, 0.0
        %v5123 = vcombine.low %v5084, %v5098
        %v5125 = vunpack.c.l.s4 1934713408
        %v5126 = vunpack.c.0.s8 %v5125
        %v5127 = vlaneseq
        %v5128 = vshrl.u32 %v5127, 7
        %v5129 = vsub.s32 %v5126, %v5128
        %v5130 = vrot.slane %v5123, %v5129
        %v5131 = vcombine.high %v5130, 0.0
        %v5132 = vcombine.low %v5063, %v5077
        %v5134 = vunpack.c.l.s4 1934713408
        %v5135 = vunpack.c.0.s8 %v5134
        %v5136 = vlaneseq
        %v5137 = vshrl.u32 %v5136, 7
        %v5138 = vsub.s32 %v5135, %v5137
        %v5139 = vrot.slane %v5132, %v5138
        %v5140 = vcombine.high %v5139, 0.0
        %v5141 = vcombine.low %v5091, %v5105
        %v5143 = vunpack.c.l.s4 1934713408
        %v5144 = vunpack.c.0.s8 %v5143
        %v5145 = vlaneseq
        %v5146 = vshrl.u32 %v5145, 7
        %v5147 = vsub.s32 %v5144, %v5146
        %v5148 = vrot.slane %v5141, %v5147
        %v5149 = vcombine.high %v5148, 0.0
        %v5158 = vcombine.low %v5121, %v5130
        %v5160 = vunpack.c.l.s4 1983009808
        %v5161 = vunpack.c.0.s8 %v5160
        %v5162 = vlaneseq
        %v5163 = vshrl.u32 %v5162, 7
        %v5164 = vsub.s32 %v5161, %v5163
        %v5165 = vrot.slane %v5158, %v5164
        %v5166 = vcombine.low %v5122, %v5131
        %v5168 = vunpack.c.l.s4 1983009808
        %v5169 = vunpack.c.0.s8 %v5168
        %v5170 = vlaneseq
        %v5171 = vshrl.u32 %v5170, 7
        %v5172 = vsub.s32 %v5169, %v5171
        %v5173 = vrot.slane %v5166, %v5172
        %v5174 = vcombine.low %v5139, %v5148
        %v5176 = vunpack.c.l.s4 1983009808
        %v5177 = vunpack.c.0.s8 %v5176
        %v5178 = vlaneseq
        %v5179 = vshrl.u32 %v5178, 7
        %v5180 = vsub.s32 %v5177, %v5179
        %v5181 = vrot.slane %v5174, %v5180
        %v5182 = vcombine.low %v5140, %v5149
        %v5184 = vunpack.c.l.s4 1983009808
        %v5185 = vunpack.c.0.s8 %v5184
        %v5186 = vlaneseq
        %v5187 = vshrl.u32 %v5186, 7
        %v5188 = vsub.s32 %v5185, %v5187
        %v5189 = vrot.slane %v5182, %v5188
        %5194 = vxpose.xlu0.b32.start [1/16] %v5165, 128
        %5195 = vxpose.xlu0.b32.cont [2/16] 0.0, 128
        %5196 = vxpose.xlu0.b32.cont [3/16] 0.0, 128
        %5197 = vxpose.xlu0.b32.cont [4/16] 0.0, 128
        %5198 = vxpose.xlu0.b32.cont [5/16] 0.0, 128
        %5199 = vxpose.xlu0.b32.cont [6/16] 0.0, 128
        %5200 = vxpose.xlu0.b32.cont [7/16] 0.0, 128
        %5201 = vxpose.xlu0.b32.cont [8/16] 0.0, 128
        %5202 = vxpose.xlu0.b32.cont [9/16] 0.0, 128
        %5203 = vxpose.xlu0.b32.cont [10/16] 0.0, 128
        %5204 = vxpose.xlu0.b32.cont [11/16] 0.0, 128
        %5205 = vxpose.xlu0.b32.cont [12/16] 0.0, 128
        %5206 = vxpose.xlu0.b32.cont [13/16] 0.0, 128
        %5207 = vxpose.xlu0.b32.cont [14/16] 0.0, 128
        %5208 = vxpose.xlu0.b32.cont [15/16] 0.0, 128
        %5209 = vxpose.xlu0.b32.end [16/16] 0.0, 128
        %v5210 = vpop.trf.xlu0
        %v5211 = vpop.trf.xlu0
        %v5212 = vpop.trf.xlu0
        %v5213 = vpop.trf.xlu0
        %v5214 = vpop.trf.xlu0
        %v5215 = vpop.trf.xlu0
        %v5216 = vpop.trf.xlu0
        %v5217 = vpop.trf.xlu0
        %v5218 = vpop.trf.xlu0
        %v5219 = vpop.trf.xlu0
        %v5220 = vpop.trf.xlu0
        %v5221 = vpop.trf.xlu0
        %v5222 = vpop.trf.xlu0
        %v5223 = vpop.trf.xlu0
        %v5224 = vpop.trf.xlu0
        %v5225 = vpop.trf.xlu0
        %5226 = vxpose.xlu0.b32.start [1/16] %v5173, 128
        %5227 = vxpose.xlu0.b32.cont [2/16] 0.0, 128
        %5228 = vxpose.xlu0.b32.cont [3/16] 0.0, 128
        %5229 = vxpose.xlu0.b32.cont [4/16] 0.0, 128
        %5230 = vxpose.xlu0.b32.cont [5/16] 0.0, 128
        %5231 = vxpose.xlu0.b32.cont [6/16] 0.0, 128
        %5232 = vxpose.xlu0.b32.cont [7/16] 0.0, 128
        %5233 = vxpose.xlu0.b32.cont [8/16] 0.0, 128
        %5234 = vxpose.xlu0.b32.cont [9/16] 0.0, 128
        %5235 = vxpose.xlu0.b32.cont [10/16] 0.0, 128
        %5236 = vxpose.xlu0.b32.cont [11/16] 0.0, 128
        %5237 = vxpose.xlu0.b32.cont [12/16] 0.0, 128
        %5238 = vxpose.xlu0.b32.cont [13/16] 0.0, 128
        %5239 = vxpose.xlu0.b32.cont [14/16] 0.0, 128
        %5240 = vxpose.xlu0.b32.cont [15/16] 0.0, 128
        %5241 = vxpose.xlu0.b32.end [16/16] 0.0, 128
        %v5242 = vpop.trf.xlu0
        %v5243 = vpop.trf.xlu0
        %v5244 = vpop.trf.xlu0
        %v5245 = vpop.trf.xlu0
        %v5246 = vpop.trf.xlu0
        %v5247 = vpop.trf.xlu0
        %v5248 = vpop.trf.xlu0
        %v5249 = vpop.trf.xlu0
        %v5250 = vpop.trf.xlu0
        %v5251 = vpop.trf.xlu0
        %v5252 = vpop.trf.xlu0
        %v5253 = vpop.trf.xlu0
        %v5254 = vpop.trf.xlu0
        %v5255 = vpop.trf.xlu0
        %v5256 = vpop.trf.xlu0
        %v5257 = vpop.trf.xlu0
        %5258 = vxpose.xlu0.b32.start [1/16] %v5181, 128
        %5259 = vxpose.xlu0.b32.cont [2/16] 0.0, 128
        %5260 = vxpose.xlu0.b32.cont [3/16] 0.0, 128
        %5261 = vxpose.xlu0.b32.cont [4/16] 0.0, 128
        %5262 = vxpose.xlu0.b32.cont [5/16] 0.0, 128
        %5263 = vxpose.xlu0.b32.cont [6/16] 0.0, 128
        %5264 = vxpose.xlu0.b32.cont [7/16] 0.0, 128
        %5265 = vxpose.xlu0.b32.cont [8/16] 0.0, 128
        %5266 = vxpose.xlu0.b32.cont [9/16] 0.0, 128
        %5267 = vxpose.xlu0.b32.cont [10/16] 0.0, 128
        %5268 = vxpose.xlu0.b32.cont [11/16] 0.0, 128
        %5269 = vxpose.xlu0.b32.cont [12/16] 0.0, 128
        %5270 = vxpose.xlu0.b32.cont [13/16] 0.0, 128
        %5271 = vxpose.xlu0.b32.cont [14/16] 0.0, 128
        %5272 = vxpose.xlu0.b32.cont [15/16] 0.0, 128
        %5273 = vxpose.xlu0.b32.end [16/16] 0.0, 128
        %v5274 = vpop.trf.xlu0
        %v5275 = vpop.trf.xlu0
        %v5276 = vpop.trf.xlu0
        %v5277 = vpop.trf.xlu0
        %v5278 = vpop.trf.xlu0
        %v5279 = vpop.trf.xlu0
        %v5280 = vpop.trf.xlu0
        %v5281 = vpop.trf.xlu0
        %v5282 = vpop.trf.xlu0
        %v5283 = vpop.trf.xlu0
        %v5284 = vpop.trf.xlu0
        %v5285 = vpop.trf.xlu0
        %v5286 = vpop.trf.xlu0
        %v5287 = vpop.trf.xlu0
        %v5288 = vpop.trf.xlu0
        %v5289 = vpop.trf.xlu0
        %5290 = vxpose.xlu0.b32.start [1/16] %v5189, 128
        %5291 = vxpose.xlu0.b32.cont [2/16] 0.0, 128
        %5292 = vxpose.xlu0.b32.cont [3/16] 0.0, 128
        %5293 = vxpose.xlu0.b32.cont [4/16] 0.0, 128
        %5294 = vxpose.xlu0.b32.cont [5/16] 0.0, 128
        %5295 = vxpose.xlu0.b32.cont [6/16] 0.0, 128
        %5296 = vxpose.xlu0.b32.cont [7/16] 0.0, 128
        %5297 = vxpose.xlu0.b32.cont [8/16] 0.0, 128
        %5298 = vxpose.xlu0.b32.cont [9/16] 0.0, 128
        %5299 = vxpose.xlu0.b32.cont [10/16] 0.0, 128
        %5300 = vxpose.xlu0.b32.cont [11/16] 0.0, 128
        %5301 = vxpose.xlu0.b32.cont [12/16] 0.0, 128
        %5302 = vxpose.xlu0.b32.cont [13/16] 0.0, 128
        %5303 = vxpose.xlu0.b32.cont [14/16] 0.0, 128
        %5304 = vxpose.xlu0.b32.cont [15/16] 0.0, 128
        %5305 = vxpose.xlu0.b32.end [16/16] 0.0, 128
        %v5306 = vpop.trf.xlu0
        %v5307 = vpop.trf.xlu0
        %v5308 = vpop.trf.xlu0
        %v5309 = vpop.trf.xlu0
        %v5310 = vpop.trf.xlu0
        %v5311 = vpop.trf.xlu0
        %v5312 = vpop.trf.xlu0
        %v5313 = vpop.trf.xlu0
        %v5314 = vpop.trf.xlu0
        %v5315 = vpop.trf.xlu0
        %v5316 = vpop.trf.xlu0
        %v5317 = vpop.trf.xlu0
        %v5318 = vpop.trf.xlu0
        %v5319 = vpop.trf.xlu0
        %v5320 = vpop.trf.xlu0
        %v5321 = vpop.trf.xlu0
        %v5322 = vcombine.low %v5210, %v5274
        %v5323 = vcombine.high %v5210, %v5274
        %v5325 = vunpack.c.l.s4 1983009808
        %v5326 = vunpack.c.0.s8 %v5325
        %v5327 = vlaneseq
        %v5328 = vshrl.u32 %v5327, 7
        %v5329 = vsub.s32 %v5326, %v5328
        %v5330 = vrot.slane %v5322, %v5329
        %v5332 = vunpack.c.l.s4 1983009808
        %v5333 = vunpack.c.0.s8 %v5332
        %v5334 = vlaneseq
        %v5335 = vshrl.u32 %v5334, 7
        %v5336 = vsub.s32 %v5333, %v5335
        %v5337 = vrot.slane %v5323, %v5336
        %v5338 = vcombine.low %v5242, %v5306
        %v5339 = vcombine.high %v5242, %v5306
        %v5341 = vunpack.c.l.s4 1983009808
        %v5342 = vunpack.c.0.s8 %v5341
        %v5343 = vlaneseq
        %v5344 = vshrl.u32 %v5343, 7
        %v5345 = vsub.s32 %v5342, %v5344
        %v5346 = vrot.slane %v5338, %v5345
        %v5348 = vunpack.c.l.s4 1983009808
        %v5349 = vunpack.c.0.s8 %v5348
        %v5350 = vlaneseq
        %v5351 = vshrl.u32 %v5350, 7
        %v5352 = vsub.s32 %v5349, %v5351
        %v5353 = vrot.slane %v5339, %v5352
        %v5354 = vcombine.low %v5330, %v5346
        %v5355 = vcombine.high %v5330, %v5346
        %v5357 = vunpack.c.l.s4 1934713408
        %v5358 = vunpack.c.0.s8 %v5357
        %v5359 = vlaneseq
        %v5360 = vshrl.u32 %v5359, 7
        %v5361 = vsub.s32 %v5358, %v5360
        %v5362 = vrot.slane %v5354, %v5361
        %v5364 = vunpack.c.l.s4 1934713408
        %v5365 = vunpack.c.0.s8 %v5364
        %v5366 = vlaneseq
        %v5367 = vshrl.u32 %v5366, 7
        %v5368 = vsub.s32 %v5365, %v5367
        %v5369 = vrot.slane %v5355, %v5368
        %v5370 = vcombine.low %v5337, %v5353
        %v5371 = vcombine.high %v5337, %v5353
        %v5373 = vunpack.c.l.s4 1934713408
        %v5374 = vunpack.c.0.s8 %v5373
        %v5375 = vlaneseq
        %v5376 = vshrl.u32 %v5375, 7
        %v5377 = vsub.s32 %v5374, %v5376
        %v5378 = vrot.slane %v5370, %v5377
        %v5380 = vunpack.c.l.s4 1934713408
        %v5381 = vunpack.c.0.s8 %v5380
        %v5382 = vlaneseq
        %v5383 = vshrl.u32 %v5382, 7
        %v5384 = vsub.s32 %v5381, %v5383
        %v5385 = vrot.slane %v5371, %v5384
        %v5386 = vcombine.high %v5362, 0.0
        %v5387 = vcombine.high %v5369, 0.0
        %v5388 = vcombine.high %v5378, 0.0
        %v5389 = vcombine.high %v5385, 0.0
        %v5390 = vcombine.low %v5211, %v5275
        %v5391 = vcombine.high %v5211, %v5275
        %v5393 = vunpack.c.l.s4 1983009808
        %v5394 = vunpack.c.0.s8 %v5393
        %v5395 = vlaneseq
        %v5396 = vshrl.u32 %v5395, 7
        %v5397 = vsub.s32 %v5394, %v5396
        %v5398 = vrot.slane %v5390, %v5397
        %v5400 = vunpack.c.l.s4 1983009808
        %v5401 = vunpack.c.0.s8 %v5400
        %v5402 = vlaneseq
        %v5403 = vshrl.u32 %v5402, 7
        %v5404 = vsub.s32 %v5401, %v5403
        %v5405 = vrot.slane %v5391, %v5404
        %v5406 = vcombine.low %v5243, %v5307
        %v5407 = vcombine.high %v5243, %v5307
        %v5409 = vunpack.c.l.s4 1983009808
        %v5410 = vunpack.c.0.s8 %v5409
        %v5411 = vlaneseq
        %v5412 = vshrl.u32 %v5411, 7
        %v5413 = vsub.s32 %v5410, %v5412
        %v5414 = vrot.slane %v5406, %v5413
        %v5416 = vunpack.c.l.s4 1983009808
        %v5417 = vunpack.c.0.s8 %v5416
        %v5418 = vlaneseq
        %v5419 = vshrl.u32 %v5418, 7
        %v5420 = vsub.s32 %v5417, %v5419
        %v5421 = vrot.slane %v5407, %v5420
        %v5422 = vcombine.low %v5398, %v5414
        %v5423 = vcombine.high %v5398, %v5414
        %v5425 = vunpack.c.l.s4 1934713408
        %v5426 = vunpack.c.0.s8 %v5425
        %v5427 = vlaneseq
        %v5428 = vshrl.u32 %v5427, 7
        %v5429 = vsub.s32 %v5426, %v5428
        %v5430 = vrot.slane %v5422, %v5429
        %v5432 = vunpack.c.l.s4 1934713408
        %v5433 = vunpack.c.0.s8 %v5432
        %v5434 = vlaneseq
        %v5435 = vshrl.u32 %v5434, 7
        %v5436 = vsub.s32 %v5433, %v5435
        %v5437 = vrot.slane %v5423, %v5436
        %v5438 = vcombine.low %v5405, %v5421
        %v5439 = vcombine.high %v5405, %v5421
        %v5441 = vunpack.c.l.s4 1934713408
        %v5442 = vunpack.c.0.s8 %v5441
        %v5443 = vlaneseq
        %v5444 = vshrl.u32 %v5443, 7
        %v5445 = vsub.s32 %v5442, %v5444
        %v5446 = vrot.slane %v5438, %v5445
        %v5448 = vunpack.c.l.s4 1934713408
        %v5449 = vunpack.c.0.s8 %v5448
        %v5450 = vlaneseq
        %v5451 = vshrl.u32 %v5450, 7
        %v5452 = vsub.s32 %v5449, %v5451
        %v5453 = vrot.slane %v5439, %v5452
        %v5454 = vcombine.high %v5430, 0.0
        %v5455 = vcombine.high %v5437, 0.0
        %v5456 = vcombine.high %v5446, 0.0
        %v5457 = vcombine.high %v5453, 0.0
        %v5458 = vcombine.low %v5212, %v5276
        %v5459 = vcombine.high %v5212, %v5276
        %v5461 = vunpack.c.l.s4 1983009808
        %v5462 = vunpack.c.0.s8 %v5461
        %v5463 = vlaneseq
        %v5464 = vshrl.u32 %v5463, 7
        %v5465 = vsub.s32 %v5462, %v5464
        %v5466 = vrot.slane %v5458, %v5465
        %v5468 = vunpack.c.l.s4 1983009808
        %v5469 = vunpack.c.0.s8 %v5468
        %v5470 = vlaneseq
        %v5471 = vshrl.u32 %v5470, 7
        %v5472 = vsub.s32 %v5469, %v5471
        %v5473 = vrot.slane %v5459, %v5472
        %v5474 = vcombine.low %v5244, %v5308
        %v5475 = vcombine.high %v5244, %v5308
        %v5477 = vunpack.c.l.s4 1983009808
        %v5478 = vunpack.c.0.s8 %v5477
        %v5479 = vlaneseq
        %v5480 = vshrl.u32 %v5479, 7
        %v5481 = vsub.s32 %v5478, %v5480
        %v5482 = vrot.slane %v5474, %v5481
        %v5484 = vunpack.c.l.s4 1983009808
        %v5485 = vunpack.c.0.s8 %v5484
        %v5486 = vlaneseq
        %v5487 = vshrl.u32 %v5486, 7
        %v5488 = vsub.s32 %v5485, %v5487
        %v5489 = vrot.slane %v5475, %v5488
        %v5490 = vcombine.low %v5466, %v5482
        %v5491 = vcombine.high %v5466, %v5482
        %v5493 = vunpack.c.l.s4 1934713408
        %v5494 = vunpack.c.0.s8 %v5493
        %v5495 = vlaneseq
        %v5496 = vshrl.u32 %v5495, 7
        %v5497 = vsub.s32 %v5494, %v5496
        %v5498 = vrot.slane %v5490, %v5497
        %v5500 = vunpack.c.l.s4 1934713408
        %v5501 = vunpack.c.0.s8 %v5500
        %v5502 = vlaneseq
        %v5503 = vshrl.u32 %v5502, 7
        %v5504 = vsub.s32 %v5501, %v5503
        %v5505 = vrot.slane %v5491, %v5504
        %v5506 = vcombine.low %v5473, %v5489
        %v5507 = vcombine.high %v5473, %v5489
        %v5509 = vunpack.c.l.s4 1934713408
        %v5510 = vunpack.c.0.s8 %v5509
        %v5511 = vlaneseq
        %v5512 = vshrl.u32 %v5511, 7
        %v5513 = vsub.s32 %v5510, %v5512
        %v5514 = vrot.slane %v5506, %v5513
        %v5516 = vunpack.c.l.s4 1934713408
        %v5517 = vunpack.c.0.s8 %v5516
        %v5518 = vlaneseq
        %v5519 = vshrl.u32 %v5518, 7
        %v5520 = vsub.s32 %v5517, %v5519
        %v5521 = vrot.slane %v5507, %v5520
        %v5522 = vcombine.high %v5498, 0.0
        %v5523 = vcombine.high %v5505, 0.0
        %v5524 = vcombine.high %v5514, 0.0
        %v5525 = vcombine.high %v5521, 0.0
        %v5526 = vcombine.low %v5213, %v5277
        %v5527 = vcombine.high %v5213, %v5277
        %v5529 = vunpack.c.l.s4 1983009808
        %v5530 = vunpack.c.0.s8 %v5529
        %v5531 = vlaneseq
        %v5532 = vshrl.u32 %v5531, 7
        %v5533 = vsub.s32 %v5530, %v5532
        %v5534 = vrot.slane %v5526, %v5533
        %v5536 = vunpack.c.l.s4 1983009808
        %v5537 = vunpack.c.0.s8 %v5536
        %v5538 = vlaneseq
        %v5539 = vshrl.u32 %v5538, 7
        %v5540 = vsub.s32 %v5537, %v5539
        %v5541 = vrot.slane %v5527, %v5540
        %v5542 = vcombine.low %v5245, %v5309
        %v5543 = vcombine.high %v5245, %v5309
        %v5545 = vunpack.c.l.s4 1983009808
        %v5546 = vunpack.c.0.s8 %v5545
        %v5547 = vlaneseq
        %v5548 = vshrl.u32 %v5547, 7
        %v5549 = vsub.s32 %v5546, %v5548
        %v5550 = vrot.slane %v5542, %v5549
        %v5552 = vunpack.c.l.s4 1983009808
        %v5553 = vunpack.c.0.s8 %v5552
        %v5554 = vlaneseq
        %v5555 = vshrl.u32 %v5554, 7
        %v5556 = vsub.s32 %v5553, %v5555
        %v5557 = vrot.slane %v5543, %v5556
        %v5558 = vcombine.low %v5534, %v5550
        %v5559 = vcombine.high %v5534, %v5550
        %v5561 = vunpack.c.l.s4 1934713408
        %v5562 = vunpack.c.0.s8 %v5561
        %v5563 = vlaneseq
        %v5564 = vshrl.u32 %v5563, 7
        %v5565 = vsub.s32 %v5562, %v5564
        %v5566 = vrot.slane %v5558, %v5565
        %v5568 = vunpack.c.l.s4 1934713408
        %v5569 = vunpack.c.0.s8 %v5568
        %v5570 = vlaneseq
        %v5571 = vshrl.u32 %v5570, 7
        %v5572 = vsub.s32 %v5569, %v5571
        %v5573 = vrot.slane %v5559, %v5572
        %v5574 = vcombine.low %v5541, %v5557
        %v5575 = vcombine.high %v5541, %v5557
        %v5577 = vunpack.c.l.s4 1934713408
        %v5578 = vunpack.c.0.s8 %v5577
        %v5579 = vlaneseq
        %v5580 = vshrl.u32 %v5579, 7
        %v5581 = vsub.s32 %v5578, %v5580
        %v5582 = vrot.slane %v5574, %v5581
        %v5584 = vunpack.c.l.s4 1934713408
        %v5585 = vunpack.c.0.s8 %v5584
        %v5586 = vlaneseq
        %v5587 = vshrl.u32 %v5586, 7
        %v5588 = vsub.s32 %v5585, %v5587
        %v5589 = vrot.slane %v5575, %v5588
        %v5590 = vcombine.high %v5566, 0.0
        %v5591 = vcombine.high %v5573, 0.0
        %v5592 = vcombine.high %v5582, 0.0
        %v5593 = vcombine.high %v5589, 0.0
        %5595 = vrot.lane.b32.xlu0 %v5386, 4
        %v5596 = vpop.permute.xlu0 %5595
        %5599 = vrot.lane.b32.xlu0 %v5369, 8
        %v5600 = vpop.permute.xlu0 %5599
        %5603 = vrot.lane.b32.xlu0 %v5387, 12
        %v5604 = vpop.permute.xlu0 %5603
        %5607 = vrot.lane.b32.xlu0 %v5378, 16
        %v5608 = vpop.permute.xlu0 %5607
        %5611 = vrot.lane.b32.xlu0 %v5388, 20
        %v5612 = vpop.permute.xlu0 %5611
        %5615 = vrot.lane.b32.xlu0 %v5385, 24
        %v5616 = vpop.permute.xlu0 %5615
        %5619 = vrot.lane.b32.xlu0 %v5389, 28
        %v5620 = vpop.permute.xlu0 %5619
        %5623 = vrot.lane.b32.xlu0 %v5430, 32
        %v5624 = vpop.permute.xlu0 %5623
        %5627 = vrot.lane.b32.xlu0 %v5454, 36
        %v5628 = vpop.permute.xlu0 %5627
        %5631 = vrot.lane.b32.xlu0 %v5437, 40
        %v5632 = vpop.permute.xlu0 %5631
        %5635 = vrot.lane.b32.xlu0 %v5455, 44
        %v5636 = vpop.permute.xlu0 %5635
        %5639 = vrot.lane.b32.xlu0 %v5446, 48
        %v5640 = vpop.permute.xlu0 %5639
        %5643 = vrot.lane.b32.xlu0 %v5456, 52
        %v5644 = vpop.permute.xlu0 %5643
        %5647 = vrot.lane.b32.xlu0 %v5453, 56
        %v5648 = vpop.permute.xlu0 %5647
        %5651 = vrot.lane.b32.xlu0 %v5457, 60
        %v5652 = vpop.permute.xlu0 %5651
        %5655 = vrot.lane.b32.xlu0 %v5498, 64
        %v5656 = vpop.permute.xlu0 %5655
        %5659 = vrot.lane.b32.xlu0 %v5522, 68
        %v5660 = vpop.permute.xlu0 %5659
        %5663 = vrot.lane.b32.xlu0 %v5505, 72
        %v5664 = vpop.permute.xlu0 %5663
        %5667 = vrot.lane.b32.xlu0 %v5523, 76
        %v5668 = vpop.permute.xlu0 %5667
        %5671 = vrot.lane.b32.xlu0 %v5514, 80
        %v5672 = vpop.permute.xlu0 %5671
        %5675 = vrot.lane.b32.xlu0 %v5524, 84
        %v5676 = vpop.permute.xlu0 %5675
        %5679 = vrot.lane.b32.xlu0 %v5521, 88
        %v5680 = vpop.permute.xlu0 %5679
        %5683 = vrot.lane.b32.xlu0 %v5525, 92
        %v5684 = vpop.permute.xlu0 %5683
        %5687 = vrot.lane.b32.xlu0 %v5566, 96
        %v5688 = vpop.permute.xlu0 %5687
        %5691 = vrot.lane.b32.xlu0 %v5590, 100
        %v5692 = vpop.permute.xlu0 %5691
        %5695 = vrot.lane.b32.xlu0 %v5573, 104
        %v5696 = vpop.permute.xlu0 %5695
        %5699 = vrot.lane.b32.xlu0 %v5591, 108
        %v5700 = vpop.permute.xlu0 %5699
        %5703 = vrot.lane.b32.xlu0 %v5582, 112
        %v5704 = vpop.permute.xlu0 %5703
        %5707 = vrot.lane.b32.xlu0 %v5592, 116
        %v5708 = vpop.permute.xlu0 %5707
        %5711 = vrot.lane.b32.xlu0 %v5589, 120
        %v5712 = vpop.permute.xlu0 %5711
        %5715 = vrot.lane.b32.xlu0 %v5593, 124
        %v5716 = vpop.permute.xlu0 %5715
        %vm5718 = vcmask 31744
        %v5719 = vsel %vm5718, %v5362, %v5596
        %vm5720 = vcmask 64512
        %v5721 = vsel %vm5720, %v5719, %v5600
        %vm5722 = vcmask 97280
        %v5723 = vsel %vm5722, %v5721, %v5604
        %v5724 = vsel %vm3087, %v5723, %v5608
        %vm5725 = vcmask 162816
        %v5726 = vsel %vm5725, %v5724, %v5612
        %vm5727 = vcmask 195584
        %v5728 = vsel %vm5727, %v5726, %v5616
        %vm5729 = vcmask 228352
        %v5730 = vsel %vm5729, %v5728, %v5620
        %vm5731 = vcmask 261120
        %v5732 = vsel %vm5731, %v5730, %v5624
        %vm5733 = vcmask 293888
        %v5734 = vsel %vm5733, %v5732, %v5628
        %vm5735 = vcmask 326656
        %v5736 = vsel %vm5735, %v5734, %v5632
        %vm5737 = vcmask 359424
        %v5738 = vsel %vm5737, %v5736, %v5636
        %vm5739 = vcmask 392192
        %v5740 = vsel %vm5739, %v5738, %v5640
        %vm5741 = vcmask 424960
        %v5742 = vsel %vm5741, %v5740, %v5644
        %vm5743 = vcmask 457728
        %v5744 = vsel %vm5743, %v5742, %v5648
        %vm5745 = vcmask 490496
        %v5746 = vsel %vm5745, %v5744, %v5652
        %vm5747 = vcmask 523264
        %v5748 = vsel %vm5747, %v5746, %v5656
        %vm5749 = vcmask 556032
        %v5750 = vsel %vm5749, %v5748, %v5660
        %vm5751 = vcmask 588800
        %v5752 = vsel %vm5751, %v5750, %v5664
        %vm5753 = vcmask 621568
        %v5754 = vsel %vm5753, %v5752, %v5668
        %vm5755 = vcmask 654336
        %v5756 = vsel %vm5755, %v5754, %v5672
        %vm5757 = vcmask 687104
        %v5758 = vsel %vm5757, %v5756, %v5676
        %vm5759 = vcmask 719872
        %v5760 = vsel %vm5759, %v5758, %v5680
        %vm5761 = vcmask 752640
        %v5762 = vsel %vm5761, %v5760, %v5684
        %vm5763 = vcmask 785408
        %v5764 = vsel %vm5763, %v5762, %v5688
        %vm5765 = vcmask 818176
        %v5766 = vsel %vm5765, %v5764, %v5692
        %vm5767 = vcmask 850944
        %v5768 = vsel %vm5767, %v5766, %v5696
        %vm5769 = vcmask 883712
        %v5770 = vsel %vm5769, %v5768, %v5700
        %vm5771 = vcmask 916480
        %v5772 = vsel %vm5771, %v5770, %v5704
        %vm5773 = vcmask 949248
        %v5774 = vsel %vm5773, %v5772, %v5708
        %vm5775 = vcmask 982016
        %v5776 = vsel %vm5775, %v5774, %v5712
        %vm5777 = vcmask 1014784
        %v5778 = vsel %vm5777, %v5776, %v5716
        %5779 = vst [vmem:[%s379] sm:$0xf] %v5778
        %s5780 = sand.u32 %s229, 1
        %s5781 = scalar_lea.sflag [#allocation6], %s5780
        %s5782 = sand.u32 %s229, 1
        %s5783 = smul.addr %s5782, 4
        %s5784 = scalar_lea.vmem [#allocation10], %s5783
        // Predicated region
        $region69: #{tpu_custom_call.1} parent=55 // pred_check
          %p5785 = pneg %p239
        $region70: #{tpu_custom_call.1} parent=55 // pred_check_branch
          %5787 = sbr.rel (%p5785) target = $region72
        $region71: #{tpu_custom_call.1} parent=55 // pred_region
          %s5789 = ssub.s32 64, 64
          %5790 = vsyncadd %s5781, %s5789
          %s5791 = smul.addr %s27, 64
          %s5792 = scalar_lea.hbm %s9, %s5791
          %s5794 = sshll.u32 %s5784, 4
          %s5795 = int_to_ptr.vmem [resolvable:$true] %s5794
          %5797 = dma.vmem_to_hbm [thread:$0]  %s5795, 64, %s5792, %s5781
        $region72: #{tpu_custom_call.1} parent=55 // pred_fallthru
          _
      $region56: #{tpu_custom_call.1} parent=5 // pred_fallthru
        _
      %p5798 = scmp.le.s32.totalorder 2, %s22
      // Predicated region
      $region73: #{tpu_custom_call.1} parent=5 // pred_check
        %p5799 = pneg %p5798
      $region74: #{tpu_custom_call.1} parent=5 // pred_check_branch
        %5801 = sbr.rel (%p5799) target = $region76
      $region75: #{tpu_custom_call.1} parent=5 // pred_region
        %s5802 = ssub.s32 %s22, 2
        // Predicated region
        $region77: #{tpu_custom_call.1} parent=75 // pred_check
          %p5803 = pneg %p245
        $region78: #{tpu_custom_call.1} parent=75 // pred_check_branch
          %5805 = sbr.rel (%p5803) target = $region80
        $region79: #{tpu_custom_call.1} parent=75 // pred_region
          %s5806 = sand.u32 %s230, 1
          %s5807 = scalar_lea.sflag [#allocation6], %s5806
          %s5808 = sand.u32 %s230, 1
          %s5809 = smul.addr %s5808, 4
          %s5810 = scalar_lea.vmem [#allocation10], %s5809
          %5811 = dma.done %s5807, 64
        $region80: #{tpu_custom_call.1} parent=75 // pred_fallthru
          _
      $region76: #{tpu_custom_call.1} parent=5 // pred_fallthru
        _
    $region6: #{tpu_custom_call.1} parent=1 // loop_footer
      %s26 = sadd.s32 1, %s22
    $region7: #{tpu_custom_call.1} parent=1 // loop_footer_branch
      %21 = sbr.rel target = $region3
    $region8: #{tpu_custom_call.1} parent=1 // loop_exit
      _
    %5812 = vsyncpa [#allocation5], 1
    %s5813 = scalar_lea.sflag [#allocation5], 1
    %5814 = vsyncpa %s5813, 1
    %5815 = vsyncpa [#allocation8], 1
    %5816 = vsyncpa [#allocation6], 1
    %s5817 = scalar_lea.sflag [#allocation6], 1
    %5818 = vsyncpa %s5817, 1

</llo_original>
